<compile_context>
chip_gen: v6e
topology: v6e:2x2x1
jax: 0.10.0
libtpu: 0.0.40
codegen_flags: <defaults>
</compile_context>

<pallas_src>
import jax
import jax.numpy as jnp
from jax import lax
from jax.experimental import pallas as pl
from jax.experimental.pallas import tpu as pltpu

# logical layer widths (as in the PyTorch module)
V1, H1, H2, H3, NC = 28 * 28, 500, 200, 50, 10
# lane-aligned (padded) widths
V1P, H1P, H2P, H3P, NCP = 896, 512, 256, 128, 128
K_GIBBS = 2


# ----------------------------------------------------------------------------
# Fused kernel: entire DBN forward in one pallas_call (no grid, whole-array
# VMEM blocks; total VMEM use ~6 MB, well inside v5e/v6e/v7x budgets).
# ----------------------------------------------------------------------------
def _dbn_kernel(x_ref,
                w1_ref, b1_ref, c1_ref,
                w2_ref, b2_ref, c2_ref,
                w3_ref, b3_ref, c3_ref,
                wc_ref, bc_ref,
                uh1_ref, uv1_ref, uh2_ref, uv2_ref, uh3_ref, uv3_ref,
                out_ref):

    def rbm(v, w_ref, b_ref, c_ref, uh_ref, uv_ref):
        w = w_ref[...]          # (Vp, Hp) — resident for the whole Gibbs chain
        b = b_ref[...]          # (1, Vp)
        c = c_ref[...]          # (1, Hp)

        def h_sample(v, u):
            p_h = jax.nn.sigmoid(
                jnp.dot(v, w, preferred_element_type=jnp.float32) + c)
            return (u < p_h).astype(jnp.float32)

        def v_sample(h, u):
            # h @ w.T without materializing a transposed copy: contract dim 1
            # of h with dim 1 of w (MXU consumes the transposed operand).
            p_v = jax.nn.sigmoid(
                lax.dot_general(h, w, (((1,), (1,)), ((), ())),
                                preferred_element_type=jnp.float32) + b)
            return (u < p_v).astype(jnp.float32)

        for i in range(K_GIBBS):            # k = 2, static unroll
            h = h_sample(v, uh_ref[i])
            v = v_sample(h, uv_ref[i])
        # TODO(synk): the original PyTorch RBM.forward returns the *visible*
        # sample v, which makes DBN's layer chaining shape-inconsistent
        # (rbm1 would return 784 features while rbm2 expects 500).  We return
        # a hidden sample given the final v so 784 -> 500 -> 200 -> 50 -> 10
        # is well-formed.
        return h_sample(v, uh_ref[K_GIBBS])

    v = x_ref[...]
    h1 = rbm(v,  w1_ref, b1_ref, c1_ref, uh1_ref, uv1_ref)
    h2 = rbm(h1, w2_ref, b2_ref, c2_ref, uh2_ref, uv2_ref)
    h3 = rbm(h2, w3_ref, b3_ref, c3_ref, uh3_ref, uv3_ref)
    # classifier fused into the same kernel (50x10, padded to 128x128)
    out_ref[...] = (jnp.dot(h3, wc_ref[...],
                            preferred_element_type=jnp.float32) + bc_ref[...])


# ----------------------------------------------------------------------------
# Padding helpers (zero-pad -> numerically inert given zero pad rows/cols)
# ----------------------------------------------------------------------------
def _pad2(a, rows, cols):
    return jnp.pad(a, ((0, rows - a.shape[0]), (0, cols - a.shape[1])))


def _pad_row(a, cols):
    a = a.reshape(1, -1)
    return jnp.pad(a, ((0, 0), (0, cols - a.shape[1])))


# ----------------------------------------------------------------------------
# Forward
# ----------------------------------------------------------------------------
@jax.jit
def dbn_forward(x, params, key):
    B = x.shape[0]
    Bp = max(8, ((B + 7) // 8) * 8)           # pad batch to sublane multiple

    v = x.reshape(B, -1).astype(jnp.float32)
    v = jnp.pad(v, ((0, Bp - B), (0, V1P - V1)))

    p1, p2, p3 = params["rbm1"], params["rbm2"], params["rbm3"]
    w1, b1, c1 = _pad2(p1["W"], V1P, H1P), _pad_row(p1["b"], V1P), _pad_row(p1["c"], H1P)
    w2, b2, c2 = _pad2(p2["W"], H1P, H2P), _pad_row(p2["b"], H1P), _pad_row(p2["c"], H2P)
    w3, b3, c3 = _pad2(p3["W"], H2P, H3P), _pad_row(p3["b"], H2P), _pad_row(p3["c"], H3P)
    wc, bc = _pad2(params["cls_W"], H3P, NCP), _pad_row(params["cls_b"], NCP)

    # Uniform randoms for every bernoulli draw (3 hidden + 2 visible per RBM).
    # Generated under the same jit; hardware PRNG is avoided for portability.
    k = jax.random.split(key, 6)
    uh1 = jax.random.uniform(k[0], (K_GIBBS + 1, Bp, H1P), jnp.float32)
    uv1 = jax.random.uniform(k[1], (K_GIBBS, Bp, V1P), jnp.float32)
    uh2 = jax.random.uniform(k[2], (K_GIBBS + 1, Bp, H2P), jnp.float32)
    uv2 = jax.random.uniform(k[3], (K_GIBBS, Bp, H1P), jnp.float32)
    uh3 = jax.random.uniform(k[4], (K_GIBBS + 1, Bp, H3P), jnp.float32)
    uv3 = jax.random.uniform(k[5], (K_GIBBS, Bp, H2P), jnp.float32)

    vmem = pl.BlockSpec(memory_space=pltpu.MemorySpace.VMEM)
    out = pl.pallas_call(
        _dbn_kernel,
        out_shape=jax.ShapeDtypeStruct((Bp, NCP), jnp.float32),
        in_specs=[vmem] * 18,
        out_specs=vmem,
    )(v,
      w1, b1, c1,
      w2, b2, c2,
      w3, b3, c3,
      wc, bc,
      uh1, uv1, uh2, uv2, uh3, uv3)

    return out[:B, :NC]


# ----------------------------------------------------------------------------
# Parameter init mirroring the PyTorch module
# ----------------------------------------------------------------------------
def init_params(key):
    k1, k2, k3, k4, k5 = jax.random.split(key, 5)

    def rbm_p(k, vu, hu):
        return dict(
            W=jax.random.normal(k, (vu, hu), jnp.float32) * 0.01,
            b=jnp.zeros((vu,), jnp.float32),
            c=jnp.zeros((hu,), jnp.float32),
        )

    lim = 1.0 / jnp.sqrt(50.0)
    return dict(
        rbm1=rbm_p(k1, V1, H1),
        rbm2=rbm_p(k2, H1, H2),
        rbm3=rbm_p(k3, H2, H3),
        cls_W=jax.random.uniform(k4, (H3, NC), jnp.float32, -lim, lim),
        cls_b=jax.random.uniform(k5, (NC,), jnp.float32, -lim, lim),
    )


# ----------------------------------------------------------------------------
if __name__ == "__main__":
    key = jax.random.PRNGKey(0)
    pkey, xkey, skey = jax.random.split(key, 3)
    params = init_params(pkey)

    # Small MNIST-like input, NCHW as PyTorch would see it.
    x = jax.random.uniform(xkey, (2, 1, 28, 28), jnp.float32)

    out = dbn_forward(x, params, skey)
    out = jax.block_until_ready(out)

    assert out.shape == (2, 10), out.shape
    assert out.dtype == jnp.float32
    print("KERNEL_OK")
</pallas_src>

<mosaic_0001>
module attributes {stable_mosaic.version = 11 : i64} {
  func.func @_dbn_kernel(%arg0: memref<8x896xf32, #tpu.memory_space<vmem>>, %arg1: memref<896x512xf32, #tpu.memory_space<vmem>>, %arg2: memref<1x896xf32, #tpu.memory_space<vmem>>, %arg3: memref<1x512xf32, #tpu.memory_space<vmem>>, %arg4: memref<512x256xf32, #tpu.memory_space<vmem>>, %arg5: memref<1x512xf32, #tpu.memory_space<vmem>>, %arg6: memref<1x256xf32, #tpu.memory_space<vmem>>, %arg7: memref<256x128xf32, #tpu.memory_space<vmem>>, %arg8: memref<1x256xf32, #tpu.memory_space<vmem>>, %arg9: memref<1x128xf32, #tpu.memory_space<vmem>>, %arg10: memref<128x128xf32, #tpu.memory_space<vmem>>, %arg11: memref<1x128xf32, #tpu.memory_space<vmem>>, %arg12: memref<3x8x512xf32, #tpu.memory_space<vmem>>, %arg13: memref<2x8x896xf32, #tpu.memory_space<vmem>>, %arg14: memref<3x8x256xf32, #tpu.memory_space<vmem>>, %arg15: memref<2x8x512xf32, #tpu.memory_space<vmem>>, %arg16: memref<3x8x128xf32, #tpu.memory_space<vmem>>, %arg17: memref<2x8x256xf32, #tpu.memory_space<vmem>>, %arg18: memref<8x128xf32, #tpu.memory_space<vmem>>) attributes {dimension_semantics = [], scalar_prefetch = 0 : i64, scratch_operands = 0 : i64, tpu.core_type = #tpu.core_type<tc>} {
    %c0 = arith.constant 0 : index
    %c0_0 = arith.constant 0 : index
    %0 = vector.load %arg0[%c0, %c0_0] : memref<8x896xf32, #tpu.memory_space<vmem>>, vector<8x896xf32>
    %c0_1 = arith.constant 0 : index
    %c0_2 = arith.constant 0 : index
    %1 = vector.load %arg1[%c0_1, %c0_2] : memref<896x512xf32, #tpu.memory_space<vmem>>, vector<896x512xf32>
    %c0_3 = arith.constant 0 : index
    %c0_4 = arith.constant 0 : index
    %2 = vector.load %arg2[%c0_3, %c0_4] : memref<1x896xf32, #tpu.memory_space<vmem>>, vector<1x896xf32>
    %c0_5 = arith.constant 0 : index
    %c0_6 = arith.constant 0 : index
    %3 = vector.load %arg3[%c0_5, %c0_6] : memref<1x512xf32, #tpu.memory_space<vmem>>, vector<1x512xf32>
    %c0_7 = arith.constant 0 : index
    %c0_8 = arith.constant 0 : index
    %c0_9 = arith.constant 0 : index
    %4 = vector.load %arg12[%c0_7, %c0_8, %c0_9] : memref<3x8x512xf32, #tpu.memory_space<vmem>>, vector<1x8x512xf32>
    %5 = vector.shape_cast %4 : vector<1x8x512xf32> to vector<8x512xf32>
    %cst = arith.constant dense<0.000000e+00> : vector<8x512xf32>
    %6 = tpu.matmul %0, %1, %cst {dimension_numbers = #tpu.dot_dimension_numbers<[1], [0], [0], [1], [0, 0, 1, 1], [], []>} : vector<8x896xf32>, vector<896x512xf32>, vector<8x512xf32> -> vector<8x512xf32>
    %7 = vector.broadcast %3 : vector<1x512xf32> to vector<8x512xf32>
    %8 = arith.addf %6, %7 : vector<8x512xf32>
    %9 = arith.negf %8 : vector<8x512xf32>
    %10 = math.exp %9 : vector<8x512xf32>
    %cst_10 = arith.constant 1.000000e+00 : f32
    %11 = vector.broadcast %cst_10 : f32 to vector<8x512xf32>
    %12 = arith.addf %11, %10 : vector<8x512xf32>
    %13 = arith.divf %11, %12 : vector<8x512xf32>
    %14 = arith.cmpf olt, %5, %13 : vector<8x512xf32>
    %15 = arith.extui %14 : vector<8x512xi1> to vector<8x512xi32>
    %16 = arith.sitofp %15 : vector<8x512xi32> to vector<8x512xf32>
    %c0_11 = arith.constant 0 : index
    %c0_12 = arith.constant 0 : index
    %c0_13 = arith.constant 0 : index
    %17 = vector.load %arg13[%c0_11, %c0_12, %c0_13] : memref<2x8x896xf32, #tpu.memory_space<vmem>>, vector<1x8x896xf32>
    %18 = vector.shape_cast %17 : vector<1x8x896xf32> to vector<8x896xf32>
    %cst_14 = arith.constant dense<0.000000e+00> : vector<8x896xf32>
    %19 = tpu.matmul %16, %1, %cst_14 {dimension_numbers = #tpu.dot_dimension_numbers<[1], [1], [0], [0], [0, 0, 1, 0], [], []>} : vector<8x512xf32>, vector<896x512xf32>, vector<8x896xf32> -> vector<8x896xf32>
    %20 = vector.broadcast %2 : vector<1x896xf32> to vector<8x896xf32>
    %21 = arith.addf %19, %20 : vector<8x896xf32>
    %22 = arith.negf %21 : vector<8x896xf32>
    %23 = math.exp %22 : vector<8x896xf32>
    %cst_15 = arith.constant 1.000000e+00 : f32
    %24 = vector.broadcast %cst_15 : f32 to vector<8x896xf32>
    %25 = arith.addf %24, %23 : vector<8x896xf32>
    %26 = arith.divf %24, %25 : vector<8x896xf32>
    %27 = arith.cmpf olt, %18, %26 : vector<8x896xf32>
    %28 = arith.extui %27 : vector<8x896xi1> to vector<8x896xi32>
    %29 = arith.sitofp %28 : vector<8x896xi32> to vector<8x896xf32>
    %c1 = arith.constant 1 : index
    %c0_16 = arith.constant 0 : index
    %c0_17 = arith.constant 0 : index
    %30 = vector.load %arg12[%c1, %c0_16, %c0_17] : memref<3x8x512xf32, #tpu.memory_space<vmem>>, vector<1x8x512xf32>
    %31 = vector.shape_cast %30 : vector<1x8x512xf32> to vector<8x512xf32>
    %cst_18 = arith.constant dense<0.000000e+00> : vector<8x512xf32>
    %32 = tpu.matmul %29, %1, %cst_18 {dimension_numbers = #tpu.dot_dimension_numbers<[1], [0], [0], [1], [0, 0, 1, 1], [], []>} : vector<8x896xf32>, vector<896x512xf32>, vector<8x512xf32> -> vector<8x512xf32>
    %33 = vector.broadcast %3 : vector<1x512xf32> to vector<8x512xf32>
    %34 = arith.addf %32, %33 : vector<8x512xf32>
    %35 = arith.negf %34 : vector<8x512xf32>
    %36 = math.exp %35 : vector<8x512xf32>
    %cst_19 = arith.constant 1.000000e+00 : f32
    %37 = vector.broadcast %cst_19 : f32 to vector<8x512xf32>
    %38 = arith.addf %37, %36 : vector<8x512xf32>
    %39 = arith.divf %37, %38 : vector<8x512xf32>
    %40 = arith.cmpf olt, %31, %39 : vector<8x512xf32>
    %41 = arith.extui %40 : vector<8x512xi1> to vector<8x512xi32>
    %42 = arith.sitofp %41 : vector<8x512xi32> to vector<8x512xf32>
    %c1_20 = arith.constant 1 : index
    %c0_21 = arith.constant 0 : index
    %c0_22 = arith.constant 0 : index
    %43 = vector.load %arg13[%c1_20, %c0_21, %c0_22] : memref<2x8x896xf32, #tpu.memory_space<vmem>>, vector<1x8x896xf32>
    %44 = vector.shape_cast %43 : vector<1x8x896xf32> to vector<8x896xf32>
    %cst_23 = arith.constant dense<0.000000e+00> : vector<8x896xf32>
    %45 = tpu.matmul %42, %1, %cst_23 {dimension_numbers = #tpu.dot_dimension_numbers<[1], [1], [0], [0], [0, 0, 1, 0], [], []>} : vector<8x512xf32>, vector<896x512xf32>, vector<8x896xf32> -> vector<8x896xf32>
    %46 = vector.broadcast %2 : vector<1x896xf32> to vector<8x896xf32>
    %47 = arith.addf %45, %46 : vector<8x896xf32>
    %48 = arith.negf %47 : vector<8x896xf32>
    %49 = math.exp %48 : vector<8x896xf32>
    %cst_24 = arith.constant 1.000000e+00 : f32
    %50 = vector.broadcast %cst_24 : f32 to vector<8x896xf32>
    %51 = arith.addf %50, %49 : vector<8x896xf32>
    %52 = arith.divf %50, %51 : vector<8x896xf32>
    %53 = arith.cmpf olt, %44, %52 : vector<8x896xf32>
    %54 = arith.extui %53 : vector<8x896xi1> to vector<8x896xi32>
    %55 = arith.sitofp %54 : vector<8x896xi32> to vector<8x896xf32>
    %c2 = arith.constant 2 : index
    %c0_25 = arith.constant 0 : index
    %c0_26 = arith.constant 0 : index
    %56 = vector.load %arg12[%c2, %c0_25, %c0_26] : memref<3x8x512xf32, #tpu.memory_space<vmem>>, vector<1x8x512xf32>
    %57 = vector.shape_cast %56 : vector<1x8x512xf32> to vector<8x512xf32>
    %cst_27 = arith.constant dense<0.000000e+00> : vector<8x512xf32>
    %58 = tpu.matmul %55, %1, %cst_27 {dimension_numbers = #tpu.dot_dimension_numbers<[1], [0], [0], [1], [0, 0, 1, 1], [], []>} : vector<8x896xf32>, vector<896x512xf32>, vector<8x512xf32> -> vector<8x512xf32>
    %59 = vector.broadcast %3 : vector<1x512xf32> to vector<8x512xf32>
    %60 = arith.addf %58, %59 : vector<8x512xf32>
    %61 = arith.negf %60 : vector<8x512xf32>
    %62 = math.exp %61 : vector<8x512xf32>
    %cst_28 = arith.constant 1.000000e+00 : f32
    %63 = vector.broadcast %cst_28 : f32 to vector<8x512xf32>
    %64 = arith.addf %63, %62 : vector<8x512xf32>
    %65 = arith.divf %63, %64 : vector<8x512xf32>
    %66 = arith.cmpf olt, %57, %65 : vector<8x512xf32>
    %67 = arith.extui %66 : vector<8x512xi1> to vector<8x512xi32>
    %68 = arith.sitofp %67 : vector<8x512xi32> to vector<8x512xf32>
    %c0_29 = arith.constant 0 : index
    %c0_30 = arith.constant 0 : index
    %69 = vector.load %arg4[%c0_29, %c0_30] : memref<512x256xf32, #tpu.memory_space<vmem>>, vector<512x256xf32>
    %c0_31 = arith.constant 0 : index
    %c0_32 = arith.constant 0 : index
    %70 = vector.load %arg5[%c0_31, %c0_32] : memref<1x512xf32, #tpu.memory_space<vmem>>, vector<1x512xf32>
    %c0_33 = arith.constant 0 : index
    %c0_34 = arith.constant 0 : index
    %71 = vector.load %arg6[%c0_33, %c0_34] : memref<1x256xf32, #tpu.memory_space<vmem>>, vector<1x256xf32>
    %c0_35 = arith.constant 0 : index
    %c0_36 = arith.constant 0 : index
    %c0_37 = arith.constant 0 : index
    %72 = vector.load %arg14[%c0_35, %c0_36, %c0_37] : memref<3x8x256xf32, #tpu.memory_space<vmem>>, vector<1x8x256xf32>
    %73 = vector.shape_cast %72 : vector<1x8x256xf32> to vector<8x256xf32>
    %cst_38 = arith.constant dense<0.000000e+00> : vector<8x256xf32>
    %74 = tpu.matmul %68, %69, %cst_38 {dimension_numbers = #tpu.dot_dimension_numbers<[1], [0], [0], [1], [0, 0, 1, 1], [], []>} : vector<8x512xf32>, vector<512x256xf32>, vector<8x256xf32> -> vector<8x256xf32>
    %75 = vector.broadcast %71 : vector<1x256xf32> to vector<8x256xf32>
    %76 = arith.addf %74, %75 : vector<8x256xf32>
    %77 = arith.negf %76 : vector<8x256xf32>
    %78 = math.exp %77 : vector<8x256xf32>
    %cst_39 = arith.constant 1.000000e+00 : f32
    %79 = vector.broadcast %cst_39 : f32 to vector<8x256xf32>
    %80 = arith.addf %79, %78 : vector<8x256xf32>
    %81 = arith.divf %79, %80 : vector<8x256xf32>
    %82 = arith.cmpf olt, %73, %81 : vector<8x256xf32>
    %83 = arith.extui %82 : vector<8x256xi1> to vector<8x256xi32>
    %84 = arith.sitofp %83 : vector<8x256xi32> to vector<8x256xf32>
    %c0_40 = arith.constant 0 : index
    %c0_41 = arith.constant 0 : index
    %c0_42 = arith.constant 0 : index
    %85 = vector.load %arg15[%c0_40, %c0_41, %c0_42] : memref<2x8x512xf32, #tpu.memory_space<vmem>>, vector<1x8x512xf32>
    %86 = vector.shape_cast %85 : vector<1x8x512xf32> to vector<8x512xf32>
    %cst_43 = arith.constant dense<0.000000e+00> : vector<8x512xf32>
    %87 = tpu.matmul %84, %69, %cst_43 {dimension_numbers = #tpu.dot_dimension_numbers<[1], [1], [0], [0], [0, 0, 1, 0], [], []>} : vector<8x256xf32>, vector<512x256xf32>, vector<8x512xf32> -> vector<8x512xf32>
    %88 = vector.broadcast %70 : vector<1x512xf32> to vector<8x512xf32>
    %89 = arith.addf %87, %88 : vector<8x512xf32>
    %90 = arith.negf %89 : vector<8x512xf32>
    %91 = math.exp %90 : vector<8x512xf32>
    %cst_44 = arith.constant 1.000000e+00 : f32
    %92 = vector.broadcast %cst_44 : f32 to vector<8x512xf32>
    %93 = arith.addf %92, %91 : vector<8x512xf32>
    %94 = arith.divf %92, %93 : vector<8x512xf32>
    %95 = arith.cmpf olt, %86, %94 : vector<8x512xf32>
    %96 = arith.extui %95 : vector<8x512xi1> to vector<8x512xi32>
    %97 = arith.sitofp %96 : vector<8x512xi32> to vector<8x512xf32>
    %c1_45 = arith.constant 1 : index
    %c0_46 = arith.constant 0 : index
    %c0_47 = arith.constant 0 : index
    %98 = vector.load %arg14[%c1_45, %c0_46, %c0_47] : memref<3x8x256xf32, #tpu.memory_space<vmem>>, vector<1x8x256xf32>
    %99 = vector.shape_cast %98 : vector<1x8x256xf32> to vector<8x256xf32>
    %cst_48 = arith.constant dense<0.000000e+00> : vector<8x256xf32>
    %100 = tpu.matmul %97, %69, %cst_48 {dimension_numbers = #tpu.dot_dimension_numbers<[1], [0], [0], [1], [0, 0, 1, 1], [], []>} : vector<8x512xf32>, vector<512x256xf32>, vector<8x256xf32> -> vector<8x256xf32>
    %101 = vector.broadcast %71 : vector<1x256xf32> to vector<8x256xf32>
    %102 = arith.addf %100, %101 : vector<8x256xf32>
    %103 = arith.negf %102 : vector<8x256xf32>
    %104 = math.exp %103 : vector<8x256xf32>
    %cst_49 = arith.constant 1.000000e+00 : f32
    %105 = vector.broadcast %cst_49 : f32 to vector<8x256xf32>
    %106 = arith.addf %105, %104 : vector<8x256xf32>
    %107 = arith.divf %105, %106 : vector<8x256xf32>
    %108 = arith.cmpf olt, %99, %107 : vector<8x256xf32>
    %109 = arith.extui %108 : vector<8x256xi1> to vector<8x256xi32>
    %110 = arith.sitofp %109 : vector<8x256xi32> to vector<8x256xf32>
    %c1_50 = arith.constant 1 : index
    %c0_51 = arith.constant 0 : index
    %c0_52 = arith.constant 0 : index
    %111 = vector.load %arg15[%c1_50, %c0_51, %c0_52] : memref<2x8x512xf32, #tpu.memory_space<vmem>>, vector<1x8x512xf32>
    %112 = vector.shape_cast %111 : vector<1x8x512xf32> to vector<8x512xf32>
    %cst_53 = arith.constant dense<0.000000e+00> : vector<8x512xf32>
    %113 = tpu.matmul %110, %69, %cst_53 {dimension_numbers = #tpu.dot_dimension_numbers<[1], [1], [0], [0], [0, 0, 1, 0], [], []>} : vector<8x256xf32>, vector<512x256xf32>, vector<8x512xf32> -> vector<8x512xf32>
    %114 = vector.broadcast %70 : vector<1x512xf32> to vector<8x512xf32>
    %115 = arith.addf %113, %114 : vector<8x512xf32>
    %116 = arith.negf %115 : vector<8x512xf32>
    %117 = math.exp %116 : vector<8x512xf32>
    %cst_54 = arith.constant 1.000000e+00 : f32
    %118 = vector.broadcast %cst_54 : f32 to vector<8x512xf32>
    %119 = arith.addf %118, %117 : vector<8x512xf32>
    %120 = arith.divf %118, %119 : vector<8x512xf32>
    %121 = arith.cmpf olt, %112, %120 : vector<8x512xf32>
    %122 = arith.extui %121 : vector<8x512xi1> to vector<8x512xi32>
    %123 = arith.sitofp %122 : vector<8x512xi32> to vector<8x512xf32>
    %c2_55 = arith.constant 2 : index
    %c0_56 = arith.constant 0 : index
    %c0_57 = arith.constant 0 : index
    %124 = vector.load %arg14[%c2_55, %c0_56, %c0_57] : memref<3x8x256xf32, #tpu.memory_space<vmem>>, vector<1x8x256xf32>
    %125 = vector.shape_cast %124 : vector<1x8x256xf32> to vector<8x256xf32>
    %cst_58 = arith.constant dense<0.000000e+00> : vector<8x256xf32>
    %126 = tpu.matmul %123, %69, %cst_58 {dimension_numbers = #tpu.dot_dimension_numbers<[1], [0], [0], [1], [0, 0, 1, 1], [], []>} : vector<8x512xf32>, vector<512x256xf32>, vector<8x256xf32> -> vector<8x256xf32>
    %127 = vector.broadcast %71 : vector<1x256xf32> to vector<8x256xf32>
    %128 = arith.addf %126, %127 : vector<8x256xf32>
    %129 = arith.negf %128 : vector<8x256xf32>
    %130 = math.exp %129 : vector<8x256xf32>
    %cst_59 = arith.constant 1.000000e+00 : f32
    %131 = vector.broadcast %cst_59 : f32 to vector<8x256xf32>
    %132 = arith.addf %131, %130 : vector<8x256xf32>
    %133 = arith.divf %131, %132 : vector<8x256xf32>
    %134 = arith.cmpf olt, %125, %133 : vector<8x256xf32>
    %135 = arith.extui %134 : vector<8x256xi1> to vector<8x256xi32>
    %136 = arith.sitofp %135 : vector<8x256xi32> to vector<8x256xf32>
    %c0_60 = arith.constant 0 : index
    %c0_61 = arith.constant 0 : index
    %137 = vector.load %arg7[%c0_60, %c0_61] : memref<256x128xf32, #tpu.memory_space<vmem>>, vector<256x128xf32>
    %c0_62 = arith.constant 0 : index
    %c0_63 = arith.constant 0 : index
    %138 = vector.load %arg8[%c0_62, %c0_63] : memref<1x256xf32, #tpu.memory_space<vmem>>, vector<1x256xf32>
    %c0_64 = arith.constant 0 : index
    %c0_65 = arith.constant 0 : index
    %139 = vector.load %arg9[%c0_64, %c0_65] : memref<1x128xf32, #tpu.memory_space<vmem>>, vector<1x128xf32>
    %c0_66 = arith.constant 0 : index
    %c0_67 = arith.constant 0 : index
    %c0_68 = arith.constant 0 : index
    %140 = vector.load %arg16[%c0_66, %c0_67, %c0_68] : memref<3x8x128xf32, #tpu.memory_space<vmem>>, vector<1x8x128xf32>
    %141 = vector.shape_cast %140 : vector<1x8x128xf32> to vector<8x128xf32>
    %cst_69 = arith.constant dense<0.000000e+00> : vector<8x128xf32>
    %142 = tpu.matmul %136, %137, %cst_69 {dimension_numbers = #tpu.dot_dimension_numbers<[1], [0], [0], [1], [0, 0, 1, 1], [], []>} : vector<8x256xf32>, vector<256x128xf32>, vector<8x128xf32> -> vector<8x128xf32>
    %143 = vector.broadcast %139 : vector<1x128xf32> to vector<8x128xf32>
    %144 = arith.addf %142, %143 : vector<8x128xf32>
    %145 = arith.negf %144 : vector<8x128xf32>
    %146 = math.exp %145 : vector<8x128xf32>
    %cst_70 = arith.constant 1.000000e+00 : f32
    %147 = vector.broadcast %cst_70 : f32 to vector<8x128xf32>
    %148 = arith.addf %147, %146 : vector<8x128xf32>
    %149 = arith.divf %147, %148 : vector<8x128xf32>
    %150 = arith.cmpf olt, %141, %149 : vector<8x128xf32>
    %151 = arith.extui %150 : vector<8x128xi1> to vector<8x128xi32>
    %152 = arith.sitofp %151 : vector<8x128xi32> to vector<8x128xf32>
    %c0_71 = arith.constant 0 : index
    %c0_72 = arith.constant 0 : index
    %c0_73 = arith.constant 0 : index
    %153 = vector.load %arg17[%c0_71, %c0_72, %c0_73] : memref<2x8x256xf32, #tpu.memory_space<vmem>>, vector<1x8x256xf32>
    %154 = vector.shape_cast %153 : vector<1x8x256xf32> to vector<8x256xf32>
    %cst_74 = arith.constant dense<0.000000e+00> : vector<8x256xf32>
    %155 = tpu.matmul %152, %137, %cst_74 {dimension_numbers = #tpu.dot_dimension_numbers<[1], [1], [0], [0], [0, 0, 1, 0], [], []>} : vector<8x128xf32>, vector<256x128xf32>, vector<8x256xf32> -> vector<8x256xf32>
    %156 = vector.broadcast %138 : vector<1x256xf32> to vector<8x256xf32>
    %157 = arith.addf %155, %156 : vector<8x256xf32>
    %158 = arith.negf %157 : vector<8x256xf32>
    %159 = math.exp %158 : vector<8x256xf32>
    %cst_75 = arith.constant 1.000000e+00 : f32
    %160 = vector.broadcast %cst_75 : f32 to vector<8x256xf32>
    %161 = arith.addf %160, %159 : vector<8x256xf32>
    %162 = arith.divf %160, %161 : vector<8x256xf32>
    %163 = arith.cmpf olt, %154, %162 : vector<8x256xf32>
    %164 = arith.extui %163 : vector<8x256xi1> to vector<8x256xi32>
    %165 = arith.sitofp %164 : vector<8x256xi32> to vector<8x256xf32>
    %c1_76 = arith.constant 1 : index
    %c0_77 = arith.constant 0 : index
    %c0_78 = arith.constant 0 : index
    %166 = vector.load %arg16[%c1_76, %c0_77, %c0_78] : memref<3x8x128xf32, #tpu.memory_space<vmem>>, vector<1x8x128xf32>
    %167 = vector.shape_cast %166 : vector<1x8x128xf32> to vector<8x128xf32>
    %cst_79 = arith.constant dense<0.000000e+00> : vector<8x128xf32>
    %168 = tpu.matmul %165, %137, %cst_79 {dimension_numbers = #tpu.dot_dimension_numbers<[1], [0], [0], [1], [0, 0, 1, 1], [], []>} : vector<8x256xf32>, vector<256x128xf32>, vector<8x128xf32> -> vector<8x128xf32>
    %169 = vector.broadcast %139 : vector<1x128xf32> to vector<8x128xf32>
    %170 = arith.addf %168, %169 : vector<8x128xf32>
    %171 = arith.negf %170 : vector<8x128xf32>
    %172 = math.exp %171 : vector<8x128xf32>
    %cst_80 = arith.constant 1.000000e+00 : f32
    %173 = vector.broadcast %cst_80 : f32 to vector<8x128xf32>
    %174 = arith.addf %173, %172 : vector<8x128xf32>
    %175 = arith.divf %173, %174 : vector<8x128xf32>
    %176 = arith.cmpf olt, %167, %175 : vector<8x128xf32>
    %177 = arith.extui %176 : vector<8x128xi1> to vector<8x128xi32>
    %178 = arith.sitofp %177 : vector<8x128xi32> to vector<8x128xf32>
    %c1_81 = arith.constant 1 : index
    %c0_82 = arith.constant 0 : index
    %c0_83 = arith.constant 0 : index
    %179 = vector.load %arg17[%c1_81, %c0_82, %c0_83] : memref<2x8x256xf32, #tpu.memory_space<vmem>>, vector<1x8x256xf32>
    %180 = vector.shape_cast %179 : vector<1x8x256xf32> to vector<8x256xf32>
    %cst_84 = arith.constant dense<0.000000e+00> : vector<8x256xf32>
    %181 = tpu.matmul %178, %137, %cst_84 {dimension_numbers = #tpu.dot_dimension_numbers<[1], [1], [0], [0], [0, 0, 1, 0], [], []>} : vector<8x128xf32>, vector<256x128xf32>, vector<8x256xf32> -> vector<8x256xf32>
    %182 = vector.broadcast %138 : vector<1x256xf32> to vector<8x256xf32>
    %183 = arith.addf %181, %182 : vector<8x256xf32>
    %184 = arith.negf %183 : vector<8x256xf32>
    %185 = math.exp %184 : vector<8x256xf32>
    %cst_85 = arith.constant 1.000000e+00 : f32
    %186 = vector.broadcast %cst_85 : f32 to vector<8x256xf32>
    %187 = arith.addf %186, %185 : vector<8x256xf32>
    %188 = arith.divf %186, %187 : vector<8x256xf32>
    %189 = arith.cmpf olt, %180, %188 : vector<8x256xf32>
    %190 = arith.extui %189 : vector<8x256xi1> to vector<8x256xi32>
    %191 = arith.sitofp %190 : vector<8x256xi32> to vector<8x256xf32>
    %c2_86 = arith.constant 2 : index
    %c0_87 = arith.constant 0 : index
    %c0_88 = arith.constant 0 : index
    %192 = vector.load %arg16[%c2_86, %c0_87, %c0_88] : memref<3x8x128xf32, #tpu.memory_space<vmem>>, vector<1x8x128xf32>
    %193 = vector.shape_cast %192 : vector<1x8x128xf32> to vector<8x128xf32>
    %cst_89 = arith.constant dense<0.000000e+00> : vector<8x128xf32>
    %194 = tpu.matmul %191, %137, %cst_89 {dimension_numbers = #tpu.dot_dimension_numbers<[1], [0], [0], [1], [0, 0, 1, 1], [], []>} : vector<8x256xf32>, vector<256x128xf32>, vector<8x128xf32> -> vector<8x128xf32>
    %195 = vector.broadcast %139 : vector<1x128xf32> to vector<8x128xf32>
    %196 = arith.addf %194, %195 : vector<8x128xf32>
    %197 = arith.negf %196 : vector<8x128xf32>
    %198 = math.exp %197 : vector<8x128xf32>
    %cst_90 = arith.constant 1.000000e+00 : f32
    %199 = vector.broadcast %cst_90 : f32 to vector<8x128xf32>
    %200 = arith.addf %199, %198 : vector<8x128xf32>
    %201 = arith.divf %199, %200 : vector<8x128xf32>
    %202 = arith.cmpf olt, %193, %201 : vector<8x128xf32>
    %203 = arith.extui %202 : vector<8x128xi1> to vector<8x128xi32>
    %204 = arith.sitofp %203 : vector<8x128xi32> to vector<8x128xf32>
    %c0_91 = arith.constant 0 : index
    %c0_92 = arith.constant 0 : index
    %205 = vector.load %arg10[%c0_91, %c0_92] : memref<128x128xf32, #tpu.memory_space<vmem>>, vector<128x128xf32>
    %cst_93 = arith.constant dense<0.000000e+00> : vector<8x128xf32>
    %206 = tpu.matmul %204, %205, %cst_93 {dimension_numbers = #tpu.dot_dimension_numbers<[1], [0], [0], [1], [0, 0, 1, 1], [], []>} : vector<8x128xf32>, vector<128x128xf32>, vector<8x128xf32> -> vector<8x128xf32>
    %c0_94 = arith.constant 0 : index
    %c0_95 = arith.constant 0 : index
    %207 = vector.load %arg11[%c0_94, %c0_95] : memref<1x128xf32, #tpu.memory_space<vmem>>, vector<1x128xf32>
    %208 = vector.broadcast %207 : vector<1x128xf32> to vector<8x128xf32>
    %209 = arith.addf %206, %208 : vector<8x128xf32>
    %c0_96 = arith.constant 0 : index
    %c0_97 = arith.constant 0 : index
    %210 = vector.load %arg18[%c0_96, %c0_97] : memref<8x128xf32, #tpu.memory_space<vmem>>, vector<8x128xf32>
    tpu.vector_store %arg18[%c0_96, %c0_97], %209 {strides = array<i32>} : memref<8x128xf32, #tpu.memory_space<vmem>>, vector<8x128xf32>,
    return
  }
}

</mosaic_0001>

<llo_original>
// kernel: dbn_forward.3
$region0: #{dbn_forward.3}
  #allocation0 [shape = 'u32[]', space=smem, size = 0x4, offset = 0x4, fixed_abs, tag = 'smem constant byte address 0x4 - core index']
  #allocation1 [shape = 'u32[144,128]{1,0:T(1,128)}', space=vmem, size = 0x12000, scoped, tag = 'internal scratch']
  %s0 = inlined_call_operand.vmem [shape: f32[8,896], index: 0, kind: input, shape index: {}]
  %s1 = inlined_call_operand.vmem [shape: f32[896,512], index: 1, kind: input, shape index: {}]
  %s2 = inlined_call_operand.vmem [shape: f32[1,896], index: 2, kind: input, shape index: {}]
  %s3 = inlined_call_operand.vmem [shape: f32[1,512], index: 3, kind: input, shape index: {}]
  %s4 = inlined_call_operand.vmem [shape: f32[512,256], index: 4, kind: input, shape index: {}]
  %s5 = inlined_call_operand.vmem [shape: f32[1,512], index: 5, kind: input, shape index: {}]
  %s6 = inlined_call_operand.vmem [shape: f32[1,256], index: 6, kind: input, shape index: {}]
  %s7 = inlined_call_operand.vmem [shape: f32[256,128], index: 7, kind: input, shape index: {}]
  %s8 = inlined_call_operand.vmem [shape: f32[1,256], index: 8, kind: input, shape index: {}]
  %s9 = inlined_call_operand.vmem [shape: f32[1,128], index: 9, kind: input, shape index: {}]
  %s10 = inlined_call_operand.vmem [shape: f32[128,128], index: 10, kind: input, shape index: {}]
  %s11 = inlined_call_operand.vmem [shape: f32[1,128], index: 11, kind: input, shape index: {}]
  %s12 = inlined_call_operand.vmem [shape: f32[3,8,512], index: 12, kind: input, shape index: {}]
  %s13 = inlined_call_operand.vmem [shape: f32[2,8,896], index: 13, kind: input, shape index: {}]
  %s14 = inlined_call_operand.vmem [shape: f32[3,8,256], index: 14, kind: input, shape index: {}]
  %s15 = inlined_call_operand.vmem [shape: f32[2,8,512], index: 15, kind: input, shape index: {}]
  %s16 = inlined_call_operand.vmem [shape: f32[3,8,128], index: 16, kind: input, shape index: {}]
  %s17 = inlined_call_operand.vmem [shape: f32[2,8,256], index: 17, kind: input, shape index: {}]
  %s18 = inlined_call_operand.vmem [shape: f32[8,128], index: 18, kind: output, shape index: {}]
  %s19 = sld [smem:[#allocation0]]
  $region82: #{dbn_forward.3} parent=0
    _
  %s21 = ssub.s32 1, %s19
  %s22 = scalar_select 0, %s21, %s19
  // Predicated region
  $region2: #{dbn_forward.3} parent=0 // pred_check
    _
  $region3: #{dbn_forward.3} parent=0 // pred_check_branch
    %24 = sbr.rel (0) target = $region5
  $region4: #{dbn_forward.3} parent=0 // pred_region
    _
  $region5: #{dbn_forward.3} parent=0 // pred_fallthru
    _
  // Predicated region
  $region6: #{dbn_forward.3} parent=0 // pred_check
    _
  $region7: #{dbn_forward.3} parent=0 // pred_check_branch
    %26 = sbr.rel (0) target = $region9
  $region8: #{dbn_forward.3} parent=0 // pred_region
    _
  $region9: #{dbn_forward.3} parent=0 // pred_fallthru
    _
  // Predicated region
  $region10: #{dbn_forward.3} parent=0 // pred_check
    _
  $region11: #{dbn_forward.3} parent=0 // pred_check_branch
    %28 = sbr.rel (0) target = $region13
  $region12: #{dbn_forward.3} parent=0 // pred_region
    _
  $region13: #{dbn_forward.3} parent=0 // pred_fallthru
    _
  // Predicated region
  $region14: #{dbn_forward.3} parent=0 // pred_check
    _
  $region15: #{dbn_forward.3} parent=0 // pred_check_branch
    %30 = sbr.rel (0) target = $region17
  $region16: #{dbn_forward.3} parent=0 // pred_region
    _
  $region17: #{dbn_forward.3} parent=0 // pred_fallthru
    _
  // Predicated region
  $region18: #{dbn_forward.3} parent=0 // pred_check
    _
  $region19: #{dbn_forward.3} parent=0 // pred_check_branch
    %32 = sbr.rel (0) target = $region21
  $region20: #{dbn_forward.3} parent=0 // pred_region
    _
  $region21: #{dbn_forward.3} parent=0 // pred_fallthru
    _
  // Predicated region
  $region22: #{dbn_forward.3} parent=0 // pred_check
    _
  $region23: #{dbn_forward.3} parent=0 // pred_check_branch
    %34 = sbr.rel (0) target = $region25
  $region24: #{dbn_forward.3} parent=0 // pred_region
    _
  $region25: #{dbn_forward.3} parent=0 // pred_fallthru
    _
  // Predicated region
  $region26: #{dbn_forward.3} parent=0 // pred_check
    _
  $region27: #{dbn_forward.3} parent=0 // pred_check_branch
    %36 = sbr.rel (0) target = $region29
  $region28: #{dbn_forward.3} parent=0 // pred_region
    _
  $region29: #{dbn_forward.3} parent=0 // pred_fallthru
    _
  // Predicated region
  $region30: #{dbn_forward.3} parent=0 // pred_check
    _
  $region31: #{dbn_forward.3} parent=0 // pred_check_branch
    %38 = sbr.rel (0) target = $region33
  $region32: #{dbn_forward.3} parent=0 // pred_region
    _
  $region33: #{dbn_forward.3} parent=0 // pred_fallthru
    _
  // Predicated region
  $region34: #{dbn_forward.3} parent=0 // pred_check
    _
  $region35: #{dbn_forward.3} parent=0 // pred_check_branch
    %40 = sbr.rel (0) target = $region37
  $region36: #{dbn_forward.3} parent=0 // pred_region
    _
  $region37: #{dbn_forward.3} parent=0 // pred_fallthru
    _
  // Predicated region
  $region38: #{dbn_forward.3} parent=0 // pred_check
    _
  $region39: #{dbn_forward.3} parent=0 // pred_check_branch
    %42 = sbr.rel (0) target = $region41
  $region40: #{dbn_forward.3} parent=0 // pred_region
    _
  $region41: #{dbn_forward.3} parent=0 // pred_fallthru
    _
  // Predicated region
  $region42: #{dbn_forward.3} parent=0 // pred_check
    _
  $region43: #{dbn_forward.3} parent=0 // pred_check_branch
    %44 = sbr.rel (0) target = $region45
  $region44: #{dbn_forward.3} parent=0 // pred_region
    _
  $region45: #{dbn_forward.3} parent=0 // pred_fallthru
    _
  // Predicated region
  $region46: #{dbn_forward.3} parent=0 // pred_check
    _
  $region47: #{dbn_forward.3} parent=0 // pred_check_branch
    %46 = sbr.rel (0) target = $region49
  $region48: #{dbn_forward.3} parent=0 // pred_region
    _
  $region49: #{dbn_forward.3} parent=0 // pred_fallthru
    _
  // Predicated region
  $region50: #{dbn_forward.3} parent=0 // pred_check
    _
  $region51: #{dbn_forward.3} parent=0 // pred_check_branch
    %48 = sbr.rel (0) target = $region53
  $region52: #{dbn_forward.3} parent=0 // pred_region
    _
  $region53: #{dbn_forward.3} parent=0 // pred_fallthru
    _
  // Predicated region
  $region54: #{dbn_forward.3} parent=0 // pred_check
    _
  $region55: #{dbn_forward.3} parent=0 // pred_check_branch
    %50 = sbr.rel (0) target = $region57
  $region56: #{dbn_forward.3} parent=0 // pred_region
    _
  $region57: #{dbn_forward.3} parent=0 // pred_fallthru
    _
  // Predicated region
  $region58: #{dbn_forward.3} parent=0 // pred_check
    _
  $region59: #{dbn_forward.3} parent=0 // pred_check_branch
    %52 = sbr.rel (0) target = $region61
  $region60: #{dbn_forward.3} parent=0 // pred_region
    _
  $region61: #{dbn_forward.3} parent=0 // pred_fallthru
    _
  // Predicated region
  $region62: #{dbn_forward.3} parent=0 // pred_check
    _
  $region63: #{dbn_forward.3} parent=0 // pred_check_branch
    %54 = sbr.rel (0) target = $region65
  $region64: #{dbn_forward.3} parent=0 // pred_region
    _
  $region65: #{dbn_forward.3} parent=0 // pred_fallthru
    _
  // Predicated region
  $region66: #{dbn_forward.3} parent=0 // pred_check
    _
  $region67: #{dbn_forward.3} parent=0 // pred_check_branch
    %56 = sbr.rel (0) target = $region69
  $region68: #{dbn_forward.3} parent=0 // pred_region
    _
  $region69: #{dbn_forward.3} parent=0 // pred_fallthru
    _
  // Predicated region
  $region70: #{dbn_forward.3} parent=0 // pred_check
    _
  $region71: #{dbn_forward.3} parent=0 // pred_check_branch
    %58 = sbr.rel (0) target = $region73
  $region72: #{dbn_forward.3} parent=0 // pred_region
    _
  $region73: #{dbn_forward.3} parent=0 // pred_fallthru
    _
  %v59 = vld [vmem:[%s0] sm:$0xff]
  %v60 = vld [vmem:[%s0 + $0x8] sm:$0xff]
  %v61 = vld [vmem:[%s0 + $0x10] sm:$0xff]
  %v62 = vld [vmem:[%s0 + $0x18] sm:$0xff]
  %v63 = vld [vmem:[%s0 + $0x20] sm:$0xff]
  %v64 = vld [vmem:[%s0 + $0x28] sm:$0xff]
  %v65 = vld [vmem:[%s0 + $0x30] sm:$0xff]
  %v66 = vld [vmem:[%s1] sm:$0xff]
  %v67 = vld [vmem:[%s1 + $0x8] sm:$0xff]
  %v68 = vld [vmem:[%s1 + $0x10] sm:$0xff]
  %v69 = vld [vmem:[%s1 + $0x18] sm:$0xff]
  %v70 = vld [vmem:[%s1 + $0x20] sm:$0xff]
  %v71 = vld [vmem:[%s1 + $0x28] sm:$0xff]
  %v72 = vld [vmem:[%s1 + $0x30] sm:$0xff]
  %v73 = vld [vmem:[%s1 + $0x38] sm:$0xff]
  %v74 = vld [vmem:[%s1 + $0x40] sm:$0xff]
  %v75 = vld [vmem:[%s1 + $0x48] sm:$0xff]
  %v76 = vld [vmem:[%s1 + $0x50] sm:$0xff]
  %v77 = vld [vmem:[%s1 + $0x58] sm:$0xff]
  %v78 = vld [vmem:[%s1 + $0x60] sm:$0xff]
  %v79 = vld [vmem:[%s1 + $0x68] sm:$0xff]
  %v80 = vld [vmem:[%s1 + $0x70] sm:$0xff]
  %v81 = vld [vmem:[%s1 + $0x78] sm:$0xff]
  %v82 = vld [vmem:[%s1 + $0x80] sm:$0xff]
  %v83 = vld [vmem:[%s1 + $0x88] sm:$0xff]
  %v84 = vld [vmem:[%s1 + $0x90] sm:$0xff]
  %v85 = vld [vmem:[%s1 + $0x98] sm:$0xff]
  %v86 = vld [vmem:[%s1 + $0xa0] sm:$0xff]
  %v87 = vld [vmem:[%s1 + $0xa8] sm:$0xff]
  %v88 = vld [vmem:[%s1 + $0xb0] sm:$0xff]
  %v89 = vld [vmem:[%s1 + $0xb8] sm:$0xff]
  %v90 = vld [vmem:[%s1 + $0xc0] sm:$0xff]
  %v91 = vld [vmem:[%s1 + $0xc8] sm:$0xff]
  %v92 = vld [vmem:[%s1 + $0xd0] sm:$0xff]
  %v93 = vld [vmem:[%s1 + $0xd8] sm:$0xff]
  %v94 = vld [vmem:[%s1 + $0xe0] sm:$0xff]
  %v95 = vld [vmem:[%s1 + $0xe8] sm:$0xff]
  %v96 = vld [vmem:[%s1 + $0xf0] sm:$0xff]
  %v97 = vld [vmem:[%s1 + $0xf8] sm:$0xff]
  %v98 = vld [vmem:[%s1 + $0x100] sm:$0xff]
  %v99 = vld [vmem:[%s1 + $0x108] sm:$0xff]
  %v100 = vld [vmem:[%s1 + $0x110] sm:$0xff]
  %v101 = vld [vmem:[%s1 + $0x118] sm:$0xff]
  %v102 = vld [vmem:[%s1 + $0x120] sm:$0xff]
  %v103 = vld [vmem:[%s1 + $0x128] sm:$0xff]
  %v104 = vld [vmem:[%s1 + $0x130] sm:$0xff]
  %v105 = vld [vmem:[%s1 + $0x138] sm:$0xff]
  %v106 = vld [vmem:[%s1 + $0x140] sm:$0xff]
  %v107 = vld [vmem:[%s1 + $0x148] sm:$0xff]
  %v108 = vld [vmem:[%s1 + $0x150] sm:$0xff]
  %v109 = vld [vmem:[%s1 + $0x158] sm:$0xff]
  %v110 = vld [vmem:[%s1 + $0x160] sm:$0xff]
  %v111 = vld [vmem:[%s1 + $0x168] sm:$0xff]
  %v112 = vld [vmem:[%s1 + $0x170] sm:$0xff]
  %v113 = vld [vmem:[%s1 + $0x178] sm:$0xff]
  %v114 = vld [vmem:[%s1 + $0x180] sm:$0xff]
  %v115 = vld [vmem:[%s1 + $0x188] sm:$0xff]
  %v116 = vld [vmem:[%s1 + $0x190] sm:$0xff]
  %v117 = vld [vmem:[%s1 + $0x198] sm:$0xff]
  %v118 = vld [vmem:[%s1 + $0x1a0] sm:$0xff]
  %v119 = vld [vmem:[%s1 + $0x1a8] sm:$0xff]
  %v120 = vld [vmem:[%s1 + $0x1b0] sm:$0xff]
  %v121 = vld [vmem:[%s1 + $0x1b8] sm:$0xff]
  %v122 = vld [vmem:[%s1 + $0x1c0] sm:$0xff]
  %v123 = vld [vmem:[%s1 + $0x1c8] sm:$0xff]
  %v124 = vld [vmem:[%s1 + $0x1d0] sm:$0xff]
  %v125 = vld [vmem:[%s1 + $0x1d8] sm:$0xff]
  %v126 = vld [vmem:[%s1 + $0x1e0] sm:$0xff]
  %v127 = vld [vmem:[%s1 + $0x1e8] sm:$0xff]
  %v128 = vld [vmem:[%s1 + $0x1f0] sm:$0xff]
  %v129 = vld [vmem:[%s1 + $0x1f8] sm:$0xff]
  %v130 = vld [vmem:[%s1 + $0x200] sm:$0xff]
  %v131 = vld [vmem:[%s1 + $0x208] sm:$0xff]
  %v132 = vld [vmem:[%s1 + $0x210] sm:$0xff]
  %v133 = vld [vmem:[%s1 + $0x218] sm:$0xff]
  %v134 = vld [vmem:[%s1 + $0x220] sm:$0xff]
  %v135 = vld [vmem:[%s1 + $0x228] sm:$0xff]
  %v136 = vld [vmem:[%s1 + $0x230] sm:$0xff]
  %v137 = vld [vmem:[%s1 + $0x238] sm:$0xff]
  %v138 = vld [vmem:[%s1 + $0x240] sm:$0xff]
  %v139 = vld [vmem:[%s1 + $0x248] sm:$0xff]
  %v140 = vld [vmem:[%s1 + $0x250] sm:$0xff]
  %v141 = vld [vmem:[%s1 + $0x258] sm:$0xff]
  %v142 = vld [vmem:[%s1 + $0x260] sm:$0xff]
  %v143 = vld [vmem:[%s1 + $0x268] sm:$0xff]
  %v144 = vld [vmem:[%s1 + $0x270] sm:$0xff]
  %v145 = vld [vmem:[%s1 + $0x278] sm:$0xff]
  %v146 = vld [vmem:[%s1 + $0x280] sm:$0xff]
  %v147 = vld [vmem:[%s1 + $0x288] sm:$0xff]
  %v148 = vld [vmem:[%s1 + $0x290] sm:$0xff]
  %v149 = vld [vmem:[%s1 + $0x298] sm:$0xff]
  %v150 = vld [vmem:[%s1 + $0x2a0] sm:$0xff]
  %v151 = vld [vmem:[%s1 + $0x2a8] sm:$0xff]
  %v152 = vld [vmem:[%s1 + $0x2b0] sm:$0xff]
  %v153 = vld [vmem:[%s1 + $0x2b8] sm:$0xff]
  %v154 = vld [vmem:[%s1 + $0x2c0] sm:$0xff]
  %v155 = vld [vmem:[%s1 + $0x2c8] sm:$0xff]
  %v156 = vld [vmem:[%s1 + $0x2d0] sm:$0xff]
  %v157 = vld [vmem:[%s1 + $0x2d8] sm:$0xff]
  %v158 = vld [vmem:[%s1 + $0x2e0] sm:$0xff]
  %v159 = vld [vmem:[%s1 + $0x2e8] sm:$0xff]
  %v160 = vld [vmem:[%s1 + $0x2f0] sm:$0xff]
  %v161 = vld [vmem:[%s1 + $0x2f8] sm:$0xff]
  %v162 = vld [vmem:[%s1 + $0x300] sm:$0xff]
  %v163 = vld [vmem:[%s1 + $0x308] sm:$0xff]
  %v164 = vld [vmem:[%s1 + $0x310] sm:$0xff]
  %v165 = vld [vmem:[%s1 + $0x318] sm:$0xff]
  %v166 = vld [vmem:[%s1 + $0x320] sm:$0xff]
  %v167 = vld [vmem:[%s1 + $0x328] sm:$0xff]
  %v168 = vld [vmem:[%s1 + $0x330] sm:$0xff]
  %v169 = vld [vmem:[%s1 + $0x338] sm:$0xff]
  %v170 = vld [vmem:[%s1 + $0x340] sm:$0xff]
  %v171 = vld [vmem:[%s1 + $0x348] sm:$0xff]
  %v172 = vld [vmem:[%s1 + $0x350] sm:$0xff]
  %v173 = vld [vmem:[%s1 + $0x358] sm:$0xff]
  %v174 = vld [vmem:[%s1 + $0x360] sm:$0xff]
  %v175 = vld [vmem:[%s1 + $0x368] sm:$0xff]
  %v176 = vld [vmem:[%s1 + $0x370] sm:$0xff]
  %v177 = vld [vmem:[%s1 + $0x378] sm:$0xff]
  %v178 = vld [vmem:[%s1 + $0x380] sm:$0xff]
  %v179 = vld [vmem:[%s1 + $0x388] sm:$0xff]
  %v180 = vld [vmem:[%s1 + $0x390] sm:$0xff]
  %v181 = vld [vmem:[%s1 + $0x398] sm:$0xff]
  %v182 = vld [vmem:[%s1 + $0x3a0] sm:$0xff]
  %v183 = vld [vmem:[%s1 + $0x3a8] sm:$0xff]
  %v184 = vld [vmem:[%s1 + $0x3b0] sm:$0xff]
  %v185 = vld [vmem:[%s1 + $0x3b8] sm:$0xff]
  %v186 = vld [vmem:[%s1 + $0x3c0] sm:$0xff]
  %v187 = vld [vmem:[%s1 + $0x3c8] sm:$0xff]
  %v188 = vld [vmem:[%s1 + $0x3d0] sm:$0xff]
  %v189 = vld [vmem:[%s1 + $0x3d8] sm:$0xff]
  %v190 = vld [vmem:[%s1 + $0x3e0] sm:$0xff]
  %v191 = vld [vmem:[%s1 + $0x3e8] sm:$0xff]
  %v192 = vld [vmem:[%s1 + $0x3f0] sm:$0xff]
  %v193 = vld [vmem:[%s1 + $0x3f8] sm:$0xff]
  %v194 = vld [vmem:[%s1 + $0x400] sm:$0xff]
  %v195 = vld [vmem:[%s1 + $0x408] sm:$0xff]
  %v196 = vld [vmem:[%s1 + $0x410] sm:$0xff]
  %v197 = vld [vmem:[%s1 + $0x418] sm:$0xff]
  %v198 = vld [vmem:[%s1 + $0x420] sm:$0xff]
  %v199 = vld [vmem:[%s1 + $0x428] sm:$0xff]
  %v200 = vld [vmem:[%s1 + $0x430] sm:$0xff]
  %v201 = vld [vmem:[%s1 + $0x438] sm:$0xff]
  %v202 = vld [vmem:[%s1 + $0x440] sm:$0xff]
  %v203 = vld [vmem:[%s1 + $0x448] sm:$0xff]
  %v204 = vld [vmem:[%s1 + $0x450] sm:$0xff]
  %v205 = vld [vmem:[%s1 + $0x458] sm:$0xff]
  %v206 = vld [vmem:[%s1 + $0x460] sm:$0xff]
  %v207 = vld [vmem:[%s1 + $0x468] sm:$0xff]
  %v208 = vld [vmem:[%s1 + $0x470] sm:$0xff]
  %v209 = vld [vmem:[%s1 + $0x478] sm:$0xff]
  %v210 = vld [vmem:[%s1 + $0x480] sm:$0xff]
  %v211 = vld [vmem:[%s1 + $0x488] sm:$0xff]
  %v212 = vld [vmem:[%s1 + $0x490] sm:$0xff]
  %v213 = vld [vmem:[%s1 + $0x498] sm:$0xff]
  %v214 = vld [vmem:[%s1 + $0x4a0] sm:$0xff]
  %v215 = vld [vmem:[%s1 + $0x4a8] sm:$0xff]
  %v216 = vld [vmem:[%s1 + $0x4b0] sm:$0xff]
  %v217 = vld [vmem:[%s1 + $0x4b8] sm:$0xff]
  %v218 = vld [vmem:[%s1 + $0x4c0] sm:$0xff]
  %v219 = vld [vmem:[%s1 + $0x4c8] sm:$0xff]
  %v220 = vld [vmem:[%s1 + $0x4d0] sm:$0xff]
  %v221 = vld [vmem:[%s1 + $0x4d8] sm:$0xff]
  %v222 = vld [vmem:[%s1 + $0x4e0] sm:$0xff]
  %v223 = vld [vmem:[%s1 + $0x4e8] sm:$0xff]
  %v224 = vld [vmem:[%s1 + $0x4f0] sm:$0xff]
  %v225 = vld [vmem:[%s1 + $0x4f8] sm:$0xff]
  %v226 = vld [vmem:[%s1 + $0x500] sm:$0xff]
  %v227 = vld [vmem:[%s1 + $0x508] sm:$0xff]
  %v228 = vld [vmem:[%s1 + $0x510] sm:$0xff]
  %v229 = vld [vmem:[%s1 + $0x518] sm:$0xff]
  %v230 = vld [vmem:[%s1 + $0x520] sm:$0xff]
  %v231 = vld [vmem:[%s1 + $0x528] sm:$0xff]
  %v232 = vld [vmem:[%s1 + $0x530] sm:$0xff]
  %v233 = vld [vmem:[%s1 + $0x538] sm:$0xff]
  %v234 = vld [vmem:[%s1 + $0x540] sm:$0xff]
  %v235 = vld [vmem:[%s1 + $0x548] sm:$0xff]
  %v236 = vld [vmem:[%s1 + $0x550] sm:$0xff]
  %v237 = vld [vmem:[%s1 + $0x558] sm:$0xff]
  %v238 = vld [vmem:[%s1 + $0x560] sm:$0xff]
  %v239 = vld [vmem:[%s1 + $0x568] sm:$0xff]
  %v240 = vld [vmem:[%s1 + $0x570] sm:$0xff]
  %v241 = vld [vmem:[%s1 + $0x578] sm:$0xff]
  %v242 = vld [vmem:[%s1 + $0x580] sm:$0xff]
  %v243 = vld [vmem:[%s1 + $0x588] sm:$0xff]
  %v244 = vld [vmem:[%s1 + $0x590] sm:$0xff]
  %v245 = vld [vmem:[%s1 + $0x598] sm:$0xff]
  %v246 = vld [vmem:[%s1 + $0x5a0] sm:$0xff]
  %v247 = vld [vmem:[%s1 + $0x5a8] sm:$0xff]
  %v248 = vld [vmem:[%s1 + $0x5b0] sm:$0xff]
  %v249 = vld [vmem:[%s1 + $0x5b8] sm:$0xff]
  %v250 = vld [vmem:[%s1 + $0x5c0] sm:$0xff]
  %v251 = vld [vmem:[%s1 + $0x5c8] sm:$0xff]
  %v252 = vld [vmem:[%s1 + $0x5d0] sm:$0xff]
  %v253 = vld [vmem:[%s1 + $0x5d8] sm:$0xff]
  %v254 = vld [vmem:[%s1 + $0x5e0] sm:$0xff]
  %v255 = vld [vmem:[%s1 + $0x5e8] sm:$0xff]
  %v256 = vld [vmem:[%s1 + $0x5f0] sm:$0xff]
  %v257 = vld [vmem:[%s1 + $0x5f8] sm:$0xff]
  %v258 = vld [vmem:[%s1 + $0x600] sm:$0xff]
  %v259 = vld [vmem:[%s1 + $0x608] sm:$0xff]
  %v260 = vld [vmem:[%s1 + $0x610] sm:$0xff]
  %v261 = vld [vmem:[%s1 + $0x618] sm:$0xff]
  %v262 = vld [vmem:[%s1 + $0x620] sm:$0xff]
  %v263 = vld [vmem:[%s1 + $0x628] sm:$0xff]
  %v264 = vld [vmem:[%s1 + $0x630] sm:$0xff]
  %v265 = vld [vmem:[%s1 + $0x638] sm:$0xff]
  %v266 = vld [vmem:[%s1 + $0x640] sm:$0xff]
  %v267 = vld [vmem:[%s1 + $0x648] sm:$0xff]
  %v268 = vld [vmem:[%s1 + $0x650] sm:$0xff]
  %v269 = vld [vmem:[%s1 + $0x658] sm:$0xff]
  %v270 = vld [vmem:[%s1 + $0x660] sm:$0xff]
  %v271 = vld [vmem:[%s1 + $0x668] sm:$0xff]
  %v272 = vld [vmem:[%s1 + $0x670] sm:$0xff]
  %v273 = vld [vmem:[%s1 + $0x678] sm:$0xff]
  %v274 = vld [vmem:[%s1 + $0x680] sm:$0xff]
  %v275 = vld [vmem:[%s1 + $0x688] sm:$0xff]
  %v276 = vld [vmem:[%s1 + $0x690] sm:$0xff]
  %v277 = vld [vmem:[%s1 + $0x698] sm:$0xff]
  %v278 = vld [vmem:[%s1 + $0x6a0] sm:$0xff]
  %v279 = vld [vmem:[%s1 + $0x6a8] sm:$0xff]
  %v280 = vld [vmem:[%s1 + $0x6b0] sm:$0xff]
  %v281 = vld [vmem:[%s1 + $0x6b8] sm:$0xff]
  %v282 = vld [vmem:[%s1 + $0x6c0] sm:$0xff]
  %v283 = vld [vmem:[%s1 + $0x6c8] sm:$0xff]
  %v284 = vld [vmem:[%s1 + $0x6d0] sm:$0xff]
  %v285 = vld [vmem:[%s1 + $0x6d8] sm:$0xff]
  %v286 = vld [vmem:[%s1 + $0x6e0] sm:$0xff]
  %v287 = vld [vmem:[%s1 + $0x6e8] sm:$0xff]
  %v288 = vld [vmem:[%s1 + $0x6f0] sm:$0xff]
  %v289 = vld [vmem:[%s1 + $0x6f8] sm:$0xff]
  %v290 = vld [vmem:[%s1 + $0x700] sm:$0xff]
  %v291 = vld [vmem:[%s1 + $0x708] sm:$0xff]
  %v292 = vld [vmem:[%s1 + $0x710] sm:$0xff]
  %v293 = vld [vmem:[%s1 + $0x718] sm:$0xff]
  %v294 = vld [vmem:[%s1 + $0x720] sm:$0xff]
  %v295 = vld [vmem:[%s1 + $0x728] sm:$0xff]
  %v296 = vld [vmem:[%s1 + $0x730] sm:$0xff]
  %v297 = vld [vmem:[%s1 + $0x738] sm:$0xff]
  %v298 = vld [vmem:[%s1 + $0x740] sm:$0xff]
  %v299 = vld [vmem:[%s1 + $0x748] sm:$0xff]
  %v300 = vld [vmem:[%s1 + $0x750] sm:$0xff]
  %v301 = vld [vmem:[%s1 + $0x758] sm:$0xff]
  %v302 = vld [vmem:[%s1 + $0x760] sm:$0xff]
  %v303 = vld [vmem:[%s1 + $0x768] sm:$0xff]
  %v304 = vld [vmem:[%s1 + $0x770] sm:$0xff]
  %v305 = vld [vmem:[%s1 + $0x778] sm:$0xff]
  %v306 = vld [vmem:[%s1 + $0x780] sm:$0xff]
  %v307 = vld [vmem:[%s1 + $0x788] sm:$0xff]
  %v308 = vld [vmem:[%s1 + $0x790] sm:$0xff]
  %v309 = vld [vmem:[%s1 + $0x798] sm:$0xff]
  %v310 = vld [vmem:[%s1 + $0x7a0] sm:$0xff]
  %v311 = vld [vmem:[%s1 + $0x7a8] sm:$0xff]
  %v312 = vld [vmem:[%s1 + $0x7b0] sm:$0xff]
  %v313 = vld [vmem:[%s1 + $0x7b8] sm:$0xff]
  %v314 = vld [vmem:[%s1 + $0x7c0] sm:$0xff]
  %v315 = vld [vmem:[%s1 + $0x7c8] sm:$0xff]
  %v316 = vld [vmem:[%s1 + $0x7d0] sm:$0xff]
  %v317 = vld [vmem:[%s1 + $0x7d8] sm:$0xff]
  %v318 = vld [vmem:[%s1 + $0x7e0] sm:$0xff]
  %v319 = vld [vmem:[%s1 + $0x7e8] sm:$0xff]
  %v320 = vld [vmem:[%s1 + $0x7f0] sm:$0xff]
  %v321 = vld [vmem:[%s1 + $0x7f8] sm:$0xff]
  %v322 = vld [vmem:[%s1 + $0x800] sm:$0xff]
  %v323 = vld [vmem:[%s1 + $0x808] sm:$0xff]
  %v324 = vld [vmem:[%s1 + $0x810] sm:$0xff]
  %v325 = vld [vmem:[%s1 + $0x818] sm:$0xff]
  %v326 = vld [vmem:[%s1 + $0x820] sm:$0xff]
  %v327 = vld [vmem:[%s1 + $0x828] sm:$0xff]
  %v328 = vld [vmem:[%s1 + $0x830] sm:$0xff]
  %v329 = vld [vmem:[%s1 + $0x838] sm:$0xff]
  %v330 = vld [vmem:[%s1 + $0x840] sm:$0xff]
  %v331 = vld [vmem:[%s1 + $0x848] sm:$0xff]
  %v332 = vld [vmem:[%s1 + $0x850] sm:$0xff]
  %v333 = vld [vmem:[%s1 + $0x858] sm:$0xff]
  %v334 = vld [vmem:[%s1 + $0x860] sm:$0xff]
  %v335 = vld [vmem:[%s1 + $0x868] sm:$0xff]
  %v336 = vld [vmem:[%s1 + $0x870] sm:$0xff]
  %v337 = vld [vmem:[%s1 + $0x878] sm:$0xff]
  %v338 = vld [vmem:[%s1 + $0x880] sm:$0xff]
  %v339 = vld [vmem:[%s1 + $0x888] sm:$0xff]
  %v340 = vld [vmem:[%s1 + $0x890] sm:$0xff]
  %v341 = vld [vmem:[%s1 + $0x898] sm:$0xff]
  %v342 = vld [vmem:[%s1 + $0x8a0] sm:$0xff]
  %v343 = vld [vmem:[%s1 + $0x8a8] sm:$0xff]
  %v344 = vld [vmem:[%s1 + $0x8b0] sm:$0xff]
  %v345 = vld [vmem:[%s1 + $0x8b8] sm:$0xff]
  %v346 = vld [vmem:[%s1 + $0x8c0] sm:$0xff]
  %v347 = vld [vmem:[%s1 + $0x8c8] sm:$0xff]
  %v348 = vld [vmem:[%s1 + $0x8d0] sm:$0xff]
  %v349 = vld [vmem:[%s1 + $0x8d8] sm:$0xff]
  %v350 = vld [vmem:[%s1 + $0x8e0] sm:$0xff]
  %v351 = vld [vmem:[%s1 + $0x8e8] sm:$0xff]
  %v352 = vld [vmem:[%s1 + $0x8f0] sm:$0xff]
  %v353 = vld [vmem:[%s1 + $0x8f8] sm:$0xff]
  %v354 = vld [vmem:[%s1 + $0x900] sm:$0xff]
  %v355 = vld [vmem:[%s1 + $0x908] sm:$0xff]
  %v356 = vld [vmem:[%s1 + $0x910] sm:$0xff]
  %v357 = vld [vmem:[%s1 + $0x918] sm:$0xff]
  %v358 = vld [vmem:[%s1 + $0x920] sm:$0xff]
  %v359 = vld [vmem:[%s1 + $0x928] sm:$0xff]
  %v360 = vld [vmem:[%s1 + $0x930] sm:$0xff]
  %v361 = vld [vmem:[%s1 + $0x938] sm:$0xff]
  %v362 = vld [vmem:[%s1 + $0x940] sm:$0xff]
  %v363 = vld [vmem:[%s1 + $0x948] sm:$0xff]
  %v364 = vld [vmem:[%s1 + $0x950] sm:$0xff]
  %v365 = vld [vmem:[%s1 + $0x958] sm:$0xff]
  %v366 = vld [vmem:[%s1 + $0x960] sm:$0xff]
  %v367 = vld [vmem:[%s1 + $0x968] sm:$0xff]
  %v368 = vld [vmem:[%s1 + $0x970] sm:$0xff]
  %v369 = vld [vmem:[%s1 + $0x978] sm:$0xff]
  %v370 = vld [vmem:[%s1 + $0x980] sm:$0xff]
  %v371 = vld [vmem:[%s1 + $0x988] sm:$0xff]
  %v372 = vld [vmem:[%s1 + $0x990] sm:$0xff]
  %v373 = vld [vmem:[%s1 + $0x998] sm:$0xff]
  %v374 = vld [vmem:[%s1 + $0x9a0] sm:$0xff]
  %v375 = vld [vmem:[%s1 + $0x9a8] sm:$0xff]
  %v376 = vld [vmem:[%s1 + $0x9b0] sm:$0xff]
  %v377 = vld [vmem:[%s1 + $0x9b8] sm:$0xff]
  %v378 = vld [vmem:[%s1 + $0x9c0] sm:$0xff]
  %v379 = vld [vmem:[%s1 + $0x9c8] sm:$0xff]
  %v380 = vld [vmem:[%s1 + $0x9d0] sm:$0xff]
  %v381 = vld [vmem:[%s1 + $0x9d8] sm:$0xff]
  %v382 = vld [vmem:[%s1 + $0x9e0] sm:$0xff]
  %v383 = vld [vmem:[%s1 + $0x9e8] sm:$0xff]
  %v384 = vld [vmem:[%s1 + $0x9f0] sm:$0xff]
  %v385 = vld [vmem:[%s1 + $0x9f8] sm:$0xff]
  %v386 = vld [vmem:[%s1 + $0xa00] sm:$0xff]
  %v387 = vld [vmem:[%s1 + $0xa08] sm:$0xff]
  %v388 = vld [vmem:[%s1 + $0xa10] sm:$0xff]
  %v389 = vld [vmem:[%s1 + $0xa18] sm:$0xff]
  %v390 = vld [vmem:[%s1 + $0xa20] sm:$0xff]
  %v391 = vld [vmem:[%s1 + $0xa28] sm:$0xff]
  %v392 = vld [vmem:[%s1 + $0xa30] sm:$0xff]
  %v393 = vld [vmem:[%s1 + $0xa38] sm:$0xff]
  %v394 = vld [vmem:[%s1 + $0xa40] sm:$0xff]
  %v395 = vld [vmem:[%s1 + $0xa48] sm:$0xff]
  %v396 = vld [vmem:[%s1 + $0xa50] sm:$0xff]
  %v397 = vld [vmem:[%s1 + $0xa58] sm:$0xff]
  %v398 = vld [vmem:[%s1 + $0xa60] sm:$0xff]
  %v399 = vld [vmem:[%s1 + $0xa68] sm:$0xff]
  %v400 = vld [vmem:[%s1 + $0xa70] sm:$0xff]
  %v401 = vld [vmem:[%s1 + $0xa78] sm:$0xff]
  %v402 = vld [vmem:[%s1 + $0xa80] sm:$0xff]
  %v403 = vld [vmem:[%s1 + $0xa88] sm:$0xff]
  %v404 = vld [vmem:[%s1 + $0xa90] sm:$0xff]
  %v405 = vld [vmem:[%s1 + $0xa98] sm:$0xff]
  %v406 = vld [vmem:[%s1 + $0xaa0] sm:$0xff]
  %v407 = vld [vmem:[%s1 + $0xaa8] sm:$0xff]
  %v408 = vld [vmem:[%s1 + $0xab0] sm:$0xff]
  %v409 = vld [vmem:[%s1 + $0xab8] sm:$0xff]
  %v410 = vld [vmem:[%s1 + $0xac0] sm:$0xff]
  %v411 = vld [vmem:[%s1 + $0xac8] sm:$0xff]
  %v412 = vld [vmem:[%s1 + $0xad0] sm:$0xff]
  %v413 = vld [vmem:[%s1 + $0xad8] sm:$0xff]
  %v414 = vld [vmem:[%s1 + $0xae0] sm:$0xff]
  %v415 = vld [vmem:[%s1 + $0xae8] sm:$0xff]
  %v416 = vld [vmem:[%s1 + $0xaf0] sm:$0xff]
  %v417 = vld [vmem:[%s1 + $0xaf8] sm:$0xff]
  %v418 = vld [vmem:[%s1 + $0xb00] sm:$0xff]
  %v419 = vld [vmem:[%s1 + $0xb08] sm:$0xff]
  %v420 = vld [vmem:[%s1 + $0xb10] sm:$0xff]
  %v421 = vld [vmem:[%s1 + $0xb18] sm:$0xff]
  %v422 = vld [vmem:[%s1 + $0xb20] sm:$0xff]
  %v423 = vld [vmem:[%s1 + $0xb28] sm:$0xff]
  %v424 = vld [vmem:[%s1 + $0xb30] sm:$0xff]
  %v425 = vld [vmem:[%s1 + $0xb38] sm:$0xff]
  %v426 = vld [vmem:[%s1 + $0xb40] sm:$0xff]
  %v427 = vld [vmem:[%s1 + $0xb48] sm:$0xff]
  %v428 = vld [vmem:[%s1 + $0xb50] sm:$0xff]
  %v429 = vld [vmem:[%s1 + $0xb58] sm:$0xff]
  %v430 = vld [vmem:[%s1 + $0xb60] sm:$0xff]
  %v431 = vld [vmem:[%s1 + $0xb68] sm:$0xff]
  %v432 = vld [vmem:[%s1 + $0xb70] sm:$0xff]
  %v433 = vld [vmem:[%s1 + $0xb78] sm:$0xff]
  %v434 = vld [vmem:[%s1 + $0xb80] sm:$0xff]
  %v435 = vld [vmem:[%s1 + $0xb88] sm:$0xff]
  %v436 = vld [vmem:[%s1 + $0xb90] sm:$0xff]
  %v437 = vld [vmem:[%s1 + $0xb98] sm:$0xff]
  %v438 = vld [vmem:[%s1 + $0xba0] sm:$0xff]
  %v439 = vld [vmem:[%s1 + $0xba8] sm:$0xff]
  %v440 = vld [vmem:[%s1 + $0xbb0] sm:$0xff]
  %v441 = vld [vmem:[%s1 + $0xbb8] sm:$0xff]
  %v442 = vld [vmem:[%s1 + $0xbc0] sm:$0xff]
  %v443 = vld [vmem:[%s1 + $0xbc8] sm:$0xff]
  %v444 = vld [vmem:[%s1 + $0xbd0] sm:$0xff]
  %v445 = vld [vmem:[%s1 + $0xbd8] sm:$0xff]
  %v446 = vld [vmem:[%s1 + $0xbe0] sm:$0xff]
  %v447 = vld [vmem:[%s1 + $0xbe8] sm:$0xff]
  %v448 = vld [vmem:[%s1 + $0xbf0] sm:$0xff]
  %v449 = vld [vmem:[%s1 + $0xbf8] sm:$0xff]
  %v450 = vld [vmem:[%s1 + $0xc00] sm:$0xff]
  %v451 = vld [vmem:[%s1 + $0xc08] sm:$0xff]
  %v452 = vld [vmem:[%s1 + $0xc10] sm:$0xff]
  %v453 = vld [vmem:[%s1 + $0xc18] sm:$0xff]
  %v454 = vld [vmem:[%s1 + $0xc20] sm:$0xff]
  %v455 = vld [vmem:[%s1 + $0xc28] sm:$0xff]
  %v456 = vld [vmem:[%s1 + $0xc30] sm:$0xff]
  %v457 = vld [vmem:[%s1 + $0xc38] sm:$0xff]
  %v458 = vld [vmem:[%s1 + $0xc40] sm:$0xff]
  %v459 = vld [vmem:[%s1 + $0xc48] sm:$0xff]
  %v460 = vld [vmem:[%s1 + $0xc50] sm:$0xff]
  %v461 = vld [vmem:[%s1 + $0xc58] sm:$0xff]
  %v462 = vld [vmem:[%s1 + $0xc60] sm:$0xff]
  %v463 = vld [vmem:[%s1 + $0xc68] sm:$0xff]
  %v464 = vld [vmem:[%s1 + $0xc70] sm:$0xff]
  %v465 = vld [vmem:[%s1 + $0xc78] sm:$0xff]
  %v466 = vld [vmem:[%s1 + $0xc80] sm:$0xff]
  %v467 = vld [vmem:[%s1 + $0xc88] sm:$0xff]
  %v468 = vld [vmem:[%s1 + $0xc90] sm:$0xff]
  %v469 = vld [vmem:[%s1 + $0xc98] sm:$0xff]
  %v470 = vld [vmem:[%s1 + $0xca0] sm:$0xff]
  %v471 = vld [vmem:[%s1 + $0xca8] sm:$0xff]
  %v472 = vld [vmem:[%s1 + $0xcb0] sm:$0xff]
  %v473 = vld [vmem:[%s1 + $0xcb8] sm:$0xff]
  %v474 = vld [vmem:[%s1 + $0xcc0] sm:$0xff]
  %v475 = vld [vmem:[%s1 + $0xcc8] sm:$0xff]
  %v476 = vld [vmem:[%s1 + $0xcd0] sm:$0xff]
  %v477 = vld [vmem:[%s1 + $0xcd8] sm:$0xff]
  %v478 = vld [vmem:[%s1 + $0xce0] sm:$0xff]
  %v479 = vld [vmem:[%s1 + $0xce8] sm:$0xff]
  %v480 = vld [vmem:[%s1 + $0xcf0] sm:$0xff]
  %v481 = vld [vmem:[%s1 + $0xcf8] sm:$0xff]
  %v482 = vld [vmem:[%s1 + $0xd00] sm:$0xff]
  %v483 = vld [vmem:[%s1 + $0xd08] sm:$0xff]
  %v484 = vld [vmem:[%s1 + $0xd10] sm:$0xff]
  %v485 = vld [vmem:[%s1 + $0xd18] sm:$0xff]
  %v486 = vld [vmem:[%s1 + $0xd20] sm:$0xff]
  %v487 = vld [vmem:[%s1 + $0xd28] sm:$0xff]
  %v488 = vld [vmem:[%s1 + $0xd30] sm:$0xff]
  %v489 = vld [vmem:[%s1 + $0xd38] sm:$0xff]
  %v490 = vld [vmem:[%s1 + $0xd40] sm:$0xff]
  %v491 = vld [vmem:[%s1 + $0xd48] sm:$0xff]
  %v492 = vld [vmem:[%s1 + $0xd50] sm:$0xff]
  %v493 = vld [vmem:[%s1 + $0xd58] sm:$0xff]
  %v494 = vld [vmem:[%s1 + $0xd60] sm:$0xff]
  %v495 = vld [vmem:[%s1 + $0xd68] sm:$0xff]
  %v496 = vld [vmem:[%s1 + $0xd70] sm:$0xff]
  %v497 = vld [vmem:[%s1 + $0xd78] sm:$0xff]
  %v498 = vld [vmem:[%s1 + $0xd80] sm:$0xff]
  %v499 = vld [vmem:[%s1 + $0xd88] sm:$0xff]
  %v500 = vld [vmem:[%s1 + $0xd90] sm:$0xff]
  %v501 = vld [vmem:[%s1 + $0xd98] sm:$0xff]
  %v502 = vld [vmem:[%s1 + $0xda0] sm:$0xff]
  %v503 = vld [vmem:[%s1 + $0xda8] sm:$0xff]
  %v504 = vld [vmem:[%s1 + $0xdb0] sm:$0xff]
  %v505 = vld [vmem:[%s1 + $0xdb8] sm:$0xff]
  %v506 = vld [vmem:[%s1 + $0xdc0] sm:$0xff]
  %v507 = vld [vmem:[%s1 + $0xdc8] sm:$0xff]
  %v508 = vld [vmem:[%s1 + $0xdd0] sm:$0xff]
  %v509 = vld [vmem:[%s1 + $0xdd8] sm:$0xff]
  %v510 = vld [vmem:[%s1 + $0xde0] sm:$0xff]
  %v511 = vld [vmem:[%s1 + $0xde8] sm:$0xff]
  %v512 = vld [vmem:[%s1 + $0xdf0] sm:$0xff]
  %v513 = vld [vmem:[%s1 + $0xdf8] sm:$0xff]
  %v514 = vld [vmem:[%s2] sm:$0xff]
  %v515 = vld [vmem:[%s3] sm:$0xf]
  %v516 = vld [vmem:[%s12] sm:$0xff]
  %v517 = vld [vmem:[%s12 + $0x8] sm:$0xff]
  %v518 = vld [vmem:[%s12 + $0x10] sm:$0xff]
  %v519 = vld [vmem:[%s12 + $0x18] sm:$0xff]
  %v521 = vlaneseq
  %v522 = vshrl.u32 %v521, 7
  %v523 = vsub.s32 0, %v522
  %v524 = vrot.slane %v515, %v523
  %v525 = vlaneseq
  %v526 = vshrl.u32 %v525, 7
  %v527 = vsub.s32 1, %v526
  %v528 = vrot.slane %v515, %v527
  %v529 = vlaneseq
  %v530 = vshrl.u32 %v529, 7
  %v531 = vsub.s32 2, %v530
  %v532 = vrot.slane %v515, %v531
  %v533 = vlaneseq
  %v534 = vshrl.u32 %v533, 7
  %v535 = vsub.s32 3, %v534
  %v536 = vrot.slane %v515, %v535
  %541 = vmatprep.subr.mxu0 %v127
  %542 = vmatpush1.msra.mxu0 %v126
  %543 = vmatprep.subr.mxu0 %v123
  %544 = vmatpush1.msra.mxu0 %v122
  %545 = vmatprep.subr.mxu0 %v119
  %546 = vmatpush1.msra.mxu0 %v118
  %547 = vmatprep.subr.mxu0 %v115
  %548 = vmatpush1.msra.mxu0 %v114
  %549 = vmatprep.subr.mxu0 %v111
  %550 = vmatpush1.msra.mxu0 %v110
  %551 = vmatprep.subr.mxu0 %v107
  %552 = vmatpush1.msra.mxu0 %v106
  %553 = vmatprep.subr.mxu0 %v103
  %554 = vmatpush1.msra.mxu0 %v102
  %555 = vmatprep.subr.mxu0 %v99
  %556 = vmatpush1.msra.mxu0 %v98
  %557 = vmatprep.subr.mxu0 %v95
  %558 = vmatpush1.msra.mxu0 %v94
  %559 = vmatprep.subr.mxu0 %v91
  %560 = vmatpush1.msra.mxu0 %v90
  %561 = vmatprep.subr.mxu0 %v87
  %562 = vmatpush1.msra.mxu0 %v86
  %563 = vmatprep.subr.mxu0 %v83
  %564 = vmatpush1.msra.mxu0 %v82
  %565 = vmatprep.subr.mxu0 %v79
  %566 = vmatpush1.msra.mxu0 %v78
  %567 = vmatprep.subr.mxu0 %v75
  %568 = vmatpush1.msra.mxu0 %v74
  %569 = vmatprep.subr.mxu0 %v71
  %570 = vmatpush1.msra.mxu0 %v70
  %571 = vmatprep.subr.mxu0 %v67
  %572 = vmatpush1.msra.mxu0 %v66
  %573 = vmatprep.subr.mxu0 %v191
  %574 = vmatpush2.msra.mxu0 %v190
  %575 = vmatprep.subr.mxu0 %v187
  %576 = vmatpush2.msra.mxu0 %v186
  %577 = vmatprep.subr.mxu0 %v183
  %578 = vmatpush2.msra.mxu0 %v182
  %579 = vmatprep.subr.mxu0 %v179
  %580 = vmatpush2.msra.mxu0 %v178
  %581 = vmatprep.subr.mxu0 %v175
  %582 = vmatpush2.msra.mxu0 %v174
  %583 = vmatprep.subr.mxu0 %v171
  %584 = vmatpush2.msra.mxu0 %v170
  %585 = vmatprep.subr.mxu0 %v167
  %586 = vmatpush2.msra.mxu0 %v166
  %587 = vmatprep.subr.mxu0 %v163
  %588 = vmatpush2.msra.mxu0 %v162
  %589 = vmatprep.subr.mxu0 %v159
  %590 = vmatpush2.msra.mxu0 %v158
  %591 = vmatprep.subr.mxu0 %v155
  %592 = vmatpush2.msra.mxu0 %v154
  %593 = vmatprep.subr.mxu0 %v151
  %594 = vmatpush2.msra.mxu0 %v150
  %595 = vmatprep.subr.mxu0 %v147
  %596 = vmatpush2.msra.mxu0 %v146
  %597 = vmatprep.subr.mxu0 %v143
  %598 = vmatpush2.msra.mxu0 %v142
  %599 = vmatprep.subr.mxu0 %v139
  %600 = vmatpush2.msra.mxu0 %v138
  %601 = vmatprep.subr.mxu0 %v135
  %602 = vmatpush2.msra.mxu0 %v134
  %603 = vmatprep.subr.mxu0 %v131
  %604 = vmatpush2.msra.mxu0 %v130
  %605 = vmatprep.mubr.f32.mxu0 %v60
  %606 = vmatmul.mubr.f32.gmra.mxu0 %v59
  %v607 = vpop.f32.mrf.mxu0
  %v608 = vadd.f32 %v524, %v607
  %v609 = vpop.f32.mrf.mxu0
  %v610 = vadd.f32 %v528, %v609
  %611 = vdwg.mxu0
  %612 = vmatprep.subr.mxu0 %v255
  %613 = vmatpush1.msra.mxu0 %v254
  %614 = vmatprep.subr.mxu0 %v251
  %615 = vmatpush1.msra.mxu0 %v250
  %616 = vmatprep.subr.mxu0 %v247
  %617 = vmatpush1.msra.mxu0 %v246
  %618 = vmatprep.subr.mxu0 %v243
  %619 = vmatpush1.msra.mxu0 %v242
  %620 = vmatprep.subr.mxu0 %v239
  %621 = vmatpush1.msra.mxu0 %v238
  %622 = vmatprep.subr.mxu0 %v235
  %623 = vmatpush1.msra.mxu0 %v234
  %624 = vmatprep.subr.mxu0 %v231
  %625 = vmatpush1.msra.mxu0 %v230
  %626 = vmatprep.subr.mxu0 %v227
  %627 = vmatpush1.msra.mxu0 %v226
  %628 = vmatprep.subr.mxu0 %v223
  %629 = vmatpush1.msra.mxu0 %v222
  %630 = vmatprep.subr.mxu0 %v219
  %631 = vmatpush1.msra.mxu0 %v218
  %632 = vmatprep.subr.mxu0 %v215
  %633 = vmatpush1.msra.mxu0 %v214
  %634 = vmatprep.subr.mxu0 %v211
  %635 = vmatpush1.msra.mxu0 %v210
  %636 = vmatprep.subr.mxu0 %v207
  %637 = vmatpush1.msra.mxu0 %v206
  %638 = vmatprep.subr.mxu0 %v203
  %639 = vmatpush1.msra.mxu0 %v202
  %640 = vmatprep.subr.mxu0 %v199
  %641 = vmatpush1.msra.mxu0 %v198
  %642 = vmatprep.subr.mxu0 %v195
  %643 = vmatpush1.msra.mxu0 %v194
  %644 = vmatprep.subr.mxu0 %v319
  %645 = vmatpush2.msra.mxu0 %v318
  %646 = vmatprep.subr.mxu0 %v315
  %647 = vmatpush2.msra.mxu0 %v314
  %648 = vmatprep.subr.mxu0 %v311
  %649 = vmatpush2.msra.mxu0 %v310
  %650 = vmatprep.subr.mxu0 %v307
  %651 = vmatpush2.msra.mxu0 %v306
  %652 = vmatprep.subr.mxu0 %v303
  %653 = vmatpush2.msra.mxu0 %v302
  %654 = vmatprep.subr.mxu0 %v299
  %655 = vmatpush2.msra.mxu0 %v298
  %656 = vmatprep.subr.mxu0 %v295
  %657 = vmatpush2.msra.mxu0 %v294
  %658 = vmatprep.subr.mxu0 %v291
  %659 = vmatpush2.msra.mxu0 %v290
  %660 = vmatprep.subr.mxu0 %v287
  %661 = vmatpush2.msra.mxu0 %v286
  %662 = vmatprep.subr.mxu0 %v283
  %663 = vmatpush2.msra.mxu0 %v282
  %664 = vmatprep.subr.mxu0 %v279
  %665 = vmatpush2.msra.mxu0 %v278
  %666 = vmatprep.subr.mxu0 %v275
  %667 = vmatpush2.msra.mxu0 %v274
  %668 = vmatprep.subr.mxu0 %v271
  %669 = vmatpush2.msra.mxu0 %v270
  %670 = vmatprep.subr.mxu0 %v267
  %671 = vmatpush2.msra.mxu0 %v266
  %672 = vmatprep.subr.mxu0 %v263
  %673 = vmatpush2.msra.mxu0 %v262
  %674 = vmatprep.subr.mxu0 %v259
  %675 = vmatpush2.msra.mxu0 %v258
  %676 = vmatprep.mubr.f32.mxu0 %v62
  %677 = vmatmul.mubr.f32.gmra.mxu0 %v61
  %v678 = vpop.f32.mrf.mxu0
  %v679 = vadd.f32 %v608, %v678
  %v680 = vpop.f32.mrf.mxu0
  %v681 = vadd.f32 %v610, %v680
  %682 = vdwg.mxu0
  %683 = vmatprep.subr.mxu0 %v383
  %684 = vmatpush1.msra.mxu0 %v382
  %685 = vmatprep.subr.mxu0 %v379
  %686 = vmatpush1.msra.mxu0 %v378
  %687 = vmatprep.subr.mxu0 %v375
  %688 = vmatpush1.msra.mxu0 %v374
  %689 = vmatprep.subr.mxu0 %v371
  %690 = vmatpush1.msra.mxu0 %v370
  %691 = vmatprep.subr.mxu0 %v367
  %692 = vmatpush1.msra.mxu0 %v366
  %693 = vmatprep.subr.mxu0 %v363
  %694 = vmatpush1.msra.mxu0 %v362
  %695 = vmatprep.subr.mxu0 %v359
  %696 = vmatpush1.msra.mxu0 %v358
  %697 = vmatprep.subr.mxu0 %v355
  %698 = vmatpush1.msra.mxu0 %v354
  %699 = vmatprep.subr.mxu0 %v351
  %700 = vmatpush1.msra.mxu0 %v350
  %701 = vmatprep.subr.mxu0 %v347
  %702 = vmatpush1.msra.mxu0 %v346
  %703 = vmatprep.subr.mxu0 %v343
  %704 = vmatpush1.msra.mxu0 %v342
  %705 = vmatprep.subr.mxu0 %v339
  %706 = vmatpush1.msra.mxu0 %v338
  %707 = vmatprep.subr.mxu0 %v335
  %708 = vmatpush1.msra.mxu0 %v334
  %709 = vmatprep.subr.mxu0 %v331
  %710 = vmatpush1.msra.mxu0 %v330
  %711 = vmatprep.subr.mxu0 %v327
  %712 = vmatpush1.msra.mxu0 %v326
  %713 = vmatprep.subr.mxu0 %v323
  %714 = vmatpush1.msra.mxu0 %v322
  %715 = vmatprep.subr.mxu0 %v447
  %716 = vmatpush2.msra.mxu0 %v446
  %717 = vmatprep.subr.mxu0 %v443
  %718 = vmatpush2.msra.mxu0 %v442
  %719 = vmatprep.subr.mxu0 %v439
  %720 = vmatpush2.msra.mxu0 %v438
  %721 = vmatprep.subr.mxu0 %v435
  %722 = vmatpush2.msra.mxu0 %v434
  %723 = vmatprep.subr.mxu0 %v431
  %724 = vmatpush2.msra.mxu0 %v430
  %725 = vmatprep.subr.mxu0 %v427
  %726 = vmatpush2.msra.mxu0 %v426
  %727 = vmatprep.subr.mxu0 %v423
  %728 = vmatpush2.msra.mxu0 %v422
  %729 = vmatprep.subr.mxu0 %v419
  %730 = vmatpush2.msra.mxu0 %v418
  %731 = vmatprep.subr.mxu0 %v415
  %732 = vmatpush2.msra.mxu0 %v414
  %733 = vmatprep.subr.mxu0 %v411
  %734 = vmatpush2.msra.mxu0 %v410
  %735 = vmatprep.subr.mxu0 %v407
  %736 = vmatpush2.msra.mxu0 %v406
  %737 = vmatprep.subr.mxu0 %v403
  %738 = vmatpush2.msra.mxu0 %v402
  %739 = vmatprep.subr.mxu0 %v399
  %740 = vmatpush2.msra.mxu0 %v398
  %741 = vmatprep.subr.mxu0 %v395
  %742 = vmatpush2.msra.mxu0 %v394
  %743 = vmatprep.subr.mxu0 %v391
  %744 = vmatpush2.msra.mxu0 %v390
  %745 = vmatprep.subr.mxu0 %v387
  %746 = vmatpush2.msra.mxu0 %v386
  %747 = vmatprep.mubr.f32.mxu0 %v64
  %748 = vmatmul.mubr.f32.gmra.mxu0 %v63
  %v749 = vpop.f32.mrf.mxu0
  %v750 = vadd.f32 %v679, %v749
  %v751 = vpop.f32.mrf.mxu0
  %v752 = vadd.f32 %v681, %v751
  %753 = vdwg.mxu0
  %754 = vmatprep.subr.mxu0 %v511
  %755 = vmatpush1.msra.mxu0 %v510
  %756 = vmatprep.subr.mxu0 %v507
  %757 = vmatpush1.msra.mxu0 %v506
  %758 = vmatprep.subr.mxu0 %v503
  %759 = vmatpush1.msra.mxu0 %v502
  %760 = vmatprep.subr.mxu0 %v499
  %761 = vmatpush1.msra.mxu0 %v498
  %762 = vmatprep.subr.mxu0 %v495
  %763 = vmatpush1.msra.mxu0 %v494
  %764 = vmatprep.subr.mxu0 %v491
  %765 = vmatpush1.msra.mxu0 %v490
  %766 = vmatprep.subr.mxu0 %v487
  %767 = vmatpush1.msra.mxu0 %v486
  %768 = vmatprep.subr.mxu0 %v483
  %769 = vmatpush1.msra.mxu0 %v482
  %770 = vmatprep.subr.mxu0 %v479
  %771 = vmatpush1.msra.mxu0 %v478
  %772 = vmatprep.subr.mxu0 %v475
  %773 = vmatpush1.msra.mxu0 %v474
  %774 = vmatprep.subr.mxu0 %v471
  %775 = vmatpush1.msra.mxu0 %v470
  %776 = vmatprep.subr.mxu0 %v467
  %777 = vmatpush1.msra.mxu0 %v466
  %778 = vmatprep.subr.mxu0 %v463
  %779 = vmatpush1.msra.mxu0 %v462
  %780 = vmatprep.subr.mxu0 %v459
  %781 = vmatpush1.msra.mxu0 %v458
  %782 = vmatprep.subr.mxu0 %v455
  %783 = vmatpush1.msra.mxu0 %v454
  %784 = vmatprep.subr.mxu0 %v451
  %785 = vmatpush1.msra.mxu0 %v450
  %786 = vmatprep.subr.mxu0 0.0
  %787 = vmatpush2.msra.mxu0 0.0
  %788 = vmatprep.subr.mxu0 0.0
  %789 = vmatpush2.msra.mxu0 0.0
  %790 = vmatprep.subr.mxu0 0.0
  %791 = vmatpush2.msra.mxu0 0.0
  %792 = vmatprep.subr.mxu0 0.0
  %793 = vmatpush2.msra.mxu0 0.0
  %794 = vmatprep.subr.mxu0 0.0
  %795 = vmatpush2.msra.mxu0 0.0
  %796 = vmatprep.subr.mxu0 0.0
  %797 = vmatpush2.msra.mxu0 0.0
  %798 = vmatprep.subr.mxu0 0.0
  %799 = vmatpush2.msra.mxu0 0.0
  %800 = vmatprep.subr.mxu0 0.0
  %801 = vmatpush2.msra.mxu0 0.0
  %802 = vmatprep.subr.mxu0 0.0
  %803 = vmatpush2.msra.mxu0 0.0
  %804 = vmatprep.subr.mxu0 0.0
  %805 = vmatpush2.msra.mxu0 0.0
  %806 = vmatprep.subr.mxu0 0.0
  %807 = vmatpush2.msra.mxu0 0.0
  %808 = vmatprep.subr.mxu0 0.0
  %809 = vmatpush2.msra.mxu0 0.0
  %810 = vmatprep.subr.mxu0 0.0
  %811 = vmatpush2.msra.mxu0 0.0
  %812 = vmatprep.subr.mxu0 0.0
  %813 = vmatpush2.msra.mxu0 0.0
  %814 = vmatprep.subr.mxu0 0.0
  %815 = vmatpush2.msra.mxu0 0.0
  %816 = vmatprep.subr.mxu0 0.0
  %817 = vmatpush2.msra.mxu0 0.0
  %818 = vmatprep.mubr.f32.mxu0 0.0
  %819 = vmatmul.mubr.f32.gmra.mxu0 %v65
  %v820 = vpop.f32.mrf.mxu0
  %v821 = vadd.f32 %v750, %v820
  %v822 = vpop.f32.mrf.mxu0
  %v823 = vadd.f32 %v752, %v822
  %824 = vdwg.mxu0
  %825 = vmatprep.subr.mxu0 %v129
  %826 = vmatpush1.msra.mxu0 %v128
  %827 = vmatprep.subr.mxu0 %v125
  %828 = vmatpush1.msra.mxu0 %v124
  %829 = vmatprep.subr.mxu0 %v121
  %830 = vmatpush1.msra.mxu0 %v120
  %831 = vmatprep.subr.mxu0 %v117
  %832 = vmatpush1.msra.mxu0 %v116
  %833 = vmatprep.subr.mxu0 %v113
  %834 = vmatpush1.msra.mxu0 %v112
  %835 = vmatprep.subr.mxu0 %v109
  %836 = vmatpush1.msra.mxu0 %v108
  %837 = vmatprep.subr.mxu0 %v105
  %838 = vmatpush1.msra.mxu0 %v104
  %839 = vmatprep.subr.mxu0 %v101
  %840 = vmatpush1.msra.mxu0 %v100
  %841 = vmatprep.subr.mxu0 %v97
  %842 = vmatpush1.msra.mxu0 %v96
  %843 = vmatprep.subr.mxu0 %v93
  %844 = vmatpush1.msra.mxu0 %v92
  %845 = vmatprep.subr.mxu0 %v89
  %846 = vmatpush1.msra.mxu0 %v88
  %847 = vmatprep.subr.mxu0 %v85
  %848 = vmatpush1.msra.mxu0 %v84
  %849 = vmatprep.subr.mxu0 %v81
  %850 = vmatpush1.msra.mxu0 %v80
  %851 = vmatprep.subr.mxu0 %v77
  %852 = vmatpush1.msra.mxu0 %v76
  %853 = vmatprep.subr.mxu0 %v73
  %854 = vmatpush1.msra.mxu0 %v72
  %855 = vmatprep.subr.mxu0 %v69
  %856 = vmatpush1.msra.mxu0 %v68
  %857 = vmatprep.subr.mxu0 %v193
  %858 = vmatpush2.msra.mxu0 %v192
  %859 = vmatprep.subr.mxu0 %v189
  %860 = vmatpush2.msra.mxu0 %v188
  %861 = vmatprep.subr.mxu0 %v185
  %862 = vmatpush2.msra.mxu0 %v184
  %863 = vmatprep.subr.mxu0 %v181
  %864 = vmatpush2.msra.mxu0 %v180
  %865 = vmatprep.subr.mxu0 %v177
  %866 = vmatpush2.msra.mxu0 %v176
  %867 = vmatprep.subr.mxu0 %v173
  %868 = vmatpush2.msra.mxu0 %v172
  %869 = vmatprep.subr.mxu0 %v169
  %870 = vmatpush2.msra.mxu0 %v168
  %871 = vmatprep.subr.mxu0 %v165
  %872 = vmatpush2.msra.mxu0 %v164
  %873 = vmatprep.subr.mxu0 %v161
  %874 = vmatpush2.msra.mxu0 %v160
  %875 = vmatprep.subr.mxu0 %v157
  %876 = vmatpush2.msra.mxu0 %v156
  %877 = vmatprep.subr.mxu0 %v153
  %878 = vmatpush2.msra.mxu0 %v152
  %879 = vmatprep.subr.mxu0 %v149
  %880 = vmatpush2.msra.mxu0 %v148
  %881 = vmatprep.subr.mxu0 %v145
  %882 = vmatpush2.msra.mxu0 %v144
  %883 = vmatprep.subr.mxu0 %v141
  %884 = vmatpush2.msra.mxu0 %v140
  %885 = vmatprep.subr.mxu0 %v137
  %886 = vmatpush2.msra.mxu0 %v136
  %887 = vmatprep.subr.mxu0 %v133
  %888 = vmatpush2.msra.mxu0 %v132
  %889 = vmatprep.mubr.f32.mxu0 %v60
  %890 = vmatmul.mubr.f32.gmra.mxu0 %v59
  %v891 = vpop.f32.mrf.mxu0
  %v892 = vadd.f32 %v532, %v891
  %v893 = vpop.f32.mrf.mxu0
  %v894 = vadd.f32 %v536, %v893
  %895 = vdwg.mxu0
  %896 = vmatprep.subr.mxu0 %v257
  %897 = vmatpush1.msra.mxu0 %v256
  %898 = vmatprep.subr.mxu0 %v253
  %899 = vmatpush1.msra.mxu0 %v252
  %900 = vmatprep.subr.mxu0 %v249
  %901 = vmatpush1.msra.mxu0 %v248
  %902 = vmatprep.subr.mxu0 %v245
  %903 = vmatpush1.msra.mxu0 %v244
  %904 = vmatprep.subr.mxu0 %v241
  %905 = vmatpush1.msra.mxu0 %v240
  %906 = vmatprep.subr.mxu0 %v237
  %907 = vmatpush1.msra.mxu0 %v236
  %908 = vmatprep.subr.mxu0 %v233
  %909 = vmatpush1.msra.mxu0 %v232
  %910 = vmatprep.subr.mxu0 %v229
  %911 = vmatpush1.msra.mxu0 %v228
  %912 = vmatprep.subr.mxu0 %v225
  %913 = vmatpush1.msra.mxu0 %v224
  %914 = vmatprep.subr.mxu0 %v221
  %915 = vmatpush1.msra.mxu0 %v220
  %916 = vmatprep.subr.mxu0 %v217
  %917 = vmatpush1.msra.mxu0 %v216
  %918 = vmatprep.subr.mxu0 %v213
  %919 = vmatpush1.msra.mxu0 %v212
  %920 = vmatprep.subr.mxu0 %v209
  %921 = vmatpush1.msra.mxu0 %v208
  %922 = vmatprep.subr.mxu0 %v205
  %923 = vmatpush1.msra.mxu0 %v204
  %924 = vmatprep.subr.mxu0 %v201
  %925 = vmatpush1.msra.mxu0 %v200
  %926 = vmatprep.subr.mxu0 %v197
  %927 = vmatpush1.msra.mxu0 %v196
  %928 = vmatprep.subr.mxu0 %v321
  %929 = vmatpush2.msra.mxu0 %v320
  %930 = vmatprep.subr.mxu0 %v317
  %931 = vmatpush2.msra.mxu0 %v316
  %932 = vmatprep.subr.mxu0 %v313
  %933 = vmatpush2.msra.mxu0 %v312
  %934 = vmatprep.subr.mxu0 %v309
  %935 = vmatpush2.msra.mxu0 %v308
  %936 = vmatprep.subr.mxu0 %v305
  %937 = vmatpush2.msra.mxu0 %v304
  %938 = vmatprep.subr.mxu0 %v301
  %939 = vmatpush2.msra.mxu0 %v300
  %940 = vmatprep.subr.mxu0 %v297
  %941 = vmatpush2.msra.mxu0 %v296
  %942 = vmatprep.subr.mxu0 %v293
  %943 = vmatpush2.msra.mxu0 %v292
  %944 = vmatprep.subr.mxu0 %v289
  %945 = vmatpush2.msra.mxu0 %v288
  %946 = vmatprep.subr.mxu0 %v285
  %947 = vmatpush2.msra.mxu0 %v284
  %948 = vmatprep.subr.mxu0 %v281
  %949 = vmatpush2.msra.mxu0 %v280
  %950 = vmatprep.subr.mxu0 %v277
  %951 = vmatpush2.msra.mxu0 %v276
  %952 = vmatprep.subr.mxu0 %v273
  %953 = vmatpush2.msra.mxu0 %v272
  %954 = vmatprep.subr.mxu0 %v269
  %955 = vmatpush2.msra.mxu0 %v268
  %956 = vmatprep.subr.mxu0 %v265
  %957 = vmatpush2.msra.mxu0 %v264
  %958 = vmatprep.subr.mxu0 %v261
  %959 = vmatpush2.msra.mxu0 %v260
  %960 = vmatprep.mubr.f32.mxu0 %v62
  %961 = vmatmul.mubr.f32.gmra.mxu0 %v61
  %v962 = vpop.f32.mrf.mxu0
  %v963 = vadd.f32 %v892, %v962
  %v964 = vpop.f32.mrf.mxu0
  %v965 = vadd.f32 %v894, %v964
  %966 = vdwg.mxu0
  %967 = vmatprep.subr.mxu0 %v385
  %968 = vmatpush1.msra.mxu0 %v384
  %969 = vmatprep.subr.mxu0 %v381
  %970 = vmatpush1.msra.mxu0 %v380
  %971 = vmatprep.subr.mxu0 %v377
  %972 = vmatpush1.msra.mxu0 %v376
  %973 = vmatprep.subr.mxu0 %v373
  %974 = vmatpush1.msra.mxu0 %v372
  %975 = vmatprep.subr.mxu0 %v369
  %976 = vmatpush1.msra.mxu0 %v368
  %977 = vmatprep.subr.mxu0 %v365
  %978 = vmatpush1.msra.mxu0 %v364
  %979 = vmatprep.subr.mxu0 %v361
  %980 = vmatpush1.msra.mxu0 %v360
  %981 = vmatprep.subr.mxu0 %v357
  %982 = vmatpush1.msra.mxu0 %v356
  %983 = vmatprep.subr.mxu0 %v353
  %984 = vmatpush1.msra.mxu0 %v352
  %985 = vmatprep.subr.mxu0 %v349
  %986 = vmatpush1.msra.mxu0 %v348
  %987 = vmatprep.subr.mxu0 %v345
  %988 = vmatpush1.msra.mxu0 %v344
  %989 = vmatprep.subr.mxu0 %v341
  %990 = vmatpush1.msra.mxu0 %v340
  %991 = vmatprep.subr.mxu0 %v337
  %992 = vmatpush1.msra.mxu0 %v336
  %993 = vmatprep.subr.mxu0 %v333
  %994 = vmatpush1.msra.mxu0 %v332
  %995 = vmatprep.subr.mxu0 %v329
  %996 = vmatpush1.msra.mxu0 %v328
  %997 = vmatprep.subr.mxu0 %v325
  %998 = vmatpush1.msra.mxu0 %v324
  %999 = vmatprep.subr.mxu0 %v449
  %1000 = vmatpush2.msra.mxu0 %v448
  %1001 = vmatprep.subr.mxu0 %v445
  %1002 = vmatpush2.msra.mxu0 %v444
  %1003 = vmatprep.subr.mxu0 %v441
  %1004 = vmatpush2.msra.mxu0 %v440
  %1005 = vmatprep.subr.mxu0 %v437
  %1006 = vmatpush2.msra.mxu0 %v436
  %1007 = vmatprep.subr.mxu0 %v433
  %1008 = vmatpush2.msra.mxu0 %v432
  %1009 = vmatprep.subr.mxu0 %v429
  %1010 = vmatpush2.msra.mxu0 %v428
  %1011 = vmatprep.subr.mxu0 %v425
  %1012 = vmatpush2.msra.mxu0 %v424
  %1013 = vmatprep.subr.mxu0 %v421
  %1014 = vmatpush2.msra.mxu0 %v420
  %1015 = vmatprep.subr.mxu0 %v417
  %1016 = vmatpush2.msra.mxu0 %v416
  %1017 = vmatprep.subr.mxu0 %v413
  %1018 = vmatpush2.msra.mxu0 %v412
  %1019 = vmatprep.subr.mxu0 %v409
  %1020 = vmatpush2.msra.mxu0 %v408
  %1021 = vmatprep.subr.mxu0 %v405
  %1022 = vmatpush2.msra.mxu0 %v404
  %1023 = vmatprep.subr.mxu0 %v401
  %1024 = vmatpush2.msra.mxu0 %v400
  %1025 = vmatprep.subr.mxu0 %v397
  %1026 = vmatpush2.msra.mxu0 %v396
  %1027 = vmatprep.subr.mxu0 %v393
  %1028 = vmatpush2.msra.mxu0 %v392
  %1029 = vmatprep.subr.mxu0 %v389
  %1030 = vmatpush2.msra.mxu0 %v388
  %1031 = vmatprep.mubr.f32.mxu0 %v64
  %1032 = vmatmul.mubr.f32.gmra.mxu0 %v63
  %v1033 = vpop.f32.mrf.mxu0
  %v1034 = vadd.f32 %v963, %v1033
  %v1035 = vpop.f32.mrf.mxu0
  %v1036 = vadd.f32 %v965, %v1035
  %1037 = vdwg.mxu0
  %1038 = vmatprep.subr.mxu0 %v513
  %1039 = vmatpush1.msra.mxu0 %v512
  %1040 = vmatprep.subr.mxu0 %v509
  %1041 = vmatpush1.msra.mxu0 %v508
  %1042 = vmatprep.subr.mxu0 %v505
  %1043 = vmatpush1.msra.mxu0 %v504
  %1044 = vmatprep.subr.mxu0 %v501
  %1045 = vmatpush1.msra.mxu0 %v500
  %1046 = vmatprep.subr.mxu0 %v497
  %1047 = vmatpush1.msra.mxu0 %v496
  %1048 = vmatprep.subr.mxu0 %v493
  %1049 = vmatpush1.msra.mxu0 %v492
  %1050 = vmatprep.subr.mxu0 %v489
  %1051 = vmatpush1.msra.mxu0 %v488
  %1052 = vmatprep.subr.mxu0 %v485
  %1053 = vmatpush1.msra.mxu0 %v484
  %1054 = vmatprep.subr.mxu0 %v481
  %1055 = vmatpush1.msra.mxu0 %v480
  %1056 = vmatprep.subr.mxu0 %v477
  %1057 = vmatpush1.msra.mxu0 %v476
  %1058 = vmatprep.subr.mxu0 %v473
  %1059 = vmatpush1.msra.mxu0 %v472
  %1060 = vmatprep.subr.mxu0 %v469
  %1061 = vmatpush1.msra.mxu0 %v468
  %1062 = vmatprep.subr.mxu0 %v465
  %1063 = vmatpush1.msra.mxu0 %v464
  %1064 = vmatprep.subr.mxu0 %v461
  %1065 = vmatpush1.msra.mxu0 %v460
  %1066 = vmatprep.subr.mxu0 %v457
  %1067 = vmatpush1.msra.mxu0 %v456
  %1068 = vmatprep.subr.mxu0 %v453
  %1069 = vmatpush1.msra.mxu0 %v452
  %1070 = vmatprep.subr.mxu0 0.0
  %1071 = vmatpush2.msra.mxu0 0.0
  %1072 = vmatprep.subr.mxu0 0.0
  %1073 = vmatpush2.msra.mxu0 0.0
  %1074 = vmatprep.subr.mxu0 0.0
  %1075 = vmatpush2.msra.mxu0 0.0
  %1076 = vmatprep.subr.mxu0 0.0
  %1077 = vmatpush2.msra.mxu0 0.0
  %1078 = vmatprep.subr.mxu0 0.0
  %1079 = vmatpush2.msra.mxu0 0.0
  %1080 = vmatprep.subr.mxu0 0.0
  %1081 = vmatpush2.msra.mxu0 0.0
  %1082 = vmatprep.subr.mxu0 0.0
  %1083 = vmatpush2.msra.mxu0 0.0
  %1084 = vmatprep.subr.mxu0 0.0
  %1085 = vmatpush2.msra.mxu0 0.0
  %1086 = vmatprep.subr.mxu0 0.0
  %1087 = vmatpush2.msra.mxu0 0.0
  %1088 = vmatprep.subr.mxu0 0.0
  %1089 = vmatpush2.msra.mxu0 0.0
  %1090 = vmatprep.subr.mxu0 0.0
  %1091 = vmatpush2.msra.mxu0 0.0
  %1092 = vmatprep.subr.mxu0 0.0
  %1093 = vmatpush2.msra.mxu0 0.0
  %1094 = vmatprep.subr.mxu0 0.0
  %1095 = vmatpush2.msra.mxu0 0.0
  %1096 = vmatprep.subr.mxu0 0.0
  %1097 = vmatpush2.msra.mxu0 0.0
  %1098 = vmatprep.subr.mxu0 0.0
  %1099 = vmatpush2.msra.mxu0 0.0
  %1100 = vmatprep.subr.mxu0 0.0
  %1101 = vmatpush2.msra.mxu0 0.0
  %1102 = vmatprep.mubr.f32.mxu0 0.0
  %1103 = vmatmul.mubr.f32.gmra.mxu0 %v65
  %v1104 = vpop.f32.mrf.mxu0
  %v1105 = vadd.f32 %v1034, %v1104
  %v1106 = vpop.f32.mrf.mxu0
  %v1107 = vadd.f32 %v1036, %v1106
  %1108 = vdwg.mxu0
  %v1109 = vxor.u32 %v821, 2147483648
  %v1110 = vxor.u32 %v823, 2147483648
  %v1111 = vxor.u32 %v1105, 2147483648
  %v1112 = vxor.u32 %v1107, 2147483648
  %v1113 = vmul.f32 %v1109, 1.442695
  %v1114 = vpow.pop %v1113
  %v1115 = vmul.f32 %v1110, 1.442695
  %v1116 = vpow.pop %v1115
  %v1117 = vmul.f32 %v1111, 1.442695
  %v1118 = vpow.pop %v1117
  %v1119 = vmul.f32 %v1112, 1.442695
  %v1120 = vpow.pop %v1119
  %v1121 = vadd.f32 %v1114, 1.0
  %v1122 = vadd.f32 %v1116, 1.0
  %v1123 = vadd.f32 %v1118, 1.0
  %v1124 = vadd.f32 %v1120, 1.0
  %v1125 = vrcp.pop %v1121
  %v1126 = vmul.f32 1.0, %v1125
  %v1127 = vrcp.pop %v1122
  %v1128 = vmul.f32 1.0, %v1127
  %v1129 = vrcp.pop %v1123
  %v1130 = vmul.f32 1.0, %v1129
  %v1131 = vrcp.pop %v1124
  %v1132 = vmul.f32 1.0, %v1131
  %vm1133 = vcmp.lt.f32.partialorder %v516, %v1126
  %vm1134 = vcmp.lt.f32.partialorder %v517, %v1128
  %vm1135 = vcmp.lt.f32.partialorder %v518, %v1130
  %vm1136 = vcmp.lt.f32.partialorder %v519, %v1132
  %v1137 = vsel %vm1133, 1, 0
  %v1138 = vsel %vm1134, 1, 0
  %v1139 = vsel %vm1135, 1, 0
  %v1140 = vsel %vm1136, 1, 0
  %v1141 = vcvt.s32.f32 %v1137
  %v1142 = vcvt.s32.f32 %v1138
  %v1143 = vcvt.s32.f32 %v1139
  %v1144 = vcvt.s32.f32 %v1140
  %v1145 = vld [vmem:[%s13] sm:$0xff]
  %v1146 = vld [vmem:[%s13 + $0x8] sm:$0xff]
  %v1147 = vld [vmem:[%s13 + $0x10] sm:$0xff]
  %v1148 = vld [vmem:[%s13 + $0x18] sm:$0xff]
  %v1149 = vld [vmem:[%s13 + $0x20] sm:$0xff]
  %v1150 = vld [vmem:[%s13 + $0x28] sm:$0xff]
  %v1151 = vld [vmem:[%s13 + $0x30] sm:$0xff]
  %v1153 = vlaneseq
  %v1154 = vshrl.u32 %v1153, 7
  %v1155 = vsub.s32 0, %v1154
  %v1156 = vrot.slane %v514, %v1155
  %v1157 = vlaneseq
  %v1158 = vshrl.u32 %v1157, 7
  %v1159 = vsub.s32 1, %v1158
  %v1160 = vrot.slane %v514, %v1159
  %v1161 = vlaneseq
  %v1162 = vshrl.u32 %v1161, 7
  %v1163 = vsub.s32 2, %v1162
  %v1164 = vrot.slane %v514, %v1163
  %v1165 = vlaneseq
  %v1166 = vshrl.u32 %v1165, 7
  %v1167 = vsub.s32 3, %v1166
  %v1168 = vrot.slane %v514, %v1167
  %v1169 = vlaneseq
  %v1170 = vshrl.u32 %v1169, 7
  %v1171 = vsub.s32 4, %v1170
  %v1172 = vrot.slane %v514, %v1171
  %v1173 = vlaneseq
  %v1174 = vshrl.u32 %v1173, 7
  %v1175 = vsub.s32 5, %v1174
  %v1176 = vrot.slane %v514, %v1175
  %v1177 = vlaneseq
  %v1178 = vshrl.u32 %v1177, 7
  %v1179 = vsub.s32 6, %v1178
  %v1180 = vrot.slane %v514, %v1179
  %1188 = vmatprep.subr.mxu0 %v127
  %1189 = vmatpush1.xpose.msra.mxu0 %v126
  %1190 = vmatprep.subr.mxu0 %v123
  %1191 = vmatpush1.xpose.msra.mxu0 %v122
  %1192 = vmatprep.subr.mxu0 %v119
  %1193 = vmatpush1.xpose.msra.mxu0 %v118
  %1194 = vmatprep.subr.mxu0 %v115
  %1195 = vmatpush1.xpose.msra.mxu0 %v114
  %1196 = vmatprep.subr.mxu0 %v111
  %1197 = vmatpush1.xpose.msra.mxu0 %v110
  %1198 = vmatprep.subr.mxu0 %v107
  %1199 = vmatpush1.xpose.msra.mxu0 %v106
  %1200 = vmatprep.subr.mxu0 %v103
  %1201 = vmatpush1.xpose.msra.mxu0 %v102
  %1202 = vmatprep.subr.mxu0 %v99
  %1203 = vmatpush1.xpose.msra.mxu0 %v98
  %1204 = vmatprep.subr.mxu0 %v95
  %1205 = vmatpush1.xpose.msra.mxu0 %v94
  %1206 = vmatprep.subr.mxu0 %v91
  %1207 = vmatpush1.xpose.msra.mxu0 %v90
  %1208 = vmatprep.subr.mxu0 %v87
  %1209 = vmatpush1.xpose.msra.mxu0 %v86
  %1210 = vmatprep.subr.mxu0 %v83
  %1211 = vmatpush1.xpose.msra.mxu0 %v82
  %1212 = vmatprep.subr.mxu0 %v79
  %1213 = vmatpush1.xpose.msra.mxu0 %v78
  %1214 = vmatprep.subr.mxu0 %v75
  %1215 = vmatpush1.xpose.msra.mxu0 %v74
  %1216 = vmatprep.subr.mxu0 %v71
  %1217 = vmatpush1.xpose.msra.mxu0 %v70
  %1218 = vmatprep.subr.mxu0 %v67
  %1219 = vmatpush1.xpose.msra.mxu0 %v66
  %1220 = vmatprep.subr.mxu0 %v191
  %1221 = vmatpush2.xpose.msra.mxu0 %v190
  %1222 = vmatprep.subr.mxu0 %v187
  %1223 = vmatpush2.xpose.msra.mxu0 %v186
  %1224 = vmatprep.subr.mxu0 %v183
  %1225 = vmatpush2.xpose.msra.mxu0 %v182
  %1226 = vmatprep.subr.mxu0 %v179
  %1227 = vmatpush2.xpose.msra.mxu0 %v178
  %1228 = vmatprep.subr.mxu0 %v175
  %1229 = vmatpush2.xpose.msra.mxu0 %v174
  %1230 = vmatprep.subr.mxu0 %v171
  %1231 = vmatpush2.xpose.msra.mxu0 %v170
  %1232 = vmatprep.subr.mxu0 %v167
  %1233 = vmatpush2.xpose.msra.mxu0 %v166
  %1234 = vmatprep.subr.mxu0 %v163
  %1235 = vmatpush2.xpose.msra.mxu0 %v162
  %1236 = vmatprep.subr.mxu0 %v159
  %1237 = vmatpush2.xpose.msra.mxu0 %v158
  %1238 = vmatprep.subr.mxu0 %v155
  %1239 = vmatpush2.xpose.msra.mxu0 %v154
  %1240 = vmatprep.subr.mxu0 %v151
  %1241 = vmatpush2.xpose.msra.mxu0 %v150
  %1242 = vmatprep.subr.mxu0 %v147
  %1243 = vmatpush2.xpose.msra.mxu0 %v146
  %1244 = vmatprep.subr.mxu0 %v143
  %1245 = vmatpush2.xpose.msra.mxu0 %v142
  %1246 = vmatprep.subr.mxu0 %v139
  %1247 = vmatpush2.xpose.msra.mxu0 %v138
  %1248 = vmatprep.subr.mxu0 %v135
  %1249 = vmatpush2.xpose.msra.mxu0 %v134
  %1250 = vmatprep.subr.mxu0 %v131
  %1251 = vmatpush2.xpose.msra.mxu0 %v130
  %1252 = vmatprep.mubr.f32.mxu0 %v1142
  %1253 = vmatmul.mubr.f32.gmra.mxu0 %v1141
  %v1254 = vpop.f32.mrf.mxu0
  %v1255 = vadd.f32 %v1156, %v1254
  %v1256 = vpop.f32.mrf.mxu0
  %v1257 = vadd.f32 %v1160, %v1256
  %1258 = vdwg.mxu0
  %1259 = vmatprep.subr.mxu0 %v129
  %1260 = vmatpush1.xpose.msra.mxu0 %v128
  %1261 = vmatprep.subr.mxu0 %v125
  %1262 = vmatpush1.xpose.msra.mxu0 %v124
  %1263 = vmatprep.subr.mxu0 %v121
  %1264 = vmatpush1.xpose.msra.mxu0 %v120
  %1265 = vmatprep.subr.mxu0 %v117
  %1266 = vmatpush1.xpose.msra.mxu0 %v116
  %1267 = vmatprep.subr.mxu0 %v113
  %1268 = vmatpush1.xpose.msra.mxu0 %v112
  %1269 = vmatprep.subr.mxu0 %v109
  %1270 = vmatpush1.xpose.msra.mxu0 %v108
  %1271 = vmatprep.subr.mxu0 %v105
  %1272 = vmatpush1.xpose.msra.mxu0 %v104
  %1273 = vmatprep.subr.mxu0 %v101
  %1274 = vmatpush1.xpose.msra.mxu0 %v100
  %1275 = vmatprep.subr.mxu0 %v97
  %1276 = vmatpush1.xpose.msra.mxu0 %v96
  %1277 = vmatprep.subr.mxu0 %v93
  %1278 = vmatpush1.xpose.msra.mxu0 %v92
  %1279 = vmatprep.subr.mxu0 %v89
  %1280 = vmatpush1.xpose.msra.mxu0 %v88
  %1281 = vmatprep.subr.mxu0 %v85
  %1282 = vmatpush1.xpose.msra.mxu0 %v84
  %1283 = vmatprep.subr.mxu0 %v81
  %1284 = vmatpush1.xpose.msra.mxu0 %v80
  %1285 = vmatprep.subr.mxu0 %v77
  %1286 = vmatpush1.xpose.msra.mxu0 %v76
  %1287 = vmatprep.subr.mxu0 %v73
  %1288 = vmatpush1.xpose.msra.mxu0 %v72
  %1289 = vmatprep.subr.mxu0 %v69
  %1290 = vmatpush1.xpose.msra.mxu0 %v68
  %1291 = vmatprep.subr.mxu0 %v193
  %1292 = vmatpush2.xpose.msra.mxu0 %v192
  %1293 = vmatprep.subr.mxu0 %v189
  %1294 = vmatpush2.xpose.msra.mxu0 %v188
  %1295 = vmatprep.subr.mxu0 %v185
  %1296 = vmatpush2.xpose.msra.mxu0 %v184
  %1297 = vmatprep.subr.mxu0 %v181
  %1298 = vmatpush2.xpose.msra.mxu0 %v180
  %1299 = vmatprep.subr.mxu0 %v177
  %1300 = vmatpush2.xpose.msra.mxu0 %v176
  %1301 = vmatprep.subr.mxu0 %v173
  %1302 = vmatpush2.xpose.msra.mxu0 %v172
  %1303 = vmatprep.subr.mxu0 %v169
  %1304 = vmatpush2.xpose.msra.mxu0 %v168
  %1305 = vmatprep.subr.mxu0 %v165
  %1306 = vmatpush2.xpose.msra.mxu0 %v164
  %1307 = vmatprep.subr.mxu0 %v161
  %1308 = vmatpush2.xpose.msra.mxu0 %v160
  %1309 = vmatprep.subr.mxu0 %v157
  %1310 = vmatpush2.xpose.msra.mxu0 %v156
  %1311 = vmatprep.subr.mxu0 %v153
  %1312 = vmatpush2.xpose.msra.mxu0 %v152
  %1313 = vmatprep.subr.mxu0 %v149
  %1314 = vmatpush2.xpose.msra.mxu0 %v148
  %1315 = vmatprep.subr.mxu0 %v145
  %1316 = vmatpush2.xpose.msra.mxu0 %v144
  %1317 = vmatprep.subr.mxu0 %v141
  %1318 = vmatpush2.xpose.msra.mxu0 %v140
  %1319 = vmatprep.subr.mxu0 %v137
  %1320 = vmatpush2.xpose.msra.mxu0 %v136
  %1321 = vmatprep.subr.mxu0 %v133
  %1322 = vmatpush2.xpose.msra.mxu0 %v132
  %1323 = vmatprep.mubr.f32.mxu0 %v1144
  %1324 = vmatmul.mubr.f32.gmra.mxu0 %v1143
  %v1325 = vpop.f32.mrf.mxu0
  %v1326 = vadd.f32 %v1255, %v1325
  %v1327 = vpop.f32.mrf.mxu0
  %v1328 = vadd.f32 %v1257, %v1327
  %1329 = vdwg.mxu0
  %1330 = vmatprep.subr.mxu0 %v255
  %1331 = vmatpush1.xpose.msra.mxu0 %v254
  %1332 = vmatprep.subr.mxu0 %v251
  %1333 = vmatpush1.xpose.msra.mxu0 %v250
  %1334 = vmatprep.subr.mxu0 %v247
  %1335 = vmatpush1.xpose.msra.mxu0 %v246
  %1336 = vmatprep.subr.mxu0 %v243
  %1337 = vmatpush1.xpose.msra.mxu0 %v242
  %1338 = vmatprep.subr.mxu0 %v239
  %1339 = vmatpush1.xpose.msra.mxu0 %v238
  %1340 = vmatprep.subr.mxu0 %v235
  %1341 = vmatpush1.xpose.msra.mxu0 %v234
  %1342 = vmatprep.subr.mxu0 %v231
  %1343 = vmatpush1.xpose.msra.mxu0 %v230
  %1344 = vmatprep.subr.mxu0 %v227
  %1345 = vmatpush1.xpose.msra.mxu0 %v226
  %1346 = vmatprep.subr.mxu0 %v223
  %1347 = vmatpush1.xpose.msra.mxu0 %v222
  %1348 = vmatprep.subr.mxu0 %v219
  %1349 = vmatpush1.xpose.msra.mxu0 %v218
  %1350 = vmatprep.subr.mxu0 %v215
  %1351 = vmatpush1.xpose.msra.mxu0 %v214
  %1352 = vmatprep.subr.mxu0 %v211
  %1353 = vmatpush1.xpose.msra.mxu0 %v210
  %1354 = vmatprep.subr.mxu0 %v207
  %1355 = vmatpush1.xpose.msra.mxu0 %v206
  %1356 = vmatprep.subr.mxu0 %v203
  %1357 = vmatpush1.xpose.msra.mxu0 %v202
  %1358 = vmatprep.subr.mxu0 %v199
  %1359 = vmatpush1.xpose.msra.mxu0 %v198
  %1360 = vmatprep.subr.mxu0 %v195
  %1361 = vmatpush1.xpose.msra.mxu0 %v194
  %1362 = vmatprep.subr.mxu0 %v319
  %1363 = vmatpush2.xpose.msra.mxu0 %v318
  %1364 = vmatprep.subr.mxu0 %v315
  %1365 = vmatpush2.xpose.msra.mxu0 %v314
  %1366 = vmatprep.subr.mxu0 %v311
  %1367 = vmatpush2.xpose.msra.mxu0 %v310
  %1368 = vmatprep.subr.mxu0 %v307
  %1369 = vmatpush2.xpose.msra.mxu0 %v306
  %1370 = vmatprep.subr.mxu0 %v303
  %1371 = vmatpush2.xpose.msra.mxu0 %v302
  %1372 = vmatprep.subr.mxu0 %v299
  %1373 = vmatpush2.xpose.msra.mxu0 %v298
  %1374 = vmatprep.subr.mxu0 %v295
  %1375 = vmatpush2.xpose.msra.mxu0 %v294
  %1376 = vmatprep.subr.mxu0 %v291
  %1377 = vmatpush2.xpose.msra.mxu0 %v290
  %1378 = vmatprep.subr.mxu0 %v287
  %1379 = vmatpush2.xpose.msra.mxu0 %v286
  %1380 = vmatprep.subr.mxu0 %v283
  %1381 = vmatpush2.xpose.msra.mxu0 %v282
  %1382 = vmatprep.subr.mxu0 %v279
  %1383 = vmatpush2.xpose.msra.mxu0 %v278
  %1384 = vmatprep.subr.mxu0 %v275
  %1385 = vmatpush2.xpose.msra.mxu0 %v274
  %1386 = vmatprep.subr.mxu0 %v271
  %1387 = vmatpush2.xpose.msra.mxu0 %v270
  %1388 = vmatprep.subr.mxu0 %v267
  %1389 = vmatpush2.xpose.msra.mxu0 %v266
  %1390 = vmatprep.subr.mxu0 %v263
  %1391 = vmatpush2.xpose.msra.mxu0 %v262
  %1392 = vmatprep.subr.mxu0 %v259
  %1393 = vmatpush2.xpose.msra.mxu0 %v258
  %1394 = vmatprep.mubr.f32.mxu0 %v1142
  %1395 = vmatmul.mubr.f32.gmra.mxu0 %v1141
  %v1396 = vpop.f32.mrf.mxu0
  %v1397 = vadd.f32 %v1164, %v1396
  %v1398 = vpop.f32.mrf.mxu0
  %v1399 = vadd.f32 %v1168, %v1398
  %1400 = vdwg.mxu0
  %1401 = vmatprep.subr.mxu0 %v257
  %1402 = vmatpush1.xpose.msra.mxu0 %v256
  %1403 = vmatprep.subr.mxu0 %v253
  %1404 = vmatpush1.xpose.msra.mxu0 %v252
  %1405 = vmatprep.subr.mxu0 %v249
  %1406 = vmatpush1.xpose.msra.mxu0 %v248
  %1407 = vmatprep.subr.mxu0 %v245
  %1408 = vmatpush1.xpose.msra.mxu0 %v244
  %1409 = vmatprep.subr.mxu0 %v241
  %1410 = vmatpush1.xpose.msra.mxu0 %v240
  %1411 = vmatprep.subr.mxu0 %v237
  %1412 = vmatpush1.xpose.msra.mxu0 %v236
  %1413 = vmatprep.subr.mxu0 %v233
  %1414 = vmatpush1.xpose.msra.mxu0 %v232
  %1415 = vmatprep.subr.mxu0 %v229
  %1416 = vmatpush1.xpose.msra.mxu0 %v228
  %1417 = vmatprep.subr.mxu0 %v225
  %1418 = vmatpush1.xpose.msra.mxu0 %v224
  %1419 = vmatprep.subr.mxu0 %v221
  %1420 = vmatpush1.xpose.msra.mxu0 %v220
  %1421 = vmatprep.subr.mxu0 %v217
  %1422 = vmatpush1.xpose.msra.mxu0 %v216
  %1423 = vmatprep.subr.mxu0 %v213
  %1424 = vmatpush1.xpose.msra.mxu0 %v212
  %1425 = vmatprep.subr.mxu0 %v209
  %1426 = vmatpush1.xpose.msra.mxu0 %v208
  %1427 = vmatprep.subr.mxu0 %v205
  %1428 = vmatpush1.xpose.msra.mxu0 %v204
  %1429 = vmatprep.subr.mxu0 %v201
  %1430 = vmatpush1.xpose.msra.mxu0 %v200
  %1431 = vmatprep.subr.mxu0 %v197
  %1432 = vmatpush1.xpose.msra.mxu0 %v196
  %1433 = vmatprep.subr.mxu0 %v321
  %1434 = vmatpush2.xpose.msra.mxu0 %v320
  %1435 = vmatprep.subr.mxu0 %v317
  %1436 = vmatpush2.xpose.msra.mxu0 %v316
  %1437 = vmatprep.subr.mxu0 %v313
  %1438 = vmatpush2.xpose.msra.mxu0 %v312
  %1439 = vmatprep.subr.mxu0 %v309
  %1440 = vmatpush2.xpose.msra.mxu0 %v308
  %1441 = vmatprep.subr.mxu0 %v305
  %1442 = vmatpush2.xpose.msra.mxu0 %v304
  %1443 = vmatprep.subr.mxu0 %v301
  %1444 = vmatpush2.xpose.msra.mxu0 %v300
  %1445 = vmatprep.subr.mxu0 %v297
  %1446 = vmatpush2.xpose.msra.mxu0 %v296
  %1447 = vmatprep.subr.mxu0 %v293
  %1448 = vmatpush2.xpose.msra.mxu0 %v292
  %1449 = vmatprep.subr.mxu0 %v289
  %1450 = vmatpush2.xpose.msra.mxu0 %v288
  %1451 = vmatprep.subr.mxu0 %v285
  %1452 = vmatpush2.xpose.msra.mxu0 %v284
  %1453 = vmatprep.subr.mxu0 %v281
  %1454 = vmatpush2.xpose.msra.mxu0 %v280
  %1455 = vmatprep.subr.mxu0 %v277
  %1456 = vmatpush2.xpose.msra.mxu0 %v276
  %1457 = vmatprep.subr.mxu0 %v273
  %1458 = vmatpush2.xpose.msra.mxu0 %v272
  %1459 = vmatprep.subr.mxu0 %v269
  %1460 = vmatpush2.xpose.msra.mxu0 %v268
  %1461 = vmatprep.subr.mxu0 %v265
  %1462 = vmatpush2.xpose.msra.mxu0 %v264
  %1463 = vmatprep.subr.mxu0 %v261
  %1464 = vmatpush2.xpose.msra.mxu0 %v260
  %1465 = vmatprep.mubr.f32.mxu0 %v1144
  %1466 = vmatmul.mubr.f32.gmra.mxu0 %v1143
  %v1467 = vpop.f32.mrf.mxu0
  %v1468 = vadd.f32 %v1397, %v1467
  %v1469 = vpop.f32.mrf.mxu0
  %v1470 = vadd.f32 %v1399, %v1469
  %1471 = vdwg.mxu0
  %1472 = vmatprep.subr.mxu0 %v383
  %1473 = vmatpush1.xpose.msra.mxu0 %v382
  %1474 = vmatprep.subr.mxu0 %v379
  %1475 = vmatpush1.xpose.msra.mxu0 %v378
  %1476 = vmatprep.subr.mxu0 %v375
  %1477 = vmatpush1.xpose.msra.mxu0 %v374
  %1478 = vmatprep.subr.mxu0 %v371
  %1479 = vmatpush1.xpose.msra.mxu0 %v370
  %1480 = vmatprep.subr.mxu0 %v367
  %1481 = vmatpush1.xpose.msra.mxu0 %v366
  %1482 = vmatprep.subr.mxu0 %v363
  %1483 = vmatpush1.xpose.msra.mxu0 %v362
  %1484 = vmatprep.subr.mxu0 %v359
  %1485 = vmatpush1.xpose.msra.mxu0 %v358
  %1486 = vmatprep.subr.mxu0 %v355
  %1487 = vmatpush1.xpose.msra.mxu0 %v354
  %1488 = vmatprep.subr.mxu0 %v351
  %1489 = vmatpush1.xpose.msra.mxu0 %v350
  %1490 = vmatprep.subr.mxu0 %v347
  %1491 = vmatpush1.xpose.msra.mxu0 %v346
  %1492 = vmatprep.subr.mxu0 %v343
  %1493 = vmatpush1.xpose.msra.mxu0 %v342
  %1494 = vmatprep.subr.mxu0 %v339
  %1495 = vmatpush1.xpose.msra.mxu0 %v338
  %1496 = vmatprep.subr.mxu0 %v335
  %1497 = vmatpush1.xpose.msra.mxu0 %v334
  %1498 = vmatprep.subr.mxu0 %v331
  %1499 = vmatpush1.xpose.msra.mxu0 %v330
  %1500 = vmatprep.subr.mxu0 %v327
  %1501 = vmatpush1.xpose.msra.mxu0 %v326
  %1502 = vmatprep.subr.mxu0 %v323
  %1503 = vmatpush1.xpose.msra.mxu0 %v322
  %1504 = vmatprep.subr.mxu0 %v447
  %1505 = vmatpush2.xpose.msra.mxu0 %v446
  %1506 = vmatprep.subr.mxu0 %v443
  %1507 = vmatpush2.xpose.msra.mxu0 %v442
  %1508 = vmatprep.subr.mxu0 %v439
  %1509 = vmatpush2.xpose.msra.mxu0 %v438
  %1510 = vmatprep.subr.mxu0 %v435
  %1511 = vmatpush2.xpose.msra.mxu0 %v434
  %1512 = vmatprep.subr.mxu0 %v431
  %1513 = vmatpush2.xpose.msra.mxu0 %v430
  %1514 = vmatprep.subr.mxu0 %v427
  %1515 = vmatpush2.xpose.msra.mxu0 %v426
  %1516 = vmatprep.subr.mxu0 %v423
  %1517 = vmatpush2.xpose.msra.mxu0 %v422
  %1518 = vmatprep.subr.mxu0 %v419
  %1519 = vmatpush2.xpose.msra.mxu0 %v418
  %1520 = vmatprep.subr.mxu0 %v415
  %1521 = vmatpush2.xpose.msra.mxu0 %v414
  %1522 = vmatprep.subr.mxu0 %v411
  %1523 = vmatpush2.xpose.msra.mxu0 %v410
  %1524 = vmatprep.subr.mxu0 %v407
  %1525 = vmatpush2.xpose.msra.mxu0 %v406
  %1526 = vmatprep.subr.mxu0 %v403
  %1527 = vmatpush2.xpose.msra.mxu0 %v402
  %1528 = vmatprep.subr.mxu0 %v399
  %1529 = vmatpush2.xpose.msra.mxu0 %v398
  %1530 = vmatprep.subr.mxu0 %v395
  %1531 = vmatpush2.xpose.msra.mxu0 %v394
  %1532 = vmatprep.subr.mxu0 %v391
  %1533 = vmatpush2.xpose.msra.mxu0 %v390
  %1534 = vmatprep.subr.mxu0 %v387
  %1535 = vmatpush2.xpose.msra.mxu0 %v386
  %1536 = vmatprep.mubr.f32.mxu0 %v1142
  %1537 = vmatmul.mubr.f32.gmra.mxu0 %v1141
  %v1538 = vpop.f32.mrf.mxu0
  %v1539 = vadd.f32 %v1172, %v1538
  %v1540 = vpop.f32.mrf.mxu0
  %v1541 = vadd.f32 %v1176, %v1540
  %1542 = vdwg.mxu0
  %1543 = vmatprep.subr.mxu0 %v385
  %1544 = vmatpush1.xpose.msra.mxu0 %v384
  %1545 = vmatprep.subr.mxu0 %v381
  %1546 = vmatpush1.xpose.msra.mxu0 %v380
  %1547 = vmatprep.subr.mxu0 %v377
  %1548 = vmatpush1.xpose.msra.mxu0 %v376
  %1549 = vmatprep.subr.mxu0 %v373
  %1550 = vmatpush1.xpose.msra.mxu0 %v372
  %1551 = vmatprep.subr.mxu0 %v369
  %1552 = vmatpush1.xpose.msra.mxu0 %v368
  %1553 = vmatprep.subr.mxu0 %v365
  %1554 = vmatpush1.xpose.msra.mxu0 %v364
  %1555 = vmatprep.subr.mxu0 %v361
  %1556 = vmatpush1.xpose.msra.mxu0 %v360
  %1557 = vmatprep.subr.mxu0 %v357
  %1558 = vmatpush1.xpose.msra.mxu0 %v356
  %1559 = vmatprep.subr.mxu0 %v353
  %1560 = vmatpush1.xpose.msra.mxu0 %v352
  %1561 = vmatprep.subr.mxu0 %v349
  %1562 = vmatpush1.xpose.msra.mxu0 %v348
  %1563 = vmatprep.subr.mxu0 %v345
  %1564 = vmatpush1.xpose.msra.mxu0 %v344
  %1565 = vmatprep.subr.mxu0 %v341
  %1566 = vmatpush1.xpose.msra.mxu0 %v340
  %1567 = vmatprep.subr.mxu0 %v337
  %1568 = vmatpush1.xpose.msra.mxu0 %v336
  %1569 = vmatprep.subr.mxu0 %v333
  %1570 = vmatpush1.xpose.msra.mxu0 %v332
  %1571 = vmatprep.subr.mxu0 %v329
  %1572 = vmatpush1.xpose.msra.mxu0 %v328
  %1573 = vmatprep.subr.mxu0 %v325
  %1574 = vmatpush1.xpose.msra.mxu0 %v324
  %1575 = vmatprep.subr.mxu0 %v449
  %1576 = vmatpush2.xpose.msra.mxu0 %v448
  %1577 = vmatprep.subr.mxu0 %v445
  %1578 = vmatpush2.xpose.msra.mxu0 %v444
  %1579 = vmatprep.subr.mxu0 %v441
  %1580 = vmatpush2.xpose.msra.mxu0 %v440
  %1581 = vmatprep.subr.mxu0 %v437
  %1582 = vmatpush2.xpose.msra.mxu0 %v436
  %1583 = vmatprep.subr.mxu0 %v433
  %1584 = vmatpush2.xpose.msra.mxu0 %v432
  %1585 = vmatprep.subr.mxu0 %v429
  %1586 = vmatpush2.xpose.msra.mxu0 %v428
  %1587 = vmatprep.subr.mxu0 %v425
  %1588 = vmatpush2.xpose.msra.mxu0 %v424
  %1589 = vmatprep.subr.mxu0 %v421
  %1590 = vmatpush2.xpose.msra.mxu0 %v420
  %1591 = vmatprep.subr.mxu0 %v417
  %1592 = vmatpush2.xpose.msra.mxu0 %v416
  %1593 = vmatprep.subr.mxu0 %v413
  %1594 = vmatpush2.xpose.msra.mxu0 %v412
  %1595 = vmatprep.subr.mxu0 %v409
  %1596 = vmatpush2.xpose.msra.mxu0 %v408
  %1597 = vmatprep.subr.mxu0 %v405
  %1598 = vmatpush2.xpose.msra.mxu0 %v404
  %1599 = vmatprep.subr.mxu0 %v401
  %1600 = vmatpush2.xpose.msra.mxu0 %v400
  %1601 = vmatprep.subr.mxu0 %v397
  %1602 = vmatpush2.xpose.msra.mxu0 %v396
  %1603 = vmatprep.subr.mxu0 %v393
  %1604 = vmatpush2.xpose.msra.mxu0 %v392
  %1605 = vmatprep.subr.mxu0 %v389
  %1606 = vmatpush2.xpose.msra.mxu0 %v388
  %1607 = vmatprep.mubr.f32.mxu0 %v1144
  %1608 = vmatmul.mubr.f32.gmra.mxu0 %v1143
  %v1609 = vpop.f32.mrf.mxu0
  %v1610 = vadd.f32 %v1539, %v1609
  %v1611 = vpop.f32.mrf.mxu0
  %v1612 = vadd.f32 %v1541, %v1611
  %1613 = vdwg.mxu0
  %1614 = vmatprep.subr.mxu0 %v511
  %1615 = vmatpush1.xpose.msra.mxu0 %v510
  %1616 = vmatprep.subr.mxu0 %v507
  %1617 = vmatpush1.xpose.msra.mxu0 %v506
  %1618 = vmatprep.subr.mxu0 %v503
  %1619 = vmatpush1.xpose.msra.mxu0 %v502
  %1620 = vmatprep.subr.mxu0 %v499
  %1621 = vmatpush1.xpose.msra.mxu0 %v498
  %1622 = vmatprep.subr.mxu0 %v495
  %1623 = vmatpush1.xpose.msra.mxu0 %v494
  %1624 = vmatprep.subr.mxu0 %v491
  %1625 = vmatpush1.xpose.msra.mxu0 %v490
  %1626 = vmatprep.subr.mxu0 %v487
  %1627 = vmatpush1.xpose.msra.mxu0 %v486
  %1628 = vmatprep.subr.mxu0 %v483
  %1629 = vmatpush1.xpose.msra.mxu0 %v482
  %1630 = vmatprep.subr.mxu0 %v479
  %1631 = vmatpush1.xpose.msra.mxu0 %v478
  %1632 = vmatprep.subr.mxu0 %v475
  %1633 = vmatpush1.xpose.msra.mxu0 %v474
  %1634 = vmatprep.subr.mxu0 %v471
  %1635 = vmatpush1.xpose.msra.mxu0 %v470
  %1636 = vmatprep.subr.mxu0 %v467
  %1637 = vmatpush1.xpose.msra.mxu0 %v466
  %1638 = vmatprep.subr.mxu0 %v463
  %1639 = vmatpush1.xpose.msra.mxu0 %v462
  %1640 = vmatprep.subr.mxu0 %v459
  %1641 = vmatpush1.xpose.msra.mxu0 %v458
  %1642 = vmatprep.subr.mxu0 %v455
  %1643 = vmatpush1.xpose.msra.mxu0 %v454
  %1644 = vmatprep.subr.mxu0 %v451
  %1645 = vmatpush1.xpose.msra.mxu0 %v450
  %1646 = vmatprep.subr.mxu0 0.0
  %1647 = vmatpush2.xpose.msra.mxu0 0.0
  %1648 = vmatprep.subr.mxu0 0.0
  %1649 = vmatpush2.xpose.msra.mxu0 0.0
  %1650 = vmatprep.subr.mxu0 0.0
  %1651 = vmatpush2.xpose.msra.mxu0 0.0
  %1652 = vmatprep.subr.mxu0 0.0
  %1653 = vmatpush2.xpose.msra.mxu0 0.0
  %1654 = vmatprep.subr.mxu0 0.0
  %1655 = vmatpush2.xpose.msra.mxu0 0.0
  %1656 = vmatprep.subr.mxu0 0.0
  %1657 = vmatpush2.xpose.msra.mxu0 0.0
  %1658 = vmatprep.subr.mxu0 0.0
  %1659 = vmatpush2.xpose.msra.mxu0 0.0
  %1660 = vmatprep.subr.mxu0 0.0
  %1661 = vmatpush2.xpose.msra.mxu0 0.0
  %1662 = vmatprep.subr.mxu0 0.0
  %1663 = vmatpush2.xpose.msra.mxu0 0.0
  %1664 = vmatprep.subr.mxu0 0.0
  %1665 = vmatpush2.xpose.msra.mxu0 0.0
  %1666 = vmatprep.subr.mxu0 0.0
  %1667 = vmatpush2.xpose.msra.mxu0 0.0
  %1668 = vmatprep.subr.mxu0 0.0
  %1669 = vmatpush2.xpose.msra.mxu0 0.0
  %1670 = vmatprep.subr.mxu0 0.0
  %1671 = vmatpush2.xpose.msra.mxu0 0.0
  %1672 = vmatprep.subr.mxu0 0.0
  %1673 = vmatpush2.xpose.msra.mxu0 0.0
  %1674 = vmatprep.subr.mxu0 0.0
  %1675 = vmatpush2.xpose.msra.mxu0 0.0
  %1676 = vmatprep.subr.mxu0 0.0
  %1677 = vmatpush2.xpose.msra.mxu0 0.0
  %1678 = vmatprep.mubr.f32.mxu0 %v1142
  %1679 = vmatmul.mubr.f32.gmra.mxu0 %v1141
  %v1680 = vpop.f32.mrf.mxu0
  %v1681 = vadd.f32 %v1180, %v1680
  %v1682 = vpop.f32.mrf.mxu0
  %1683 = vdwg.mxu0
  %1684 = vmatprep.subr.mxu0 %v513
  %1685 = vmatpush1.xpose.msra.mxu0 %v512
  %1686 = vmatprep.subr.mxu0 %v509
  %1687 = vmatpush1.xpose.msra.mxu0 %v508
  %1688 = vmatprep.subr.mxu0 %v505
  %1689 = vmatpush1.xpose.msra.mxu0 %v504
  %1690 = vmatprep.subr.mxu0 %v501
  %1691 = vmatpush1.xpose.msra.mxu0 %v500
  %1692 = vmatprep.subr.mxu0 %v497
  %1693 = vmatpush1.xpose.msra.mxu0 %v496
  %1694 = vmatprep.subr.mxu0 %v493
  %1695 = vmatpush1.xpose.msra.mxu0 %v492
  %1696 = vmatprep.subr.mxu0 %v489
  %1697 = vmatpush1.xpose.msra.mxu0 %v488
  %1698 = vmatprep.subr.mxu0 %v485
  %1699 = vmatpush1.xpose.msra.mxu0 %v484
  %1700 = vmatprep.subr.mxu0 %v481
  %1701 = vmatpush1.xpose.msra.mxu0 %v480
  %1702 = vmatprep.subr.mxu0 %v477
  %1703 = vmatpush1.xpose.msra.mxu0 %v476
  %1704 = vmatprep.subr.mxu0 %v473
  %1705 = vmatpush1.xpose.msra.mxu0 %v472
  %1706 = vmatprep.subr.mxu0 %v469
  %1707 = vmatpush1.xpose.msra.mxu0 %v468
  %1708 = vmatprep.subr.mxu0 %v465
  %1709 = vmatpush1.xpose.msra.mxu0 %v464
  %1710 = vmatprep.subr.mxu0 %v461
  %1711 = vmatpush1.xpose.msra.mxu0 %v460
  %1712 = vmatprep.subr.mxu0 %v457
  %1713 = vmatpush1.xpose.msra.mxu0 %v456
  %1714 = vmatprep.subr.mxu0 %v453
  %1715 = vmatpush1.xpose.msra.mxu0 %v452
  %1716 = vmatprep.subr.mxu0 0.0
  %1717 = vmatpush2.xpose.msra.mxu0 0.0
  %1718 = vmatprep.subr.mxu0 0.0
  %1719 = vmatpush2.xpose.msra.mxu0 0.0
  %1720 = vmatprep.subr.mxu0 0.0
  %1721 = vmatpush2.xpose.msra.mxu0 0.0
  %1722 = vmatprep.subr.mxu0 0.0
  %1723 = vmatpush2.xpose.msra.mxu0 0.0
  %1724 = vmatprep.subr.mxu0 0.0
  %1725 = vmatpush2.xpose.msra.mxu0 0.0
  %1726 = vmatprep.subr.mxu0 0.0
  %1727 = vmatpush2.xpose.msra.mxu0 0.0
  %1728 = vmatprep.subr.mxu0 0.0
  %1729 = vmatpush2.xpose.msra.mxu0 0.0
  %1730 = vmatprep.subr.mxu0 0.0
  %1731 = vmatpush2.xpose.msra.mxu0 0.0
  %1732 = vmatprep.subr.mxu0 0.0
  %1733 = vmatpush2.xpose.msra.mxu0 0.0
  %1734 = vmatprep.subr.mxu0 0.0
  %1735 = vmatpush2.xpose.msra.mxu0 0.0
  %1736 = vmatprep.subr.mxu0 0.0
  %1737 = vmatpush2.xpose.msra.mxu0 0.0
  %1738 = vmatprep.subr.mxu0 0.0
  %1739 = vmatpush2.xpose.msra.mxu0 0.0
  %1740 = vmatprep.subr.mxu0 0.0
  %1741 = vmatpush2.xpose.msra.mxu0 0.0
  %1742 = vmatprep.subr.mxu0 0.0
  %1743 = vmatpush2.xpose.msra.mxu0 0.0
  %1744 = vmatprep.subr.mxu0 0.0
  %1745 = vmatpush2.xpose.msra.mxu0 0.0
  %1746 = vmatprep.subr.mxu0 0.0
  %1747 = vmatpush2.xpose.msra.mxu0 0.0
  %1748 = vmatprep.mubr.f32.mxu0 %v1144
  %1749 = vmatmul.mubr.f32.gmra.mxu0 %v1143
  %v1750 = vpop.f32.mrf.mxu0
  %v1751 = vadd.f32 %v1681, %v1750
  %v1752 = vpop.f32.mrf.mxu0
  %1753 = vdwg.mxu0
  %v1754 = vxor.u32 %v1326, 2147483648
  %v1755 = vxor.u32 %v1328, 2147483648
  %v1756 = vxor.u32 %v1468, 2147483648
  %v1757 = vxor.u32 %v1470, 2147483648
  %v1758 = vxor.u32 %v1610, 2147483648
  %v1759 = vxor.u32 %v1612, 2147483648
  %v1760 = vxor.u32 %v1751, 2147483648
  %v1761 = vmul.f32 %v1754, 1.442695
  %v1762 = vpow.pop %v1761
  %v1763 = vmul.f32 %v1755, 1.442695
  %v1764 = vpow.pop %v1763
  %v1765 = vmul.f32 %v1756, 1.442695
  %v1766 = vpow.pop %v1765
  %v1767 = vmul.f32 %v1757, 1.442695
  %v1768 = vpow.pop %v1767
  %v1769 = vmul.f32 %v1758, 1.442695
  %v1770 = vpow.pop %v1769
  %v1771 = vmul.f32 %v1759, 1.442695
  %v1772 = vpow.pop %v1771
  %v1773 = vmul.f32 %v1760, 1.442695
  %v1774 = vpow.pop %v1773
  %v1775 = vadd.f32 %v1762, 1.0
  %v1776 = vadd.f32 %v1764, 1.0
  %v1777 = vadd.f32 %v1766, 1.0
  %v1778 = vadd.f32 %v1768, 1.0
  %v1779 = vadd.f32 %v1770, 1.0
  %v1780 = vadd.f32 %v1772, 1.0
  %v1781 = vadd.f32 %v1774, 1.0
  %v1782 = vrcp.pop %v1775
  %v1783 = vmul.f32 1.0, %v1782
  %v1784 = vrcp.pop %v1776
  %v1785 = vmul.f32 1.0, %v1784
  %v1786 = vrcp.pop %v1777
  %v1787 = vmul.f32 1.0, %v1786
  %v1788 = vrcp.pop %v1778
  %v1789 = vmul.f32 1.0, %v1788
  %v1790 = vrcp.pop %v1779
  %v1791 = vmul.f32 1.0, %v1790
  %v1792 = vrcp.pop %v1780
  %v1793 = vmul.f32 1.0, %v1792
  %v1794 = vrcp.pop %v1781
  %v1795 = vmul.f32 1.0, %v1794
  %vm1796 = vcmp.lt.f32.partialorder %v1145, %v1783
  %vm1797 = vcmp.lt.f32.partialorder %v1146, %v1785
  %vm1798 = vcmp.lt.f32.partialorder %v1147, %v1787
  %vm1799 = vcmp.lt.f32.partialorder %v1148, %v1789
  %vm1800 = vcmp.lt.f32.partialorder %v1149, %v1791
  %vm1801 = vcmp.lt.f32.partialorder %v1150, %v1793
  %vm1802 = vcmp.lt.f32.partialorder %v1151, %v1795
  %v1803 = vsel %vm1796, 1, 0
  %v1804 = vsel %vm1797, 1, 0
  %v1805 = vsel %vm1798, 1, 0
  %v1806 = vsel %vm1799, 1, 0
  %v1807 = vsel %vm1800, 1, 0
  %v1808 = vsel %vm1801, 1, 0
  %v1809 = vsel %vm1802, 1, 0
  %v1810 = vcvt.s32.f32 %v1803
  %v1811 = vcvt.s32.f32 %v1804
  %v1812 = vcvt.s32.f32 %v1805
  %v1813 = vcvt.s32.f32 %v1806
  %v1814 = vcvt.s32.f32 %v1807
  %v1815 = vcvt.s32.f32 %v1808
  %v1816 = vcvt.s32.f32 %v1809
  %s1817 = scalar_lea.vmem %s12, 32
  %v1818 = vld [vmem:[%s1817] sm:$0xff]
  %v1819 = vld [vmem:[%s1817 + $0x8] sm:$0xff]
  %v1820 = vld [vmem:[%s1817 + $0x10] sm:$0xff]
  %v1821 = vld [vmem:[%s1817 + $0x18] sm:$0xff]
  %1822 = vmatprep.subr.mxu0 %v127
  %1823 = vmatpush1.msra.mxu0 %v126
  %1824 = vmatprep.subr.mxu0 %v123
  %1825 = vmatpush1.msra.mxu0 %v122
  %1826 = vmatprep.subr.mxu0 %v119
  %1827 = vmatpush1.msra.mxu0 %v118
  %1828 = vmatprep.subr.mxu0 %v115
  %1829 = vmatpush1.msra.mxu0 %v114
  %1830 = vmatprep.subr.mxu0 %v111
  %1831 = vmatpush1.msra.mxu0 %v110
  %1832 = vmatprep.subr.mxu0 %v107
  %1833 = vmatpush1.msra.mxu0 %v106
  %1834 = vmatprep.subr.mxu0 %v103
  %1835 = vmatpush1.msra.mxu0 %v102
  %1836 = vmatprep.subr.mxu0 %v99
  %1837 = vmatpush1.msra.mxu0 %v98
  %1838 = vmatprep.subr.mxu0 %v95
  %1839 = vmatpush1.msra.mxu0 %v94
  %1840 = vmatprep.subr.mxu0 %v91
  %1841 = vmatpush1.msra.mxu0 %v90
  %1842 = vmatprep.subr.mxu0 %v87
  %1843 = vmatpush1.msra.mxu0 %v86
  %1844 = vmatprep.subr.mxu0 %v83
  %1845 = vmatpush1.msra.mxu0 %v82
  %1846 = vmatprep.subr.mxu0 %v79
  %1847 = vmatpush1.msra.mxu0 %v78
  %1848 = vmatprep.subr.mxu0 %v75
  %1849 = vmatpush1.msra.mxu0 %v74
  %1850 = vmatprep.subr.mxu0 %v71
  %1851 = vmatpush1.msra.mxu0 %v70
  %1852 = vmatprep.subr.mxu0 %v67
  %1853 = vmatpush1.msra.mxu0 %v66
  %1854 = vmatprep.subr.mxu0 %v191
  %1855 = vmatpush2.msra.mxu0 %v190
  %1856 = vmatprep.subr.mxu0 %v187
  %1857 = vmatpush2.msra.mxu0 %v186
  %1858 = vmatprep.subr.mxu0 %v183
  %1859 = vmatpush2.msra.mxu0 %v182
  %1860 = vmatprep.subr.mxu0 %v179
  %1861 = vmatpush2.msra.mxu0 %v178
  %1862 = vmatprep.subr.mxu0 %v175
  %1863 = vmatpush2.msra.mxu0 %v174
  %1864 = vmatprep.subr.mxu0 %v171
  %1865 = vmatpush2.msra.mxu0 %v170
  %1866 = vmatprep.subr.mxu0 %v167
  %1867 = vmatpush2.msra.mxu0 %v166
  %1868 = vmatprep.subr.mxu0 %v163
  %1869 = vmatpush2.msra.mxu0 %v162
  %1870 = vmatprep.subr.mxu0 %v159
  %1871 = vmatpush2.msra.mxu0 %v158
  %1872 = vmatprep.subr.mxu0 %v155
  %1873 = vmatpush2.msra.mxu0 %v154
  %1874 = vmatprep.subr.mxu0 %v151
  %1875 = vmatpush2.msra.mxu0 %v150
  %1876 = vmatprep.subr.mxu0 %v147
  %1877 = vmatpush2.msra.mxu0 %v146
  %1878 = vmatprep.subr.mxu0 %v143
  %1879 = vmatpush2.msra.mxu0 %v142
  %1880 = vmatprep.subr.mxu0 %v139
  %1881 = vmatpush2.msra.mxu0 %v138
  %1882 = vmatprep.subr.mxu0 %v135
  %1883 = vmatpush2.msra.mxu0 %v134
  %1884 = vmatprep.subr.mxu0 %v131
  %1885 = vmatpush2.msra.mxu0 %v130
  %1886 = vmatprep.mubr.f32.mxu0 %v1811
  %1887 = vmatmul.mubr.f32.gmra.mxu0 %v1810
  %v1888 = vpop.f32.mrf.mxu0
  %v1889 = vadd.f32 %v524, %v1888
  %v1890 = vpop.f32.mrf.mxu0
  %v1891 = vadd.f32 %v528, %v1890
  %1892 = vdwg.mxu0
  %1893 = vmatprep.subr.mxu0 %v255
  %1894 = vmatpush1.msra.mxu0 %v254
  %1895 = vmatprep.subr.mxu0 %v251
  %1896 = vmatpush1.msra.mxu0 %v250
  %1897 = vmatprep.subr.mxu0 %v247
  %1898 = vmatpush1.msra.mxu0 %v246
  %1899 = vmatprep.subr.mxu0 %v243
  %1900 = vmatpush1.msra.mxu0 %v242
  %1901 = vmatprep.subr.mxu0 %v239
  %1902 = vmatpush1.msra.mxu0 %v238
  %1903 = vmatprep.subr.mxu0 %v235
  %1904 = vmatpush1.msra.mxu0 %v234
  %1905 = vmatprep.subr.mxu0 %v231
  %1906 = vmatpush1.msra.mxu0 %v230
  %1907 = vmatprep.subr.mxu0 %v227
  %1908 = vmatpush1.msra.mxu0 %v226
  %1909 = vmatprep.subr.mxu0 %v223
  %1910 = vmatpush1.msra.mxu0 %v222
  %1911 = vmatprep.subr.mxu0 %v219
  %1912 = vmatpush1.msra.mxu0 %v218
  %1913 = vmatprep.subr.mxu0 %v215
  %1914 = vmatpush1.msra.mxu0 %v214
  %1915 = vmatprep.subr.mxu0 %v211
  %1916 = vmatpush1.msra.mxu0 %v210
  %1917 = vmatprep.subr.mxu0 %v207
  %1918 = vmatpush1.msra.mxu0 %v206
  %1919 = vmatprep.subr.mxu0 %v203
  %1920 = vmatpush1.msra.mxu0 %v202
  %1921 = vmatprep.subr.mxu0 %v199
  %1922 = vmatpush1.msra.mxu0 %v198
  %1923 = vmatprep.subr.mxu0 %v195
  %1924 = vmatpush1.msra.mxu0 %v194
  %1925 = vmatprep.subr.mxu0 %v319
  %1926 = vmatpush2.msra.mxu0 %v318
  %1927 = vmatprep.subr.mxu0 %v315
  %1928 = vmatpush2.msra.mxu0 %v314
  %1929 = vmatprep.subr.mxu0 %v311
  %1930 = vmatpush2.msra.mxu0 %v310
  %1931 = vmatprep.subr.mxu0 %v307
  %1932 = vmatpush2.msra.mxu0 %v306
  %1933 = vmatprep.subr.mxu0 %v303
  %1934 = vmatpush2.msra.mxu0 %v302
  %1935 = vmatprep.subr.mxu0 %v299
  %1936 = vmatpush2.msra.mxu0 %v298
  %1937 = vmatprep.subr.mxu0 %v295
  %1938 = vmatpush2.msra.mxu0 %v294
  %1939 = vmatprep.subr.mxu0 %v291
  %1940 = vmatpush2.msra.mxu0 %v290
  %1941 = vmatprep.subr.mxu0 %v287
  %1942 = vmatpush2.msra.mxu0 %v286
  %1943 = vmatprep.subr.mxu0 %v283
  %1944 = vmatpush2.msra.mxu0 %v282
  %1945 = vmatprep.subr.mxu0 %v279
  %1946 = vmatpush2.msra.mxu0 %v278
  %1947 = vmatprep.subr.mxu0 %v275
  %1948 = vmatpush2.msra.mxu0 %v274
  %1949 = vmatprep.subr.mxu0 %v271
  %1950 = vmatpush2.msra.mxu0 %v270
  %1951 = vmatprep.subr.mxu0 %v267
  %1952 = vmatpush2.msra.mxu0 %v266
  %1953 = vmatprep.subr.mxu0 %v263
  %1954 = vmatpush2.msra.mxu0 %v262
  %1955 = vmatprep.subr.mxu0 %v259
  %1956 = vmatpush2.msra.mxu0 %v258
  %1957 = vmatprep.mubr.f32.mxu0 %v1813
  %1958 = vmatmul.mubr.f32.gmra.mxu0 %v1812
  %v1959 = vpop.f32.mrf.mxu0
  %v1960 = vadd.f32 %v1889, %v1959
  %v1961 = vpop.f32.mrf.mxu0
  %v1962 = vadd.f32 %v1891, %v1961
  %1963 = vdwg.mxu0
  %1964 = vmatprep.subr.mxu0 %v383
  %1965 = vmatpush1.msra.mxu0 %v382
  %1966 = vmatprep.subr.mxu0 %v379
  %1967 = vmatpush1.msra.mxu0 %v378
  %1968 = vmatprep.subr.mxu0 %v375
  %1969 = vmatpush1.msra.mxu0 %v374
  %1970 = vmatprep.subr.mxu0 %v371
  %1971 = vmatpush1.msra.mxu0 %v370
  %1972 = vmatprep.subr.mxu0 %v367
  %1973 = vmatpush1.msra.mxu0 %v366
  %1974 = vmatprep.subr.mxu0 %v363
  %1975 = vmatpush1.msra.mxu0 %v362
  %1976 = vmatprep.subr.mxu0 %v359
  %1977 = vmatpush1.msra.mxu0 %v358
  %1978 = vmatprep.subr.mxu0 %v355
  %1979 = vmatpush1.msra.mxu0 %v354
  %1980 = vmatprep.subr.mxu0 %v351
  %1981 = vmatpush1.msra.mxu0 %v350
  %1982 = vmatprep.subr.mxu0 %v347
  %1983 = vmatpush1.msra.mxu0 %v346
  %1984 = vmatprep.subr.mxu0 %v343
  %1985 = vmatpush1.msra.mxu0 %v342
  %1986 = vmatprep.subr.mxu0 %v339
  %1987 = vmatpush1.msra.mxu0 %v338
  %1988 = vmatprep.subr.mxu0 %v335
  %1989 = vmatpush1.msra.mxu0 %v334
  %1990 = vmatprep.subr.mxu0 %v331
  %1991 = vmatpush1.msra.mxu0 %v330
  %1992 = vmatprep.subr.mxu0 %v327
  %1993 = vmatpush1.msra.mxu0 %v326
  %1994 = vmatprep.subr.mxu0 %v323
  %1995 = vmatpush1.msra.mxu0 %v322
  %1996 = vmatprep.subr.mxu0 %v447
  %1997 = vmatpush2.msra.mxu0 %v446
  %1998 = vmatprep.subr.mxu0 %v443
  %1999 = vmatpush2.msra.mxu0 %v442
  %2000 = vmatprep.subr.mxu0 %v439
  %2001 = vmatpush2.msra.mxu0 %v438
  %2002 = vmatprep.subr.mxu0 %v435
  %2003 = vmatpush2.msra.mxu0 %v434
  %2004 = vmatprep.subr.mxu0 %v431
  %2005 = vmatpush2.msra.mxu0 %v430
  %2006 = vmatprep.subr.mxu0 %v427
  %2007 = vmatpush2.msra.mxu0 %v426
  %2008 = vmatprep.subr.mxu0 %v423
  %2009 = vmatpush2.msra.mxu0 %v422
  %2010 = vmatprep.subr.mxu0 %v419
  %2011 = vmatpush2.msra.mxu0 %v418
  %2012 = vmatprep.subr.mxu0 %v415
  %2013 = vmatpush2.msra.mxu0 %v414
  %2014 = vmatprep.subr.mxu0 %v411
  %2015 = vmatpush2.msra.mxu0 %v410
  %2016 = vmatprep.subr.mxu0 %v407
  %2017 = vmatpush2.msra.mxu0 %v406
  %2018 = vmatprep.subr.mxu0 %v403
  %2019 = vmatpush2.msra.mxu0 %v402
  %2020 = vmatprep.subr.mxu0 %v399
  %2021 = vmatpush2.msra.mxu0 %v398
  %2022 = vmatprep.subr.mxu0 %v395
  %2023 = vmatpush2.msra.mxu0 %v394
  %2024 = vmatprep.subr.mxu0 %v391
  %2025 = vmatpush2.msra.mxu0 %v390
  %2026 = vmatprep.subr.mxu0 %v387
  %2027 = vmatpush2.msra.mxu0 %v386
  %2028 = vmatprep.mubr.f32.mxu0 %v1815
  %2029 = vmatmul.mubr.f32.gmra.mxu0 %v1814
  %v2030 = vpop.f32.mrf.mxu0
  %v2031 = vadd.f32 %v1960, %v2030
  %v2032 = vpop.f32.mrf.mxu0
  %v2033 = vadd.f32 %v1962, %v2032
  %2034 = vdwg.mxu0
  %2035 = vmatprep.subr.mxu0 %v511
  %2036 = vmatpush1.msra.mxu0 %v510
  %2037 = vmatprep.subr.mxu0 %v507
  %2038 = vmatpush1.msra.mxu0 %v506
  %2039 = vmatprep.subr.mxu0 %v503
  %2040 = vmatpush1.msra.mxu0 %v502
  %2041 = vmatprep.subr.mxu0 %v499
  %2042 = vmatpush1.msra.mxu0 %v498
  %2043 = vmatprep.subr.mxu0 %v495
  %2044 = vmatpush1.msra.mxu0 %v494
  %2045 = vmatprep.subr.mxu0 %v491
  %2046 = vmatpush1.msra.mxu0 %v490
  %2047 = vmatprep.subr.mxu0 %v487
  %2048 = vmatpush1.msra.mxu0 %v486
  %2049 = vmatprep.subr.mxu0 %v483
  %2050 = vmatpush1.msra.mxu0 %v482
  %2051 = vmatprep.subr.mxu0 %v479
  %2052 = vmatpush1.msra.mxu0 %v478
  %2053 = vmatprep.subr.mxu0 %v475
  %2054 = vmatpush1.msra.mxu0 %v474
  %2055 = vmatprep.subr.mxu0 %v471
  %2056 = vmatpush1.msra.mxu0 %v470
  %2057 = vmatprep.subr.mxu0 %v467
  %2058 = vmatpush1.msra.mxu0 %v466
  %2059 = vmatprep.subr.mxu0 %v463
  %2060 = vmatpush1.msra.mxu0 %v462
  %2061 = vmatprep.subr.mxu0 %v459
  %2062 = vmatpush1.msra.mxu0 %v458
  %2063 = vmatprep.subr.mxu0 %v455
  %2064 = vmatpush1.msra.mxu0 %v454
  %2065 = vmatprep.subr.mxu0 %v451
  %2066 = vmatpush1.msra.mxu0 %v450
  %2067 = vmatprep.subr.mxu0 0.0
  %2068 = vmatpush2.msra.mxu0 0.0
  %2069 = vmatprep.subr.mxu0 0.0
  %2070 = vmatpush2.msra.mxu0 0.0
  %2071 = vmatprep.subr.mxu0 0.0
  %2072 = vmatpush2.msra.mxu0 0.0
  %2073 = vmatprep.subr.mxu0 0.0
  %2074 = vmatpush2.msra.mxu0 0.0
  %2075 = vmatprep.subr.mxu0 0.0
  %2076 = vmatpush2.msra.mxu0 0.0
  %2077 = vmatprep.subr.mxu0 0.0
  %2078 = vmatpush2.msra.mxu0 0.0
  %2079 = vmatprep.subr.mxu0 0.0
  %2080 = vmatpush2.msra.mxu0 0.0
  %2081 = vmatprep.subr.mxu0 0.0
  %2082 = vmatpush2.msra.mxu0 0.0
  %2083 = vmatprep.subr.mxu0 0.0
  %2084 = vmatpush2.msra.mxu0 0.0
  %2085 = vmatprep.subr.mxu0 0.0
  %2086 = vmatpush2.msra.mxu0 0.0
  %2087 = vmatprep.subr.mxu0 0.0
  %2088 = vmatpush2.msra.mxu0 0.0
  %2089 = vmatprep.subr.mxu0 0.0
  %2090 = vmatpush2.msra.mxu0 0.0
  %2091 = vmatprep.subr.mxu0 0.0
  %2092 = vmatpush2.msra.mxu0 0.0
  %2093 = vmatprep.subr.mxu0 0.0
  %2094 = vmatpush2.msra.mxu0 0.0
  %2095 = vmatprep.subr.mxu0 0.0
  %2096 = vmatpush2.msra.mxu0 0.0
  %2097 = vmatprep.subr.mxu0 0.0
  %2098 = vmatpush2.msra.mxu0 0.0
  %2099 = vmatprep.mubr.f32.mxu0 0.0
  %2100 = vmatmul.mubr.f32.gmra.mxu0 %v1816
  %v2101 = vpop.f32.mrf.mxu0
  %v2102 = vadd.f32 %v2031, %v2101
  %v2103 = vpop.f32.mrf.mxu0
  %v2104 = vadd.f32 %v2033, %v2103
  %2105 = vdwg.mxu0
  %2106 = vmatprep.subr.mxu0 %v129
  %2107 = vmatpush1.msra.mxu0 %v128
  %2108 = vmatprep.subr.mxu0 %v125
  %2109 = vmatpush1.msra.mxu0 %v124
  %2110 = vmatprep.subr.mxu0 %v121
  %2111 = vmatpush1.msra.mxu0 %v120
  %2112 = vmatprep.subr.mxu0 %v117
  %2113 = vmatpush1.msra.mxu0 %v116
  %2114 = vmatprep.subr.mxu0 %v113
  %2115 = vmatpush1.msra.mxu0 %v112
  %2116 = vmatprep.subr.mxu0 %v109
  %2117 = vmatpush1.msra.mxu0 %v108
  %2118 = vmatprep.subr.mxu0 %v105
  %2119 = vmatpush1.msra.mxu0 %v104
  %2120 = vmatprep.subr.mxu0 %v101
  %2121 = vmatpush1.msra.mxu0 %v100
  %2122 = vmatprep.subr.mxu0 %v97
  %2123 = vmatpush1.msra.mxu0 %v96
  %2124 = vmatprep.subr.mxu0 %v93
  %2125 = vmatpush1.msra.mxu0 %v92
  %2126 = vmatprep.subr.mxu0 %v89
  %2127 = vmatpush1.msra.mxu0 %v88
  %2128 = vmatprep.subr.mxu0 %v85
  %2129 = vmatpush1.msra.mxu0 %v84
  %2130 = vmatprep.subr.mxu0 %v81
  %2131 = vmatpush1.msra.mxu0 %v80
  %2132 = vmatprep.subr.mxu0 %v77
  %2133 = vmatpush1.msra.mxu0 %v76
  %2134 = vmatprep.subr.mxu0 %v73
  %2135 = vmatpush1.msra.mxu0 %v72
  %2136 = vmatprep.subr.mxu0 %v69
  %2137 = vmatpush1.msra.mxu0 %v68
  %2138 = vmatprep.subr.mxu0 %v193
  %2139 = vmatpush2.msra.mxu0 %v192
  %2140 = vmatprep.subr.mxu0 %v189
  %2141 = vmatpush2.msra.mxu0 %v188
  %2142 = vmatprep.subr.mxu0 %v185
  %2143 = vmatpush2.msra.mxu0 %v184
  %2144 = vmatprep.subr.mxu0 %v181
  %2145 = vmatpush2.msra.mxu0 %v180
  %2146 = vmatprep.subr.mxu0 %v177
  %2147 = vmatpush2.msra.mxu0 %v176
  %2148 = vmatprep.subr.mxu0 %v173
  %2149 = vmatpush2.msra.mxu0 %v172
  %2150 = vmatprep.subr.mxu0 %v169
  %2151 = vmatpush2.msra.mxu0 %v168
  %2152 = vmatprep.subr.mxu0 %v165
  %2153 = vmatpush2.msra.mxu0 %v164
  %2154 = vmatprep.subr.mxu0 %v161
  %2155 = vmatpush2.msra.mxu0 %v160
  %2156 = vmatprep.subr.mxu0 %v157
  %2157 = vmatpush2.msra.mxu0 %v156
  %2158 = vmatprep.subr.mxu0 %v153
  %2159 = vmatpush2.msra.mxu0 %v152
  %2160 = vmatprep.subr.mxu0 %v149
  %2161 = vmatpush2.msra.mxu0 %v148
  %2162 = vmatprep.subr.mxu0 %v145
  %2163 = vmatpush2.msra.mxu0 %v144
  %2164 = vmatprep.subr.mxu0 %v141
  %2165 = vmatpush2.msra.mxu0 %v140
  %2166 = vmatprep.subr.mxu0 %v137
  %2167 = vmatpush2.msra.mxu0 %v136
  %2168 = vmatprep.subr.mxu0 %v133
  %2169 = vmatpush2.msra.mxu0 %v132
  %2170 = vmatprep.mubr.f32.mxu0 %v1811
  %2171 = vmatmul.mubr.f32.gmra.mxu0 %v1810
  %v2172 = vpop.f32.mrf.mxu0
  %v2173 = vadd.f32 %v532, %v2172
  %v2174 = vpop.f32.mrf.mxu0
  %v2175 = vadd.f32 %v536, %v2174
  %2176 = vdwg.mxu0
  %2177 = vmatprep.subr.mxu0 %v257
  %2178 = vmatpush1.msra.mxu0 %v256
  %2179 = vmatprep.subr.mxu0 %v253
  %2180 = vmatpush1.msra.mxu0 %v252
  %2181 = vmatprep.subr.mxu0 %v249
  %2182 = vmatpush1.msra.mxu0 %v248
  %2183 = vmatprep.subr.mxu0 %v245
  %2184 = vmatpush1.msra.mxu0 %v244
  %2185 = vmatprep.subr.mxu0 %v241
  %2186 = vmatpush1.msra.mxu0 %v240
  %2187 = vmatprep.subr.mxu0 %v237
  %2188 = vmatpush1.msra.mxu0 %v236
  %2189 = vmatprep.subr.mxu0 %v233
  %2190 = vmatpush1.msra.mxu0 %v232
  %2191 = vmatprep.subr.mxu0 %v229
  %2192 = vmatpush1.msra.mxu0 %v228
  %2193 = vmatprep.subr.mxu0 %v225
  %2194 = vmatpush1.msra.mxu0 %v224
  %2195 = vmatprep.subr.mxu0 %v221
  %2196 = vmatpush1.msra.mxu0 %v220
  %2197 = vmatprep.subr.mxu0 %v217
  %2198 = vmatpush1.msra.mxu0 %v216
  %2199 = vmatprep.subr.mxu0 %v213
  %2200 = vmatpush1.msra.mxu0 %v212
  %2201 = vmatprep.subr.mxu0 %v209
  %2202 = vmatpush1.msra.mxu0 %v208
  %2203 = vmatprep.subr.mxu0 %v205
  %2204 = vmatpush1.msra.mxu0 %v204
  %2205 = vmatprep.subr.mxu0 %v201
  %2206 = vmatpush1.msra.mxu0 %v200
  %2207 = vmatprep.subr.mxu0 %v197
  %2208 = vmatpush1.msra.mxu0 %v196
  %2209 = vmatprep.subr.mxu0 %v321
  %2210 = vmatpush2.msra.mxu0 %v320
  %2211 = vmatprep.subr.mxu0 %v317
  %2212 = vmatpush2.msra.mxu0 %v316
  %2213 = vmatprep.subr.mxu0 %v313
  %2214 = vmatpush2.msra.mxu0 %v312
  %2215 = vmatprep.subr.mxu0 %v309
  %2216 = vmatpush2.msra.mxu0 %v308
  %2217 = vmatprep.subr.mxu0 %v305
  %2218 = vmatpush2.msra.mxu0 %v304
  %2219 = vmatprep.subr.mxu0 %v301
  %2220 = vmatpush2.msra.mxu0 %v300
  %2221 = vmatprep.subr.mxu0 %v297
  %2222 = vmatpush2.msra.mxu0 %v296
  %2223 = vmatprep.subr.mxu0 %v293
  %2224 = vmatpush2.msra.mxu0 %v292
  %2225 = vmatprep.subr.mxu0 %v289
  %2226 = vmatpush2.msra.mxu0 %v288
  %2227 = vmatprep.subr.mxu0 %v285
  %2228 = vmatpush2.msra.mxu0 %v284
  %2229 = vmatprep.subr.mxu0 %v281
  %2230 = vmatpush2.msra.mxu0 %v280
  %2231 = vmatprep.subr.mxu0 %v277
  %2232 = vmatpush2.msra.mxu0 %v276
  %2233 = vmatprep.subr.mxu0 %v273
  %2234 = vmatpush2.msra.mxu0 %v272
  %2235 = vmatprep.subr.mxu0 %v269
  %2236 = vmatpush2.msra.mxu0 %v268
  %2237 = vmatprep.subr.mxu0 %v265
  %2238 = vmatpush2.msra.mxu0 %v264
  %2239 = vmatprep.subr.mxu0 %v261
  %2240 = vmatpush2.msra.mxu0 %v260
  %2241 = vmatprep.mubr.f32.mxu0 %v1813
  %2242 = vmatmul.mubr.f32.gmra.mxu0 %v1812
  %v2243 = vpop.f32.mrf.mxu0
  %v2244 = vadd.f32 %v2173, %v2243
  %v2245 = vpop.f32.mrf.mxu0
  %v2246 = vadd.f32 %v2175, %v2245
  %2247 = vdwg.mxu0
  %2248 = vmatprep.subr.mxu0 %v385
  %2249 = vmatpush1.msra.mxu0 %v384
  %2250 = vmatprep.subr.mxu0 %v381
  %2251 = vmatpush1.msra.mxu0 %v380
  %2252 = vmatprep.subr.mxu0 %v377
  %2253 = vmatpush1.msra.mxu0 %v376
  %2254 = vmatprep.subr.mxu0 %v373
  %2255 = vmatpush1.msra.mxu0 %v372
  %2256 = vmatprep.subr.mxu0 %v369
  %2257 = vmatpush1.msra.mxu0 %v368
  %2258 = vmatprep.subr.mxu0 %v365
  %2259 = vmatpush1.msra.mxu0 %v364
  %2260 = vmatprep.subr.mxu0 %v361
  %2261 = vmatpush1.msra.mxu0 %v360
  %2262 = vmatprep.subr.mxu0 %v357
  %2263 = vmatpush1.msra.mxu0 %v356
  %2264 = vmatprep.subr.mxu0 %v353
  %2265 = vmatpush1.msra.mxu0 %v352
  %2266 = vmatprep.subr.mxu0 %v349
  %2267 = vmatpush1.msra.mxu0 %v348
  %2268 = vmatprep.subr.mxu0 %v345
  %2269 = vmatpush1.msra.mxu0 %v344
  %2270 = vmatprep.subr.mxu0 %v341
  %2271 = vmatpush1.msra.mxu0 %v340
  %2272 = vmatprep.subr.mxu0 %v337
  %2273 = vmatpush1.msra.mxu0 %v336
  %2274 = vmatprep.subr.mxu0 %v333
  %2275 = vmatpush1.msra.mxu0 %v332
  %2276 = vmatprep.subr.mxu0 %v329
  %2277 = vmatpush1.msra.mxu0 %v328
  %2278 = vmatprep.subr.mxu0 %v325
  %2279 = vmatpush1.msra.mxu0 %v324
  %2280 = vmatprep.subr.mxu0 %v449
  %2281 = vmatpush2.msra.mxu0 %v448
  %2282 = vmatprep.subr.mxu0 %v445
  %2283 = vmatpush2.msra.mxu0 %v444
  %2284 = vmatprep.subr.mxu0 %v441
  %2285 = vmatpush2.msra.mxu0 %v440
  %2286 = vmatprep.subr.mxu0 %v437
  %2287 = vmatpush2.msra.mxu0 %v436
  %2288 = vmatprep.subr.mxu0 %v433
  %2289 = vmatpush2.msra.mxu0 %v432
  %2290 = vmatprep.subr.mxu0 %v429
  %2291 = vmatpush2.msra.mxu0 %v428
  %2292 = vmatprep.subr.mxu0 %v425
  %2293 = vmatpush2.msra.mxu0 %v424
  %2294 = vmatprep.subr.mxu0 %v421
  %2295 = vmatpush2.msra.mxu0 %v420
  %2296 = vmatprep.subr.mxu0 %v417
  %2297 = vmatpush2.msra.mxu0 %v416
  %2298 = vmatprep.subr.mxu0 %v413
  %2299 = vmatpush2.msra.mxu0 %v412
  %2300 = vmatprep.subr.mxu0 %v409
  %2301 = vmatpush2.msra.mxu0 %v408
  %2302 = vmatprep.subr.mxu0 %v405
  %2303 = vmatpush2.msra.mxu0 %v404
  %2304 = vmatprep.subr.mxu0 %v401
  %2305 = vmatpush2.msra.mxu0 %v400
  %2306 = vmatprep.subr.mxu0 %v397
  %2307 = vmatpush2.msra.mxu0 %v396
  %2308 = vmatprep.subr.mxu0 %v393
  %2309 = vmatpush2.msra.mxu0 %v392
  %2310 = vmatprep.subr.mxu0 %v389
  %2311 = vmatpush2.msra.mxu0 %v388
  %2312 = vmatprep.mubr.f32.mxu0 %v1815
  %2313 = vmatmul.mubr.f32.gmra.mxu0 %v1814
  %v2314 = vpop.f32.mrf.mxu0
  %v2315 = vadd.f32 %v2244, %v2314
  %v2316 = vpop.f32.mrf.mxu0
  %v2317 = vadd.f32 %v2246, %v2316
  %2318 = vdwg.mxu0
  %2319 = vmatprep.subr.mxu0 %v513
  %2320 = vmatpush1.msra.mxu0 %v512
  %2321 = vmatprep.subr.mxu0 %v509
  %2322 = vmatpush1.msra.mxu0 %v508
  %2323 = vmatprep.subr.mxu0 %v505
  %2324 = vmatpush1.msra.mxu0 %v504
  %2325 = vmatprep.subr.mxu0 %v501
  %2326 = vmatpush1.msra.mxu0 %v500
  %2327 = vmatprep.subr.mxu0 %v497
  %2328 = vmatpush1.msra.mxu0 %v496
  %2329 = vmatprep.subr.mxu0 %v493
  %2330 = vmatpush1.msra.mxu0 %v492
  %2331 = vmatprep.subr.mxu0 %v489
  %2332 = vmatpush1.msra.mxu0 %v488
  %2333 = vmatprep.subr.mxu0 %v485
  %2334 = vmatpush1.msra.mxu0 %v484
  %2335 = vmatprep.subr.mxu0 %v481
  %2336 = vmatpush1.msra.mxu0 %v480
  %2337 = vmatprep.subr.mxu0 %v477
  %2338 = vmatpush1.msra.mxu0 %v476
  %2339 = vmatprep.subr.mxu0 %v473
  %2340 = vmatpush1.msra.mxu0 %v472
  %2341 = vmatprep.subr.mxu0 %v469
  %2342 = vmatpush1.msra.mxu0 %v468
  %2343 = vmatprep.subr.mxu0 %v465
  %2344 = vmatpush1.msra.mxu0 %v464
  %2345 = vmatprep.subr.mxu0 %v461
  %2346 = vmatpush1.msra.mxu0 %v460
  %2347 = vmatprep.subr.mxu0 %v457
  %2348 = vmatpush1.msra.mxu0 %v456
  %2349 = vmatprep.subr.mxu0 %v453
  %2350 = vmatpush1.msra.mxu0 %v452
  %2351 = vmatprep.subr.mxu0 0.0
  %2352 = vmatpush2.msra.mxu0 0.0
  %2353 = vmatprep.subr.mxu0 0.0
  %2354 = vmatpush2.msra.mxu0 0.0
  %2355 = vmatprep.subr.mxu0 0.0
  %2356 = vmatpush2.msra.mxu0 0.0
  %2357 = vmatprep.subr.mxu0 0.0
  %2358 = vmatpush2.msra.mxu0 0.0
  %2359 = vmatprep.subr.mxu0 0.0
  %2360 = vmatpush2.msra.mxu0 0.0
  %2361 = vmatprep.subr.mxu0 0.0
  %2362 = vmatpush2.msra.mxu0 0.0
  %2363 = vmatprep.subr.mxu0 0.0
  %2364 = vmatpush2.msra.mxu0 0.0
  %2365 = vmatprep.subr.mxu0 0.0
  %2366 = vmatpush2.msra.mxu0 0.0
  %2367 = vmatprep.subr.mxu0 0.0
  %2368 = vmatpush2.msra.mxu0 0.0
  %2369 = vmatprep.subr.mxu0 0.0
  %2370 = vmatpush2.msra.mxu0 0.0
  %2371 = vmatprep.subr.mxu0 0.0
  %2372 = vmatpush2.msra.mxu0 0.0
  %2373 = vmatprep.subr.mxu0 0.0
  %2374 = vmatpush2.msra.mxu0 0.0
  %2375 = vmatprep.subr.mxu0 0.0
  %2376 = vmatpush2.msra.mxu0 0.0
  %2377 = vmatprep.subr.mxu0 0.0
  %2378 = vmatpush2.msra.mxu0 0.0
  %2379 = vmatprep.subr.mxu0 0.0
  %2380 = vmatpush2.msra.mxu0 0.0
  %2381 = vmatprep.subr.mxu0 0.0
  %2382 = vmatpush2.msra.mxu0 0.0
  %2383 = vmatprep.mubr.f32.mxu0 0.0
  %2384 = vmatmul.mubr.f32.gmra.mxu0 %v1816
  %v2385 = vpop.f32.mrf.mxu0
  %v2386 = vadd.f32 %v2315, %v2385
  %v2387 = vpop.f32.mrf.mxu0
  %v2388 = vadd.f32 %v2317, %v2387
  %2389 = vdwg.mxu0
  %v2390 = vxor.u32 %v2102, 2147483648
  %v2391 = vxor.u32 %v2104, 2147483648
  %v2392 = vxor.u32 %v2386, 2147483648
  %v2393 = vxor.u32 %v2388, 2147483648
  %v2394 = vmul.f32 %v2390, 1.442695
  %v2395 = vpow.pop %v2394
  %v2396 = vmul.f32 %v2391, 1.442695
  %v2397 = vpow.pop %v2396
  %v2398 = vmul.f32 %v2392, 1.442695
  %v2399 = vpow.pop %v2398
  %v2400 = vmul.f32 %v2393, 1.442695
  %v2401 = vpow.pop %v2400
  %v2402 = vadd.f32 %v2395, 1.0
  %v2403 = vadd.f32 %v2397, 1.0
  %v2404 = vadd.f32 %v2399, 1.0
  %v2405 = vadd.f32 %v2401, 1.0
  %v2406 = vrcp.pop %v2402
  %v2407 = vmul.f32 1.0, %v2406
  %v2408 = vrcp.pop %v2403
  %v2409 = vmul.f32 1.0, %v2408
  %v2410 = vrcp.pop %v2404
  %v2411 = vmul.f32 1.0, %v2410
  %v2412 = vrcp.pop %v2405
  %v2413 = vmul.f32 1.0, %v2412
  %vm2414 = vcmp.lt.f32.partialorder %v1818, %v2407
  %vm2415 = vcmp.lt.f32.partialorder %v1819, %v2409
  %vm2416 = vcmp.lt.f32.partialorder %v1820, %v2411
  %vm2417 = vcmp.lt.f32.partialorder %v1821, %v2413
  %v2418 = vsel %vm2414, 1, 0
  %v2419 = vsel %vm2415, 1, 0
  %v2420 = vsel %vm2416, 1, 0
  %v2421 = vsel %vm2417, 1, 0
  %v2422 = vcvt.s32.f32 %v2418
  %v2423 = vcvt.s32.f32 %v2419
  %v2424 = vcvt.s32.f32 %v2420
  %v2425 = vcvt.s32.f32 %v2421
  %s2426 = scalar_lea.vmem %s13, 56
  %v2427 = vld [vmem:[%s2426] sm:$0xff]
  %v2428 = vld [vmem:[%s2426 + $0x8] sm:$0xff]
  %v2429 = vld [vmem:[%s2426 + $0x10] sm:$0xff]
  %v2430 = vld [vmem:[%s2426 + $0x18] sm:$0xff]
  %v2431 = vld [vmem:[%s2426 + $0x20] sm:$0xff]
  %v2432 = vld [vmem:[%s2426 + $0x28] sm:$0xff]
  %v2433 = vld [vmem:[%s2426 + $0x30] sm:$0xff]
  %2434 = vmatprep.subr.mxu0 %v127
  %2435 = vmatpush1.xpose.msra.mxu0 %v126
  %2436 = vmatprep.subr.mxu0 %v123
  %2437 = vmatpush1.xpose.msra.mxu0 %v122
  %2438 = vmatprep.subr.mxu0 %v119
  %2439 = vmatpush1.xpose.msra.mxu0 %v118
  %2440 = vmatprep.subr.mxu0 %v115
  %2441 = vmatpush1.xpose.msra.mxu0 %v114
  %2442 = vmatprep.subr.mxu0 %v111
  %2443 = vmatpush1.xpose.msra.mxu0 %v110
  %2444 = vmatprep.subr.mxu0 %v107
  %2445 = vmatpush1.xpose.msra.mxu0 %v106
  %2446 = vmatprep.subr.mxu0 %v103
  %2447 = vmatpush1.xpose.msra.mxu0 %v102
  %2448 = vmatprep.subr.mxu0 %v99
  %2449 = vmatpush1.xpose.msra.mxu0 %v98
  %2450 = vmatprep.subr.mxu0 %v95
  %2451 = vmatpush1.xpose.msra.mxu0 %v94
  %2452 = vmatprep.subr.mxu0 %v91
  %2453 = vmatpush1.xpose.msra.mxu0 %v90
  %2454 = vmatprep.subr.mxu0 %v87
  %2455 = vmatpush1.xpose.msra.mxu0 %v86
  %2456 = vmatprep.subr.mxu0 %v83
  %2457 = vmatpush1.xpose.msra.mxu0 %v82
  %2458 = vmatprep.subr.mxu0 %v79
  %2459 = vmatpush1.xpose.msra.mxu0 %v78
  %2460 = vmatprep.subr.mxu0 %v75
  %2461 = vmatpush1.xpose.msra.mxu0 %v74
  %2462 = vmatprep.subr.mxu0 %v71
  %2463 = vmatpush1.xpose.msra.mxu0 %v70
  %2464 = vmatprep.subr.mxu0 %v67
  %2465 = vmatpush1.xpose.msra.mxu0 %v66
  %2466 = vmatprep.subr.mxu0 %v191
  %2467 = vmatpush2.xpose.msra.mxu0 %v190
  %2468 = vmatprep.subr.mxu0 %v187
  %2469 = vmatpush2.xpose.msra.mxu0 %v186
  %2470 = vmatprep.subr.mxu0 %v183
  %2471 = vmatpush2.xpose.msra.mxu0 %v182
  %2472 = vmatprep.subr.mxu0 %v179
  %2473 = vmatpush2.xpose.msra.mxu0 %v178
  %2474 = vmatprep.subr.mxu0 %v175
  %2475 = vmatpush2.xpose.msra.mxu0 %v174
  %2476 = vmatprep.subr.mxu0 %v171
  %2477 = vmatpush2.xpose.msra.mxu0 %v170
  %2478 = vmatprep.subr.mxu0 %v167
  %2479 = vmatpush2.xpose.msra.mxu0 %v166
  %2480 = vmatprep.subr.mxu0 %v163
  %2481 = vmatpush2.xpose.msra.mxu0 %v162
  %2482 = vmatprep.subr.mxu0 %v159
  %2483 = vmatpush2.xpose.msra.mxu0 %v158
  %2484 = vmatprep.subr.mxu0 %v155
  %2485 = vmatpush2.xpose.msra.mxu0 %v154
  %2486 = vmatprep.subr.mxu0 %v151
  %2487 = vmatpush2.xpose.msra.mxu0 %v150
  %2488 = vmatprep.subr.mxu0 %v147
  %2489 = vmatpush2.xpose.msra.mxu0 %v146
  %2490 = vmatprep.subr.mxu0 %v143
  %2491 = vmatpush2.xpose.msra.mxu0 %v142
  %2492 = vmatprep.subr.mxu0 %v139
  %2493 = vmatpush2.xpose.msra.mxu0 %v138
  %2494 = vmatprep.subr.mxu0 %v135
  %2495 = vmatpush2.xpose.msra.mxu0 %v134
  %2496 = vmatprep.subr.mxu0 %v131
  %2497 = vmatpush2.xpose.msra.mxu0 %v130
  %2498 = vmatprep.mubr.f32.mxu0 %v2423
  %2499 = vmatmul.mubr.f32.gmra.mxu0 %v2422
  %v2500 = vpop.f32.mrf.mxu0
  %v2501 = vadd.f32 %v1156, %v2500
  %v2502 = vpop.f32.mrf.mxu0
  %v2503 = vadd.f32 %v1160, %v2502
  %2504 = vdwg.mxu0
  %2505 = vmatprep.subr.mxu0 %v129
  %2506 = vmatpush1.xpose.msra.mxu0 %v128
  %2507 = vmatprep.subr.mxu0 %v125
  %2508 = vmatpush1.xpose.msra.mxu0 %v124
  %2509 = vmatprep.subr.mxu0 %v121
  %2510 = vmatpush1.xpose.msra.mxu0 %v120
  %2511 = vmatprep.subr.mxu0 %v117
  %2512 = vmatpush1.xpose.msra.mxu0 %v116
  %2513 = vmatprep.subr.mxu0 %v113
  %2514 = vmatpush1.xpose.msra.mxu0 %v112
  %2515 = vmatprep.subr.mxu0 %v109
  %2516 = vmatpush1.xpose.msra.mxu0 %v108
  %2517 = vmatprep.subr.mxu0 %v105
  %2518 = vmatpush1.xpose.msra.mxu0 %v104
  %2519 = vmatprep.subr.mxu0 %v101
  %2520 = vmatpush1.xpose.msra.mxu0 %v100
  %2521 = vmatprep.subr.mxu0 %v97
  %2522 = vmatpush1.xpose.msra.mxu0 %v96
  %2523 = vmatprep.subr.mxu0 %v93
  %2524 = vmatpush1.xpose.msra.mxu0 %v92
  %2525 = vmatprep.subr.mxu0 %v89
  %2526 = vmatpush1.xpose.msra.mxu0 %v88
  %2527 = vmatprep.subr.mxu0 %v85
  %2528 = vmatpush1.xpose.msra.mxu0 %v84
  %2529 = vmatprep.subr.mxu0 %v81
  %2530 = vmatpush1.xpose.msra.mxu0 %v80
  %2531 = vmatprep.subr.mxu0 %v77
  %2532 = vmatpush1.xpose.msra.mxu0 %v76
  %2533 = vmatprep.subr.mxu0 %v73
  %2534 = vmatpush1.xpose.msra.mxu0 %v72
  %2535 = vmatprep.subr.mxu0 %v69
  %2536 = vmatpush1.xpose.msra.mxu0 %v68
  %2537 = vmatprep.subr.mxu0 %v193
  %2538 = vmatpush2.xpose.msra.mxu0 %v192
  %2539 = vmatprep.subr.mxu0 %v189
  %2540 = vmatpush2.xpose.msra.mxu0 %v188
  %2541 = vmatprep.subr.mxu0 %v185
  %2542 = vmatpush2.xpose.msra.mxu0 %v184
  %2543 = vmatprep.subr.mxu0 %v181
  %2544 = vmatpush2.xpose.msra.mxu0 %v180
  %2545 = vmatprep.subr.mxu0 %v177
  %2546 = vmatpush2.xpose.msra.mxu0 %v176
  %2547 = vmatprep.subr.mxu0 %v173
  %2548 = vmatpush2.xpose.msra.mxu0 %v172
  %2549 = vmatprep.subr.mxu0 %v169
  %2550 = vmatpush2.xpose.msra.mxu0 %v168
  %2551 = vmatprep.subr.mxu0 %v165
  %2552 = vmatpush2.xpose.msra.mxu0 %v164
  %2553 = vmatprep.subr.mxu0 %v161
  %2554 = vmatpush2.xpose.msra.mxu0 %v160
  %2555 = vmatprep.subr.mxu0 %v157
  %2556 = vmatpush2.xpose.msra.mxu0 %v156
  %2557 = vmatprep.subr.mxu0 %v153
  %2558 = vmatpush2.xpose.msra.mxu0 %v152
  %2559 = vmatprep.subr.mxu0 %v149
  %2560 = vmatpush2.xpose.msra.mxu0 %v148
  %2561 = vmatprep.subr.mxu0 %v145
  %2562 = vmatpush2.xpose.msra.mxu0 %v144
  %2563 = vmatprep.subr.mxu0 %v141
  %2564 = vmatpush2.xpose.msra.mxu0 %v140
  %2565 = vmatprep.subr.mxu0 %v137
  %2566 = vmatpush2.xpose.msra.mxu0 %v136
  %2567 = vmatprep.subr.mxu0 %v133
  %2568 = vmatpush2.xpose.msra.mxu0 %v132
  %2569 = vmatprep.mubr.f32.mxu0 %v2425
  %2570 = vmatmul.mubr.f32.gmra.mxu0 %v2424
  %v2571 = vpop.f32.mrf.mxu0
  %v2572 = vadd.f32 %v2501, %v2571
  %v2573 = vpop.f32.mrf.mxu0
  %v2574 = vadd.f32 %v2503, %v2573
  %2575 = vdwg.mxu0
  %2576 = vmatprep.subr.mxu0 %v255
  %2577 = vmatpush1.xpose.msra.mxu0 %v254
  %2578 = vmatprep.subr.mxu0 %v251
  %2579 = vmatpush1.xpose.msra.mxu0 %v250
  %2580 = vmatprep.subr.mxu0 %v247
  %2581 = vmatpush1.xpose.msra.mxu0 %v246
  %2582 = vmatprep.subr.mxu0 %v243
  %2583 = vmatpush1.xpose.msra.mxu0 %v242
  %2584 = vmatprep.subr.mxu0 %v239
  %2585 = vmatpush1.xpose.msra.mxu0 %v238
  %2586 = vmatprep.subr.mxu0 %v235
  %2587 = vmatpush1.xpose.msra.mxu0 %v234
  %2588 = vmatprep.subr.mxu0 %v231
  %2589 = vmatpush1.xpose.msra.mxu0 %v230
  %2590 = vmatprep.subr.mxu0 %v227
  %2591 = vmatpush1.xpose.msra.mxu0 %v226
  %2592 = vmatprep.subr.mxu0 %v223
  %2593 = vmatpush1.xpose.msra.mxu0 %v222
  %2594 = vmatprep.subr.mxu0 %v219
  %2595 = vmatpush1.xpose.msra.mxu0 %v218
  %2596 = vmatprep.subr.mxu0 %v215
  %2597 = vmatpush1.xpose.msra.mxu0 %v214
  %2598 = vmatprep.subr.mxu0 %v211
  %2599 = vmatpush1.xpose.msra.mxu0 %v210
  %2600 = vmatprep.subr.mxu0 %v207
  %2601 = vmatpush1.xpose.msra.mxu0 %v206
  %2602 = vmatprep.subr.mxu0 %v203
  %2603 = vmatpush1.xpose.msra.mxu0 %v202
  %2604 = vmatprep.subr.mxu0 %v199
  %2605 = vmatpush1.xpose.msra.mxu0 %v198
  %2606 = vmatprep.subr.mxu0 %v195
  %2607 = vmatpush1.xpose.msra.mxu0 %v194
  %2608 = vmatprep.subr.mxu0 %v319
  %2609 = vmatpush2.xpose.msra.mxu0 %v318
  %2610 = vmatprep.subr.mxu0 %v315
  %2611 = vmatpush2.xpose.msra.mxu0 %v314
  %2612 = vmatprep.subr.mxu0 %v311
  %2613 = vmatpush2.xpose.msra.mxu0 %v310
  %2614 = vmatprep.subr.mxu0 %v307
  %2615 = vmatpush2.xpose.msra.mxu0 %v306
  %2616 = vmatprep.subr.mxu0 %v303
  %2617 = vmatpush2.xpose.msra.mxu0 %v302
  %2618 = vmatprep.subr.mxu0 %v299
  %2619 = vmatpush2.xpose.msra.mxu0 %v298
  %2620 = vmatprep.subr.mxu0 %v295
  %2621 = vmatpush2.xpose.msra.mxu0 %v294
  %2622 = vmatprep.subr.mxu0 %v291
  %2623 = vmatpush2.xpose.msra.mxu0 %v290
  %2624 = vmatprep.subr.mxu0 %v287
  %2625 = vmatpush2.xpose.msra.mxu0 %v286
  %2626 = vmatprep.subr.mxu0 %v283
  %2627 = vmatpush2.xpose.msra.mxu0 %v282
  %2628 = vmatprep.subr.mxu0 %v279
  %2629 = vmatpush2.xpose.msra.mxu0 %v278
  %2630 = vmatprep.subr.mxu0 %v275
  %2631 = vmatpush2.xpose.msra.mxu0 %v274
  %2632 = vmatprep.subr.mxu0 %v271
  %2633 = vmatpush2.xpose.msra.mxu0 %v270
  %2634 = vmatprep.subr.mxu0 %v267
  %2635 = vmatpush2.xpose.msra.mxu0 %v266
  %2636 = vmatprep.subr.mxu0 %v263
  %2637 = vmatpush2.xpose.msra.mxu0 %v262
  %2638 = vmatprep.subr.mxu0 %v259
  %2639 = vmatpush2.xpose.msra.mxu0 %v258
  %2640 = vmatprep.mubr.f32.mxu0 %v2423
  %2641 = vmatmul.mubr.f32.gmra.mxu0 %v2422
  %v2642 = vpop.f32.mrf.mxu0
  %v2643 = vadd.f32 %v1164, %v2642
  %v2644 = vpop.f32.mrf.mxu0
  %v2645 = vadd.f32 %v1168, %v2644
  %2646 = vdwg.mxu0
  %2647 = vmatprep.subr.mxu0 %v257
  %2648 = vmatpush1.xpose.msra.mxu0 %v256
  %2649 = vmatprep.subr.mxu0 %v253
  %2650 = vmatpush1.xpose.msra.mxu0 %v252
  %2651 = vmatprep.subr.mxu0 %v249
  %2652 = vmatpush1.xpose.msra.mxu0 %v248
  %2653 = vmatprep.subr.mxu0 %v245
  %2654 = vmatpush1.xpose.msra.mxu0 %v244
  %2655 = vmatprep.subr.mxu0 %v241
  %2656 = vmatpush1.xpose.msra.mxu0 %v240
  %2657 = vmatprep.subr.mxu0 %v237
  %2658 = vmatpush1.xpose.msra.mxu0 %v236
  %2659 = vmatprep.subr.mxu0 %v233
  %2660 = vmatpush1.xpose.msra.mxu0 %v232
  %2661 = vmatprep.subr.mxu0 %v229
  %2662 = vmatpush1.xpose.msra.mxu0 %v228
  %2663 = vmatprep.subr.mxu0 %v225
  %2664 = vmatpush1.xpose.msra.mxu0 %v224
  %2665 = vmatprep.subr.mxu0 %v221
  %2666 = vmatpush1.xpose.msra.mxu0 %v220
  %2667 = vmatprep.subr.mxu0 %v217
  %2668 = vmatpush1.xpose.msra.mxu0 %v216
  %2669 = vmatprep.subr.mxu0 %v213
  %2670 = vmatpush1.xpose.msra.mxu0 %v212
  %2671 = vmatprep.subr.mxu0 %v209
  %2672 = vmatpush1.xpose.msra.mxu0 %v208
  %2673 = vmatprep.subr.mxu0 %v205
  %2674 = vmatpush1.xpose.msra.mxu0 %v204
  %2675 = vmatprep.subr.mxu0 %v201
  %2676 = vmatpush1.xpose.msra.mxu0 %v200
  %2677 = vmatprep.subr.mxu0 %v197
  %2678 = vmatpush1.xpose.msra.mxu0 %v196
  %2679 = vmatprep.subr.mxu0 %v321
  %2680 = vmatpush2.xpose.msra.mxu0 %v320
  %2681 = vmatprep.subr.mxu0 %v317
  %2682 = vmatpush2.xpose.msra.mxu0 %v316
  %2683 = vmatprep.subr.mxu0 %v313
  %2684 = vmatpush2.xpose.msra.mxu0 %v312
  %2685 = vmatprep.subr.mxu0 %v309
  %2686 = vmatpush2.xpose.msra.mxu0 %v308
  %2687 = vmatprep.subr.mxu0 %v305
  %2688 = vmatpush2.xpose.msra.mxu0 %v304
  %2689 = vmatprep.subr.mxu0 %v301
  %2690 = vmatpush2.xpose.msra.mxu0 %v300
  %2691 = vmatprep.subr.mxu0 %v297
  %2692 = vmatpush2.xpose.msra.mxu0 %v296
  %2693 = vmatprep.subr.mxu0 %v293
  %2694 = vmatpush2.xpose.msra.mxu0 %v292
  %2695 = vmatprep.subr.mxu0 %v289
  %2696 = vmatpush2.xpose.msra.mxu0 %v288
  %2697 = vmatprep.subr.mxu0 %v285
  %2698 = vmatpush2.xpose.msra.mxu0 %v284
  %2699 = vmatprep.subr.mxu0 %v281
  %2700 = vmatpush2.xpose.msra.mxu0 %v280
  %2701 = vmatprep.subr.mxu0 %v277
  %2702 = vmatpush2.xpose.msra.mxu0 %v276
  %2703 = vmatprep.subr.mxu0 %v273
  %2704 = vmatpush2.xpose.msra.mxu0 %v272
  %2705 = vmatprep.subr.mxu0 %v269
  %2706 = vmatpush2.xpose.msra.mxu0 %v268
  %2707 = vmatprep.subr.mxu0 %v265
  %2708 = vmatpush2.xpose.msra.mxu0 %v264
  %2709 = vmatprep.subr.mxu0 %v261
  %2710 = vmatpush2.xpose.msra.mxu0 %v260
  %2711 = vmatprep.mubr.f32.mxu0 %v2425
  %2712 = vmatmul.mubr.f32.gmra.mxu0 %v2424
  %v2713 = vpop.f32.mrf.mxu0
  %v2714 = vadd.f32 %v2643, %v2713
  %v2715 = vpop.f32.mrf.mxu0
  %v2716 = vadd.f32 %v2645, %v2715
  %2717 = vdwg.mxu0
  %2718 = vmatprep.subr.mxu0 %v383
  %2719 = vmatpush1.xpose.msra.mxu0 %v382
  %2720 = vmatprep.subr.mxu0 %v379
  %2721 = vmatpush1.xpose.msra.mxu0 %v378
  %2722 = vmatprep.subr.mxu0 %v375
  %2723 = vmatpush1.xpose.msra.mxu0 %v374
  %2724 = vmatprep.subr.mxu0 %v371
  %2725 = vmatpush1.xpose.msra.mxu0 %v370
  %2726 = vmatprep.subr.mxu0 %v367
  %2727 = vmatpush1.xpose.msra.mxu0 %v366
  %2728 = vmatprep.subr.mxu0 %v363
  %2729 = vmatpush1.xpose.msra.mxu0 %v362
  %2730 = vmatprep.subr.mxu0 %v359
  %2731 = vmatpush1.xpose.msra.mxu0 %v358
  %2732 = vmatprep.subr.mxu0 %v355
  %2733 = vmatpush1.xpose.msra.mxu0 %v354
  %2734 = vmatprep.subr.mxu0 %v351
  %2735 = vmatpush1.xpose.msra.mxu0 %v350
  %2736 = vmatprep.subr.mxu0 %v347
  %2737 = vmatpush1.xpose.msra.mxu0 %v346
  %2738 = vmatprep.subr.mxu0 %v343
  %2739 = vmatpush1.xpose.msra.mxu0 %v342
  %2740 = vmatprep.subr.mxu0 %v339
  %2741 = vmatpush1.xpose.msra.mxu0 %v338
  %2742 = vmatprep.subr.mxu0 %v335
  %2743 = vmatpush1.xpose.msra.mxu0 %v334
  %2744 = vmatprep.subr.mxu0 %v331
  %2745 = vmatpush1.xpose.msra.mxu0 %v330
  %2746 = vmatprep.subr.mxu0 %v327
  %2747 = vmatpush1.xpose.msra.mxu0 %v326
  %2748 = vmatprep.subr.mxu0 %v323
  %2749 = vmatpush1.xpose.msra.mxu0 %v322
  %2750 = vmatprep.subr.mxu0 %v447
  %2751 = vmatpush2.xpose.msra.mxu0 %v446
  %2752 = vmatprep.subr.mxu0 %v443
  %2753 = vmatpush2.xpose.msra.mxu0 %v442
  %2754 = vmatprep.subr.mxu0 %v439
  %2755 = vmatpush2.xpose.msra.mxu0 %v438
  %2756 = vmatprep.subr.mxu0 %v435
  %2757 = vmatpush2.xpose.msra.mxu0 %v434
  %2758 = vmatprep.subr.mxu0 %v431
  %2759 = vmatpush2.xpose.msra.mxu0 %v430
  %2760 = vmatprep.subr.mxu0 %v427
  %2761 = vmatpush2.xpose.msra.mxu0 %v426
  %2762 = vmatprep.subr.mxu0 %v423
  %2763 = vmatpush2.xpose.msra.mxu0 %v422
  %2764 = vmatprep.subr.mxu0 %v419
  %2765 = vmatpush2.xpose.msra.mxu0 %v418
  %2766 = vmatprep.subr.mxu0 %v415
  %2767 = vmatpush2.xpose.msra.mxu0 %v414
  %2768 = vmatprep.subr.mxu0 %v411
  %2769 = vmatpush2.xpose.msra.mxu0 %v410
  %2770 = vmatprep.subr.mxu0 %v407
  %2771 = vmatpush2.xpose.msra.mxu0 %v406
  %2772 = vmatprep.subr.mxu0 %v403
  %2773 = vmatpush2.xpose.msra.mxu0 %v402
  %2774 = vmatprep.subr.mxu0 %v399
  %2775 = vmatpush2.xpose.msra.mxu0 %v398
  %2776 = vmatprep.subr.mxu0 %v395
  %2777 = vmatpush2.xpose.msra.mxu0 %v394
  %2778 = vmatprep.subr.mxu0 %v391
  %2779 = vmatpush2.xpose.msra.mxu0 %v390
  %2780 = vmatprep.subr.mxu0 %v387
  %2781 = vmatpush2.xpose.msra.mxu0 %v386
  %2782 = vmatprep.mubr.f32.mxu0 %v2423
  %2783 = vmatmul.mubr.f32.gmra.mxu0 %v2422
  %v2784 = vpop.f32.mrf.mxu0
  %v2785 = vadd.f32 %v1172, %v2784
  %v2786 = vpop.f32.mrf.mxu0
  %v2787 = vadd.f32 %v1176, %v2786
  %2788 = vdwg.mxu0
  %2789 = vmatprep.subr.mxu0 %v385
  %2790 = vmatpush1.xpose.msra.mxu0 %v384
  %2791 = vmatprep.subr.mxu0 %v381
  %2792 = vmatpush1.xpose.msra.mxu0 %v380
  %2793 = vmatprep.subr.mxu0 %v377
  %2794 = vmatpush1.xpose.msra.mxu0 %v376
  %2795 = vmatprep.subr.mxu0 %v373
  %2796 = vmatpush1.xpose.msra.mxu0 %v372
  %2797 = vmatprep.subr.mxu0 %v369
  %2798 = vmatpush1.xpose.msra.mxu0 %v368
  %2799 = vmatprep.subr.mxu0 %v365
  %2800 = vmatpush1.xpose.msra.mxu0 %v364
  %2801 = vmatprep.subr.mxu0 %v361
  %2802 = vmatpush1.xpose.msra.mxu0 %v360
  %2803 = vmatprep.subr.mxu0 %v357
  %2804 = vmatpush1.xpose.msra.mxu0 %v356
  %2805 = vmatprep.subr.mxu0 %v353
  %2806 = vmatpush1.xpose.msra.mxu0 %v352
  %2807 = vmatprep.subr.mxu0 %v349
  %2808 = vmatpush1.xpose.msra.mxu0 %v348
  %2809 = vmatprep.subr.mxu0 %v345
  %2810 = vmatpush1.xpose.msra.mxu0 %v344
  %2811 = vmatprep.subr.mxu0 %v341
  %2812 = vmatpush1.xpose.msra.mxu0 %v340
  %2813 = vmatprep.subr.mxu0 %v337
  %2814 = vmatpush1.xpose.msra.mxu0 %v336
  %2815 = vmatprep.subr.mxu0 %v333
  %2816 = vmatpush1.xpose.msra.mxu0 %v332
  %2817 = vmatprep.subr.mxu0 %v329
  %2818 = vmatpush1.xpose.msra.mxu0 %v328
  %2819 = vmatprep.subr.mxu0 %v325
  %2820 = vmatpush1.xpose.msra.mxu0 %v324
  %2821 = vmatprep.subr.mxu0 %v449
  %2822 = vmatpush2.xpose.msra.mxu0 %v448
  %2823 = vmatprep.subr.mxu0 %v445
  %2824 = vmatpush2.xpose.msra.mxu0 %v444
  %2825 = vmatprep.subr.mxu0 %v441
  %2826 = vmatpush2.xpose.msra.mxu0 %v440
  %2827 = vmatprep.subr.mxu0 %v437
  %2828 = vmatpush2.xpose.msra.mxu0 %v436
  %2829 = vmatprep.subr.mxu0 %v433
  %2830 = vmatpush2.xpose.msra.mxu0 %v432
  %2831 = vmatprep.subr.mxu0 %v429
  %2832 = vmatpush2.xpose.msra.mxu0 %v428
  %2833 = vmatprep.subr.mxu0 %v425
  %2834 = vmatpush2.xpose.msra.mxu0 %v424
  %2835 = vmatprep.subr.mxu0 %v421
  %2836 = vmatpush2.xpose.msra.mxu0 %v420
  %2837 = vmatprep.subr.mxu0 %v417
  %2838 = vmatpush2.xpose.msra.mxu0 %v416
  %2839 = vmatprep.subr.mxu0 %v413
  %2840 = vmatpush2.xpose.msra.mxu0 %v412
  %2841 = vmatprep.subr.mxu0 %v409
  %2842 = vmatpush2.xpose.msra.mxu0 %v408
  %2843 = vmatprep.subr.mxu0 %v405
  %2844 = vmatpush2.xpose.msra.mxu0 %v404
  %2845 = vmatprep.subr.mxu0 %v401
  %2846 = vmatpush2.xpose.msra.mxu0 %v400
  %2847 = vmatprep.subr.mxu0 %v397
  %2848 = vmatpush2.xpose.msra.mxu0 %v396
  %2849 = vmatprep.subr.mxu0 %v393
  %2850 = vmatpush2.xpose.msra.mxu0 %v392
  %2851 = vmatprep.subr.mxu0 %v389
  %2852 = vmatpush2.xpose.msra.mxu0 %v388
  %2853 = vmatprep.mubr.f32.mxu0 %v2425
  %2854 = vmatmul.mubr.f32.gmra.mxu0 %v2424
  %v2855 = vpop.f32.mrf.mxu0
  %v2856 = vadd.f32 %v2785, %v2855
  %v2857 = vpop.f32.mrf.mxu0
  %v2858 = vadd.f32 %v2787, %v2857
  %2859 = vdwg.mxu0
  %2860 = vmatprep.subr.mxu0 %v511
  %2861 = vmatpush1.xpose.msra.mxu0 %v510
  %2862 = vmatprep.subr.mxu0 %v507
  %2863 = vmatpush1.xpose.msra.mxu0 %v506
  %2864 = vmatprep.subr.mxu0 %v503
  %2865 = vmatpush1.xpose.msra.mxu0 %v502
  %2866 = vmatprep.subr.mxu0 %v499
  %2867 = vmatpush1.xpose.msra.mxu0 %v498
  %2868 = vmatprep.subr.mxu0 %v495
  %2869 = vmatpush1.xpose.msra.mxu0 %v494
  %2870 = vmatprep.subr.mxu0 %v491
  %2871 = vmatpush1.xpose.msra.mxu0 %v490
  %2872 = vmatprep.subr.mxu0 %v487
  %2873 = vmatpush1.xpose.msra.mxu0 %v486
  %2874 = vmatprep.subr.mxu0 %v483
  %2875 = vmatpush1.xpose.msra.mxu0 %v482
  %2876 = vmatprep.subr.mxu0 %v479
  %2877 = vmatpush1.xpose.msra.mxu0 %v478
  %2878 = vmatprep.subr.mxu0 %v475
  %2879 = vmatpush1.xpose.msra.mxu0 %v474
  %2880 = vmatprep.subr.mxu0 %v471
  %2881 = vmatpush1.xpose.msra.mxu0 %v470
  %2882 = vmatprep.subr.mxu0 %v467
  %2883 = vmatpush1.xpose.msra.mxu0 %v466
  %2884 = vmatprep.subr.mxu0 %v463
  %2885 = vmatpush1.xpose.msra.mxu0 %v462
  %2886 = vmatprep.subr.mxu0 %v459
  %2887 = vmatpush1.xpose.msra.mxu0 %v458
  %2888 = vmatprep.subr.mxu0 %v455
  %2889 = vmatpush1.xpose.msra.mxu0 %v454
  %2890 = vmatprep.subr.mxu0 %v451
  %2891 = vmatpush1.xpose.msra.mxu0 %v450
  %2892 = vmatprep.subr.mxu0 0.0
  %2893 = vmatpush2.xpose.msra.mxu0 0.0
  %2894 = vmatprep.subr.mxu0 0.0
  %2895 = vmatpush2.xpose.msra.mxu0 0.0
  %2896 = vmatprep.subr.mxu0 0.0
  %2897 = vmatpush2.xpose.msra.mxu0 0.0
  %2898 = vmatprep.subr.mxu0 0.0
  %2899 = vmatpush2.xpose.msra.mxu0 0.0
  %2900 = vmatprep.subr.mxu0 0.0
  %2901 = vmatpush2.xpose.msra.mxu0 0.0
  %2902 = vmatprep.subr.mxu0 0.0
  %2903 = vmatpush2.xpose.msra.mxu0 0.0
  %2904 = vmatprep.subr.mxu0 0.0
  %2905 = vmatpush2.xpose.msra.mxu0 0.0
  %2906 = vmatprep.subr.mxu0 0.0
  %2907 = vmatpush2.xpose.msra.mxu0 0.0
  %2908 = vmatprep.subr.mxu0 0.0
  %2909 = vmatpush2.xpose.msra.mxu0 0.0
  %2910 = vmatprep.subr.mxu0 0.0
  %2911 = vmatpush2.xpose.msra.mxu0 0.0
  %2912 = vmatprep.subr.mxu0 0.0
  %2913 = vmatpush2.xpose.msra.mxu0 0.0
  %2914 = vmatprep.subr.mxu0 0.0
  %2915 = vmatpush2.xpose.msra.mxu0 0.0
  %2916 = vmatprep.subr.mxu0 0.0
  %2917 = vmatpush2.xpose.msra.mxu0 0.0
  %2918 = vmatprep.subr.mxu0 0.0
  %2919 = vmatpush2.xpose.msra.mxu0 0.0
  %2920 = vmatprep.subr.mxu0 0.0
  %2921 = vmatpush2.xpose.msra.mxu0 0.0
  %2922 = vmatprep.subr.mxu0 0.0
  %2923 = vmatpush2.xpose.msra.mxu0 0.0
  %2924 = vmatprep.mubr.f32.mxu0 %v2423
  %2925 = vmatmul.mubr.f32.gmra.mxu0 %v2422
  %v2926 = vpop.f32.mrf.mxu0
  %v2927 = vadd.f32 %v1180, %v2926
  %v2928 = vpop.f32.mrf.mxu0
  %2929 = vdwg.mxu0
  %2930 = vmatprep.subr.mxu0 %v513
  %2931 = vmatpush1.xpose.msra.mxu0 %v512
  %2932 = vmatprep.subr.mxu0 %v509
  %2933 = vmatpush1.xpose.msra.mxu0 %v508
  %2934 = vmatprep.subr.mxu0 %v505
  %2935 = vmatpush1.xpose.msra.mxu0 %v504
  %2936 = vmatprep.subr.mxu0 %v501
  %2937 = vmatpush1.xpose.msra.mxu0 %v500
  %2938 = vmatprep.subr.mxu0 %v497
  %2939 = vmatpush1.xpose.msra.mxu0 %v496
  %2940 = vmatprep.subr.mxu0 %v493
  %2941 = vmatpush1.xpose.msra.mxu0 %v492
  %2942 = vmatprep.subr.mxu0 %v489
  %2943 = vmatpush1.xpose.msra.mxu0 %v488
  %2944 = vmatprep.subr.mxu0 %v485
  %2945 = vmatpush1.xpose.msra.mxu0 %v484
  %2946 = vmatprep.subr.mxu0 %v481
  %2947 = vmatpush1.xpose.msra.mxu0 %v480
  %2948 = vmatprep.subr.mxu0 %v477
  %2949 = vmatpush1.xpose.msra.mxu0 %v476
  %2950 = vmatprep.subr.mxu0 %v473
  %2951 = vmatpush1.xpose.msra.mxu0 %v472
  %2952 = vmatprep.subr.mxu0 %v469
  %2953 = vmatpush1.xpose.msra.mxu0 %v468
  %2954 = vmatprep.subr.mxu0 %v465
  %2955 = vmatpush1.xpose.msra.mxu0 %v464
  %2956 = vmatprep.subr.mxu0 %v461
  %2957 = vmatpush1.xpose.msra.mxu0 %v460
  %2958 = vmatprep.subr.mxu0 %v457
  %2959 = vmatpush1.xpose.msra.mxu0 %v456
  %2960 = vmatprep.subr.mxu0 %v453
  %2961 = vmatpush1.xpose.msra.mxu0 %v452
  %2962 = vmatprep.subr.mxu0 0.0
  %2963 = vmatpush2.xpose.msra.mxu0 0.0
  %2964 = vmatprep.subr.mxu0 0.0
  %2965 = vmatpush2.xpose.msra.mxu0 0.0
  %2966 = vmatprep.subr.mxu0 0.0
  %2967 = vmatpush2.xpose.msra.mxu0 0.0
  %2968 = vmatprep.subr.mxu0 0.0
  %2969 = vmatpush2.xpose.msra.mxu0 0.0
  %2970 = vmatprep.subr.mxu0 0.0
  %2971 = vmatpush2.xpose.msra.mxu0 0.0
  %2972 = vmatprep.subr.mxu0 0.0
  %2973 = vmatpush2.xpose.msra.mxu0 0.0
  %2974 = vmatprep.subr.mxu0 0.0
  %2975 = vmatpush2.xpose.msra.mxu0 0.0
  %2976 = vmatprep.subr.mxu0 0.0
  %2977 = vmatpush2.xpose.msra.mxu0 0.0
  %2978 = vmatprep.subr.mxu0 0.0
  %2979 = vmatpush2.xpose.msra.mxu0 0.0
  %2980 = vmatprep.subr.mxu0 0.0
  %2981 = vmatpush2.xpose.msra.mxu0 0.0
  %2982 = vmatprep.subr.mxu0 0.0
  %2983 = vmatpush2.xpose.msra.mxu0 0.0
  %2984 = vmatprep.subr.mxu0 0.0
  %2985 = vmatpush2.xpose.msra.mxu0 0.0
  %2986 = vmatprep.subr.mxu0 0.0
  %2987 = vmatpush2.xpose.msra.mxu0 0.0
  %2988 = vmatprep.subr.mxu0 0.0
  %2989 = vmatpush2.xpose.msra.mxu0 0.0
  %2990 = vmatprep.subr.mxu0 0.0
  %2991 = vmatpush2.xpose.msra.mxu0 0.0
  %2992 = vmatprep.subr.mxu0 0.0
  %2993 = vmatpush2.xpose.msra.mxu0 0.0
  %2994 = vmatprep.mubr.f32.mxu0 %v2425
  %2995 = vmatmul.mubr.f32.gmra.mxu0 %v2424
  %v2996 = vpop.f32.mrf.mxu0
  %v2997 = vadd.f32 %v2927, %v2996
  %v2998 = vpop.f32.mrf.mxu0
  %2999 = vdwg.mxu0
  %v3000 = vxor.u32 %v2572, 2147483648
  %v3001 = vxor.u32 %v2574, 2147483648
  %v3002 = vxor.u32 %v2714, 2147483648
  %v3003 = vxor.u32 %v2716, 2147483648
  %v3004 = vxor.u32 %v2856, 2147483648
  %v3005 = vxor.u32 %v2858, 2147483648
  %v3006 = vxor.u32 %v2997, 2147483648
  %v3007 = vmul.f32 %v3000, 1.442695
  %v3008 = vpow.pop %v3007
  %v3009 = vmul.f32 %v3001, 1.442695
  %v3010 = vpow.pop %v3009
  %v3011 = vmul.f32 %v3002, 1.442695
  %v3012 = vpow.pop %v3011
  %v3013 = vmul.f32 %v3003, 1.442695
  %v3014 = vpow.pop %v3013
  %v3015 = vmul.f32 %v3004, 1.442695
  %v3016 = vpow.pop %v3015
  %v3017 = vmul.f32 %v3005, 1.442695
  %v3018 = vpow.pop %v3017
  %v3019 = vmul.f32 %v3006, 1.442695
  %v3020 = vpow.pop %v3019
  %v3021 = vadd.f32 %v3008, 1.0
  %v3022 = vadd.f32 %v3010, 1.0
  %v3023 = vadd.f32 %v3012, 1.0
  %v3024 = vadd.f32 %v3014, 1.0
  %v3025 = vadd.f32 %v3016, 1.0
  %v3026 = vadd.f32 %v3018, 1.0
  %v3027 = vadd.f32 %v3020, 1.0
  %v3028 = vrcp.pop %v3021
  %v3029 = vmul.f32 1.0, %v3028
  %v3030 = vrcp.pop %v3022
  %v3031 = vmul.f32 1.0, %v3030
  %v3032 = vrcp.pop %v3023
  %v3033 = vmul.f32 1.0, %v3032
  %v3034 = vrcp.pop %v3024
  %v3035 = vmul.f32 1.0, %v3034
  %v3036 = vrcp.pop %v3025
  %v3037 = vmul.f32 1.0, %v3036
  %v3038 = vrcp.pop %v3026
  %v3039 = vmul.f32 1.0, %v3038
  %v3040 = vrcp.pop %v3027
  %v3041 = vmul.f32 1.0, %v3040
  %vm3042 = vcmp.lt.f32.partialorder %v2427, %v3029
  %vm3043 = vcmp.lt.f32.partialorder %v2428, %v3031
  %vm3044 = vcmp.lt.f32.partialorder %v2429, %v3033
  %vm3045 = vcmp.lt.f32.partialorder %v2430, %v3035
  %vm3046 = vcmp.lt.f32.partialorder %v2431, %v3037
  %vm3047 = vcmp.lt.f32.partialorder %v2432, %v3039
  %vm3048 = vcmp.lt.f32.partialorder %v2433, %v3041
  %v3049 = vsel %vm3042, 1, 0
  %v3050 = vsel %vm3043, 1, 0
  %v3051 = vsel %vm3044, 1, 0
  %v3052 = vsel %vm3045, 1, 0
  %v3053 = vsel %vm3046, 1, 0
  %v3054 = vsel %vm3047, 1, 0
  %v3055 = vsel %vm3048, 1, 0
  %v3056 = vcvt.s32.f32 %v3049
  %v3057 = vcvt.s32.f32 %v3050
  %v3058 = vcvt.s32.f32 %v3051
  %v3059 = vcvt.s32.f32 %v3052
  %v3060 = vcvt.s32.f32 %v3053
  %v3061 = vcvt.s32.f32 %v3054
  %v3062 = vcvt.s32.f32 %v3055
  %s3063 = scalar_lea.vmem %s12, 64
  %v3064 = vld [vmem:[%s3063] sm:$0xff]
  %v3065 = vld [vmem:[%s3063 + $0x8] sm:$0xff]
  %v3066 = vld [vmem:[%s3063 + $0x10] sm:$0xff]
  %v3067 = vld [vmem:[%s3063 + $0x18] sm:$0xff]
  %3068 = vmatprep.subr.mxu0 %v127
  %3069 = vmatpush1.msra.mxu0 %v126
  %3070 = vmatprep.subr.mxu0 %v123
  %3071 = vmatpush1.msra.mxu0 %v122
  %3072 = vmatprep.subr.mxu0 %v119
  %3073 = vmatpush1.msra.mxu0 %v118
  %3074 = vmatprep.subr.mxu0 %v115
  %3075 = vmatpush1.msra.mxu0 %v114
  %3076 = vmatprep.subr.mxu0 %v111
  %3077 = vmatpush1.msra.mxu0 %v110
  %3078 = vmatprep.subr.mxu0 %v107
  %3079 = vmatpush1.msra.mxu0 %v106
  %3080 = vmatprep.subr.mxu0 %v103
  %3081 = vmatpush1.msra.mxu0 %v102
  %3082 = vmatprep.subr.mxu0 %v99
  %3083 = vmatpush1.msra.mxu0 %v98
  %3084 = vmatprep.subr.mxu0 %v95
  %3085 = vmatpush1.msra.mxu0 %v94
  %3086 = vmatprep.subr.mxu0 %v91
  %3087 = vmatpush1.msra.mxu0 %v90
  %3088 = vmatprep.subr.mxu0 %v87
  %3089 = vmatpush1.msra.mxu0 %v86
  %3090 = vmatprep.subr.mxu0 %v83
  %3091 = vmatpush1.msra.mxu0 %v82
  %3092 = vmatprep.subr.mxu0 %v79
  %3093 = vmatpush1.msra.mxu0 %v78
  %3094 = vmatprep.subr.mxu0 %v75
  %3095 = vmatpush1.msra.mxu0 %v74
  %3096 = vmatprep.subr.mxu0 %v71
  %3097 = vmatpush1.msra.mxu0 %v70
  %3098 = vmatprep.subr.mxu0 %v67
  %3099 = vmatpush1.msra.mxu0 %v66
  %3100 = vmatprep.subr.mxu0 %v191
  %3101 = vmatpush2.msra.mxu0 %v190
  %3102 = vmatprep.subr.mxu0 %v187
  %3103 = vmatpush2.msra.mxu0 %v186
  %3104 = vmatprep.subr.mxu0 %v183
  %3105 = vmatpush2.msra.mxu0 %v182
  %3106 = vmatprep.subr.mxu0 %v179
  %3107 = vmatpush2.msra.mxu0 %v178
  %3108 = vmatprep.subr.mxu0 %v175
  %3109 = vmatpush2.msra.mxu0 %v174
  %3110 = vmatprep.subr.mxu0 %v171
  %3111 = vmatpush2.msra.mxu0 %v170
  %3112 = vmatprep.subr.mxu0 %v167
  %3113 = vmatpush2.msra.mxu0 %v166
  %3114 = vmatprep.subr.mxu0 %v163
  %3115 = vmatpush2.msra.mxu0 %v162
  %3116 = vmatprep.subr.mxu0 %v159
  %3117 = vmatpush2.msra.mxu0 %v158
  %3118 = vmatprep.subr.mxu0 %v155
  %3119 = vmatpush2.msra.mxu0 %v154
  %3120 = vmatprep.subr.mxu0 %v151
  %3121 = vmatpush2.msra.mxu0 %v150
  %3122 = vmatprep.subr.mxu0 %v147
  %3123 = vmatpush2.msra.mxu0 %v146
  %3124 = vmatprep.subr.mxu0 %v143
  %3125 = vmatpush2.msra.mxu0 %v142
  %3126 = vmatprep.subr.mxu0 %v139
  %3127 = vmatpush2.msra.mxu0 %v138
  %3128 = vmatprep.subr.mxu0 %v135
  %3129 = vmatpush2.msra.mxu0 %v134
  %3130 = vmatprep.subr.mxu0 %v131
  %3131 = vmatpush2.msra.mxu0 %v130
  %3132 = vmatprep.mubr.f32.mxu0 %v3057
  %3133 = vmatmul.mubr.f32.gmra.mxu0 %v3056
  %v3134 = vpop.f32.mrf.mxu0
  %v3135 = vadd.f32 %v524, %v3134
  %v3136 = vpop.f32.mrf.mxu0
  %v3137 = vadd.f32 %v528, %v3136
  %3138 = vdwg.mxu0
  %3139 = vmatprep.subr.mxu0 %v255
  %3140 = vmatpush1.msra.mxu0 %v254
  %3141 = vmatprep.subr.mxu0 %v251
  %3142 = vmatpush1.msra.mxu0 %v250
  %3143 = vmatprep.subr.mxu0 %v247
  %3144 = vmatpush1.msra.mxu0 %v246
  %3145 = vmatprep.subr.mxu0 %v243
  %3146 = vmatpush1.msra.mxu0 %v242
  %3147 = vmatprep.subr.mxu0 %v239
  %3148 = vmatpush1.msra.mxu0 %v238
  %3149 = vmatprep.subr.mxu0 %v235
  %3150 = vmatpush1.msra.mxu0 %v234
  %3151 = vmatprep.subr.mxu0 %v231
  %3152 = vmatpush1.msra.mxu0 %v230
  %3153 = vmatprep.subr.mxu0 %v227
  %3154 = vmatpush1.msra.mxu0 %v226
  %3155 = vmatprep.subr.mxu0 %v223
  %3156 = vmatpush1.msra.mxu0 %v222
  %3157 = vmatprep.subr.mxu0 %v219
  %3158 = vmatpush1.msra.mxu0 %v218
  %3159 = vmatprep.subr.mxu0 %v215
  %3160 = vmatpush1.msra.mxu0 %v214
  %3161 = vmatprep.subr.mxu0 %v211
  %3162 = vmatpush1.msra.mxu0 %v210
  %3163 = vmatprep.subr.mxu0 %v207
  %3164 = vmatpush1.msra.mxu0 %v206
  %3165 = vmatprep.subr.mxu0 %v203
  %3166 = vmatpush1.msra.mxu0 %v202
  %3167 = vmatprep.subr.mxu0 %v199
  %3168 = vmatpush1.msra.mxu0 %v198
  %3169 = vmatprep.subr.mxu0 %v195
  %3170 = vmatpush1.msra.mxu0 %v194
  %3171 = vmatprep.subr.mxu0 %v319
  %3172 = vmatpush2.msra.mxu0 %v318
  %3173 = vmatprep.subr.mxu0 %v315
  %3174 = vmatpush2.msra.mxu0 %v314
  %3175 = vmatprep.subr.mxu0 %v311
  %3176 = vmatpush2.msra.mxu0 %v310
  %3177 = vmatprep.subr.mxu0 %v307
  %3178 = vmatpush2.msra.mxu0 %v306
  %3179 = vmatprep.subr.mxu0 %v303
  %3180 = vmatpush2.msra.mxu0 %v302
  %3181 = vmatprep.subr.mxu0 %v299
  %3182 = vmatpush2.msra.mxu0 %v298
  %3183 = vmatprep.subr.mxu0 %v295
  %3184 = vmatpush2.msra.mxu0 %v294
  %3185 = vmatprep.subr.mxu0 %v291
  %3186 = vmatpush2.msra.mxu0 %v290
  %3187 = vmatprep.subr.mxu0 %v287
  %3188 = vmatpush2.msra.mxu0 %v286
  %3189 = vmatprep.subr.mxu0 %v283
  %3190 = vmatpush2.msra.mxu0 %v282
  %3191 = vmatprep.subr.mxu0 %v279
  %3192 = vmatpush2.msra.mxu0 %v278
  %3193 = vmatprep.subr.mxu0 %v275
  %3194 = vmatpush2.msra.mxu0 %v274
  %3195 = vmatprep.subr.mxu0 %v271
  %3196 = vmatpush2.msra.mxu0 %v270
  %3197 = vmatprep.subr.mxu0 %v267
  %3198 = vmatpush2.msra.mxu0 %v266
  %3199 = vmatprep.subr.mxu0 %v263
  %3200 = vmatpush2.msra.mxu0 %v262
  %3201 = vmatprep.subr.mxu0 %v259
  %3202 = vmatpush2.msra.mxu0 %v258
  %3203 = vmatprep.mubr.f32.mxu0 %v3059
  %3204 = vmatmul.mubr.f32.gmra.mxu0 %v3058
  %v3205 = vpop.f32.mrf.mxu0
  %v3206 = vadd.f32 %v3135, %v3205
  %v3207 = vpop.f32.mrf.mxu0
  %v3208 = vadd.f32 %v3137, %v3207
  %3209 = vdwg.mxu0
  %3210 = vmatprep.subr.mxu0 %v383
  %3211 = vmatpush1.msra.mxu0 %v382
  %3212 = vmatprep.subr.mxu0 %v379
  %3213 = vmatpush1.msra.mxu0 %v378
  %3214 = vmatprep.subr.mxu0 %v375
  %3215 = vmatpush1.msra.mxu0 %v374
  %3216 = vmatprep.subr.mxu0 %v371
  %3217 = vmatpush1.msra.mxu0 %v370
  %3218 = vmatprep.subr.mxu0 %v367
  %3219 = vmatpush1.msra.mxu0 %v366
  %3220 = vmatprep.subr.mxu0 %v363
  %3221 = vmatpush1.msra.mxu0 %v362
  %3222 = vmatprep.subr.mxu0 %v359
  %3223 = vmatpush1.msra.mxu0 %v358
  %3224 = vmatprep.subr.mxu0 %v355
  %3225 = vmatpush1.msra.mxu0 %v354
  %3226 = vmatprep.subr.mxu0 %v351
  %3227 = vmatpush1.msra.mxu0 %v350
  %3228 = vmatprep.subr.mxu0 %v347
  %3229 = vmatpush1.msra.mxu0 %v346
  %3230 = vmatprep.subr.mxu0 %v343
  %3231 = vmatpush1.msra.mxu0 %v342
  %3232 = vmatprep.subr.mxu0 %v339
  %3233 = vmatpush1.msra.mxu0 %v338
  %3234 = vmatprep.subr.mxu0 %v335
  %3235 = vmatpush1.msra.mxu0 %v334
  %3236 = vmatprep.subr.mxu0 %v331
  %3237 = vmatpush1.msra.mxu0 %v330
  %3238 = vmatprep.subr.mxu0 %v327
  %3239 = vmatpush1.msra.mxu0 %v326
  %3240 = vmatprep.subr.mxu0 %v323
  %3241 = vmatpush1.msra.mxu0 %v322
  %3242 = vmatprep.subr.mxu0 %v447
  %3243 = vmatpush2.msra.mxu0 %v446
  %3244 = vmatprep.subr.mxu0 %v443
  %3245 = vmatpush2.msra.mxu0 %v442
  %3246 = vmatprep.subr.mxu0 %v439
  %3247 = vmatpush2.msra.mxu0 %v438
  %3248 = vmatprep.subr.mxu0 %v435
  %3249 = vmatpush2.msra.mxu0 %v434
  %3250 = vmatprep.subr.mxu0 %v431
  %3251 = vmatpush2.msra.mxu0 %v430
  %3252 = vmatprep.subr.mxu0 %v427
  %3253 = vmatpush2.msra.mxu0 %v426
  %3254 = vmatprep.subr.mxu0 %v423
  %3255 = vmatpush2.msra.mxu0 %v422
  %3256 = vmatprep.subr.mxu0 %v419
  %3257 = vmatpush2.msra.mxu0 %v418
  %3258 = vmatprep.subr.mxu0 %v415
  %3259 = vmatpush2.msra.mxu0 %v414
  %3260 = vmatprep.subr.mxu0 %v411
  %3261 = vmatpush2.msra.mxu0 %v410
  %3262 = vmatprep.subr.mxu0 %v407
  %3263 = vmatpush2.msra.mxu0 %v406
  %3264 = vmatprep.subr.mxu0 %v403
  %3265 = vmatpush2.msra.mxu0 %v402
  %3266 = vmatprep.subr.mxu0 %v399
  %3267 = vmatpush2.msra.mxu0 %v398
  %3268 = vmatprep.subr.mxu0 %v395
  %3269 = vmatpush2.msra.mxu0 %v394
  %3270 = vmatprep.subr.mxu0 %v391
  %3271 = vmatpush2.msra.mxu0 %v390
  %3272 = vmatprep.subr.mxu0 %v387
  %3273 = vmatpush2.msra.mxu0 %v386
  %3274 = vmatprep.mubr.f32.mxu0 %v3061
  %3275 = vmatmul.mubr.f32.gmra.mxu0 %v3060
  %v3276 = vpop.f32.mrf.mxu0
  %v3277 = vadd.f32 %v3206, %v3276
  %v3278 = vpop.f32.mrf.mxu0
  %v3279 = vadd.f32 %v3208, %v3278
  %3280 = vdwg.mxu0
  %3281 = vmatprep.subr.mxu0 %v511
  %3282 = vmatpush1.msra.mxu0 %v510
  %3283 = vmatprep.subr.mxu0 %v507
  %3284 = vmatpush1.msra.mxu0 %v506
  %3285 = vmatprep.subr.mxu0 %v503
  %3286 = vmatpush1.msra.mxu0 %v502
  %3287 = vmatprep.subr.mxu0 %v499
  %3288 = vmatpush1.msra.mxu0 %v498
  %3289 = vmatprep.subr.mxu0 %v495
  %3290 = vmatpush1.msra.mxu0 %v494
  %3291 = vmatprep.subr.mxu0 %v491
  %3292 = vmatpush1.msra.mxu0 %v490
  %3293 = vmatprep.subr.mxu0 %v487
  %3294 = vmatpush1.msra.mxu0 %v486
  %3295 = vmatprep.subr.mxu0 %v483
  %3296 = vmatpush1.msra.mxu0 %v482
  %3297 = vmatprep.subr.mxu0 %v479
  %3298 = vmatpush1.msra.mxu0 %v478
  %3299 = vmatprep.subr.mxu0 %v475
  %3300 = vmatpush1.msra.mxu0 %v474
  %3301 = vmatprep.subr.mxu0 %v471
  %3302 = vmatpush1.msra.mxu0 %v470
  %3303 = vmatprep.subr.mxu0 %v467
  %3304 = vmatpush1.msra.mxu0 %v466
  %3305 = vmatprep.subr.mxu0 %v463
  %3306 = vmatpush1.msra.mxu0 %v462
  %3307 = vmatprep.subr.mxu0 %v459
  %3308 = vmatpush1.msra.mxu0 %v458
  %3309 = vmatprep.subr.mxu0 %v455
  %3310 = vmatpush1.msra.mxu0 %v454
  %3311 = vmatprep.subr.mxu0 %v451
  %3312 = vmatpush1.msra.mxu0 %v450
  %3313 = vmatprep.subr.mxu0 0.0
  %3314 = vmatpush2.msra.mxu0 0.0
  %3315 = vmatprep.subr.mxu0 0.0
  %3316 = vmatpush2.msra.mxu0 0.0
  %3317 = vmatprep.subr.mxu0 0.0
  %3318 = vmatpush2.msra.mxu0 0.0
  %3319 = vmatprep.subr.mxu0 0.0
  %3320 = vmatpush2.msra.mxu0 0.0
  %3321 = vmatprep.subr.mxu0 0.0
  %3322 = vmatpush2.msra.mxu0 0.0
  %3323 = vmatprep.subr.mxu0 0.0
  %3324 = vmatpush2.msra.mxu0 0.0
  %3325 = vmatprep.subr.mxu0 0.0
  %3326 = vmatpush2.msra.mxu0 0.0
  %3327 = vmatprep.subr.mxu0 0.0
  %3328 = vmatpush2.msra.mxu0 0.0
  %3329 = vmatprep.subr.mxu0 0.0
  %3330 = vmatpush2.msra.mxu0 0.0
  %3331 = vmatprep.subr.mxu0 0.0
  %3332 = vmatpush2.msra.mxu0 0.0
  %3333 = vmatprep.subr.mxu0 0.0
  %3334 = vmatpush2.msra.mxu0 0.0
  %3335 = vmatprep.subr.mxu0 0.0
  %3336 = vmatpush2.msra.mxu0 0.0
  %3337 = vmatprep.subr.mxu0 0.0
  %3338 = vmatpush2.msra.mxu0 0.0
  %3339 = vmatprep.subr.mxu0 0.0
  %3340 = vmatpush2.msra.mxu0 0.0
  %3341 = vmatprep.subr.mxu0 0.0
  %3342 = vmatpush2.msra.mxu0 0.0
  %3343 = vmatprep.subr.mxu0 0.0
  %3344 = vmatpush2.msra.mxu0 0.0
  %3345 = vmatprep.mubr.f32.mxu0 0.0
  %3346 = vmatmul.mubr.f32.gmra.mxu0 %v3062
  %v3347 = vpop.f32.mrf.mxu0
  %v3348 = vadd.f32 %v3277, %v3347
  %v3349 = vpop.f32.mrf.mxu0
  %v3350 = vadd.f32 %v3279, %v3349
  %3351 = vdwg.mxu0
  %3352 = vmatprep.subr.mxu0 %v129
  %3353 = vmatpush1.msra.mxu0 %v128
  %3354 = vmatprep.subr.mxu0 %v125
  %3355 = vmatpush1.msra.mxu0 %v124
  %3356 = vmatprep.subr.mxu0 %v121
  %3357 = vmatpush1.msra.mxu0 %v120
  %3358 = vmatprep.subr.mxu0 %v117
  %3359 = vmatpush1.msra.mxu0 %v116
  %3360 = vmatprep.subr.mxu0 %v113
  %3361 = vmatpush1.msra.mxu0 %v112
  %3362 = vmatprep.subr.mxu0 %v109
  %3363 = vmatpush1.msra.mxu0 %v108
  %3364 = vmatprep.subr.mxu0 %v105
  %3365 = vmatpush1.msra.mxu0 %v104
  %3366 = vmatprep.subr.mxu0 %v101
  %3367 = vmatpush1.msra.mxu0 %v100
  %3368 = vmatprep.subr.mxu0 %v97
  %3369 = vmatpush1.msra.mxu0 %v96
  %3370 = vmatprep.subr.mxu0 %v93
  %3371 = vmatpush1.msra.mxu0 %v92
  %3372 = vmatprep.subr.mxu0 %v89
  %3373 = vmatpush1.msra.mxu0 %v88
  %3374 = vmatprep.subr.mxu0 %v85
  %3375 = vmatpush1.msra.mxu0 %v84
  %3376 = vmatprep.subr.mxu0 %v81
  %3377 = vmatpush1.msra.mxu0 %v80
  %3378 = vmatprep.subr.mxu0 %v77
  %3379 = vmatpush1.msra.mxu0 %v76
  %3380 = vmatprep.subr.mxu0 %v73
  %3381 = vmatpush1.msra.mxu0 %v72
  %3382 = vmatprep.subr.mxu0 %v69
  %3383 = vmatpush1.msra.mxu0 %v68
  %3384 = vmatprep.subr.mxu0 %v193
  %3385 = vmatpush2.msra.mxu0 %v192
  %3386 = vmatprep.subr.mxu0 %v189
  %3387 = vmatpush2.msra.mxu0 %v188
  %3388 = vmatprep.subr.mxu0 %v185
  %3389 = vmatpush2.msra.mxu0 %v184
  %3390 = vmatprep.subr.mxu0 %v181
  %3391 = vmatpush2.msra.mxu0 %v180
  %3392 = vmatprep.subr.mxu0 %v177
  %3393 = vmatpush2.msra.mxu0 %v176
  %3394 = vmatprep.subr.mxu0 %v173
  %3395 = vmatpush2.msra.mxu0 %v172
  %3396 = vmatprep.subr.mxu0 %v169
  %3397 = vmatpush2.msra.mxu0 %v168
  %3398 = vmatprep.subr.mxu0 %v165
  %3399 = vmatpush2.msra.mxu0 %v164
  %3400 = vmatprep.subr.mxu0 %v161
  %3401 = vmatpush2.msra.mxu0 %v160
  %3402 = vmatprep.subr.mxu0 %v157
  %3403 = vmatpush2.msra.mxu0 %v156
  %3404 = vmatprep.subr.mxu0 %v153
  %3405 = vmatpush2.msra.mxu0 %v152
  %3406 = vmatprep.subr.mxu0 %v149
  %3407 = vmatpush2.msra.mxu0 %v148
  %3408 = vmatprep.subr.mxu0 %v145
  %3409 = vmatpush2.msra.mxu0 %v144
  %3410 = vmatprep.subr.mxu0 %v141
  %3411 = vmatpush2.msra.mxu0 %v140
  %3412 = vmatprep.subr.mxu0 %v137
  %3413 = vmatpush2.msra.mxu0 %v136
  %3414 = vmatprep.subr.mxu0 %v133
  %3415 = vmatpush2.msra.mxu0 %v132
  %3416 = vmatprep.mubr.f32.mxu0 %v3057
  %3417 = vmatmul.mubr.f32.gmra.mxu0 %v3056
  %v3418 = vpop.f32.mrf.mxu0
  %v3419 = vadd.f32 %v532, %v3418
  %v3420 = vpop.f32.mrf.mxu0
  %v3421 = vadd.f32 %v536, %v3420
  %3422 = vdwg.mxu0
  %3423 = vmatprep.subr.mxu0 %v257
  %3424 = vmatpush1.msra.mxu0 %v256
  %3425 = vmatprep.subr.mxu0 %v253
  %3426 = vmatpush1.msra.mxu0 %v252
  %3427 = vmatprep.subr.mxu0 %v249
  %3428 = vmatpush1.msra.mxu0 %v248
  %3429 = vmatprep.subr.mxu0 %v245
  %3430 = vmatpush1.msra.mxu0 %v244
  %3431 = vmatprep.subr.mxu0 %v241
  %3432 = vmatpush1.msra.mxu0 %v240
  %3433 = vmatprep.subr.mxu0 %v237
  %3434 = vmatpush1.msra.mxu0 %v236
  %3435 = vmatprep.subr.mxu0 %v233
  %3436 = vmatpush1.msra.mxu0 %v232
  %3437 = vmatprep.subr.mxu0 %v229
  %3438 = vmatpush1.msra.mxu0 %v228
  %3439 = vmatprep.subr.mxu0 %v225
  %3440 = vmatpush1.msra.mxu0 %v224
  %3441 = vmatprep.subr.mxu0 %v221
  %3442 = vmatpush1.msra.mxu0 %v220
  %3443 = vmatprep.subr.mxu0 %v217
  %3444 = vmatpush1.msra.mxu0 %v216
  %3445 = vmatprep.subr.mxu0 %v213
  %3446 = vmatpush1.msra.mxu0 %v212
  %3447 = vmatprep.subr.mxu0 %v209
  %3448 = vmatpush1.msra.mxu0 %v208
  %3449 = vmatprep.subr.mxu0 %v205
  %3450 = vmatpush1.msra.mxu0 %v204
  %3451 = vmatprep.subr.mxu0 %v201
  %3452 = vmatpush1.msra.mxu0 %v200
  %3453 = vmatprep.subr.mxu0 %v197
  %3454 = vmatpush1.msra.mxu0 %v196
  %3455 = vmatprep.subr.mxu0 %v321
  %3456 = vmatpush2.msra.mxu0 %v320
  %3457 = vmatprep.subr.mxu0 %v317
  %3458 = vmatpush2.msra.mxu0 %v316
  %3459 = vmatprep.subr.mxu0 %v313
  %3460 = vmatpush2.msra.mxu0 %v312
  %3461 = vmatprep.subr.mxu0 %v309
  %3462 = vmatpush2.msra.mxu0 %v308
  %3463 = vmatprep.subr.mxu0 %v305
  %3464 = vmatpush2.msra.mxu0 %v304
  %3465 = vmatprep.subr.mxu0 %v301
  %3466 = vmatpush2.msra.mxu0 %v300
  %3467 = vmatprep.subr.mxu0 %v297
  %3468 = vmatpush2.msra.mxu0 %v296
  %3469 = vmatprep.subr.mxu0 %v293
  %3470 = vmatpush2.msra.mxu0 %v292
  %3471 = vmatprep.subr.mxu0 %v289
  %3472 = vmatpush2.msra.mxu0 %v288
  %3473 = vmatprep.subr.mxu0 %v285
  %3474 = vmatpush2.msra.mxu0 %v284
  %3475 = vmatprep.subr.mxu0 %v281
  %3476 = vmatpush2.msra.mxu0 %v280
  %3477 = vmatprep.subr.mxu0 %v277
  %3478 = vmatpush2.msra.mxu0 %v276
  %3479 = vmatprep.subr.mxu0 %v273
  %3480 = vmatpush2.msra.mxu0 %v272
  %3481 = vmatprep.subr.mxu0 %v269
  %3482 = vmatpush2.msra.mxu0 %v268
  %3483 = vmatprep.subr.mxu0 %v265
  %3484 = vmatpush2.msra.mxu0 %v264
  %3485 = vmatprep.subr.mxu0 %v261
  %3486 = vmatpush2.msra.mxu0 %v260
  %3487 = vmatprep.mubr.f32.mxu0 %v3059
  %3488 = vmatmul.mubr.f32.gmra.mxu0 %v3058
  %v3489 = vpop.f32.mrf.mxu0
  %v3490 = vadd.f32 %v3419, %v3489
  %v3491 = vpop.f32.mrf.mxu0
  %v3492 = vadd.f32 %v3421, %v3491
  %3493 = vdwg.mxu0
  %3494 = vmatprep.subr.mxu0 %v385
  %3495 = vmatpush1.msra.mxu0 %v384
  %3496 = vmatprep.subr.mxu0 %v381
  %3497 = vmatpush1.msra.mxu0 %v380
  %3498 = vmatprep.subr.mxu0 %v377
  %3499 = vmatpush1.msra.mxu0 %v376
  %3500 = vmatprep.subr.mxu0 %v373
  %3501 = vmatpush1.msra.mxu0 %v372
  %3502 = vmatprep.subr.mxu0 %v369
  %3503 = vmatpush1.msra.mxu0 %v368
  %3504 = vmatprep.subr.mxu0 %v365
  %3505 = vmatpush1.msra.mxu0 %v364
  %3506 = vmatprep.subr.mxu0 %v361
  %3507 = vmatpush1.msra.mxu0 %v360
  %3508 = vmatprep.subr.mxu0 %v357
  %3509 = vmatpush1.msra.mxu0 %v356
  %3510 = vmatprep.subr.mxu0 %v353
  %3511 = vmatpush1.msra.mxu0 %v352
  %3512 = vmatprep.subr.mxu0 %v349
  %3513 = vmatpush1.msra.mxu0 %v348
  %3514 = vmatprep.subr.mxu0 %v345
  %3515 = vmatpush1.msra.mxu0 %v344
  %3516 = vmatprep.subr.mxu0 %v341
  %3517 = vmatpush1.msra.mxu0 %v340
  %3518 = vmatprep.subr.mxu0 %v337
  %3519 = vmatpush1.msra.mxu0 %v336
  %3520 = vmatprep.subr.mxu0 %v333
  %3521 = vmatpush1.msra.mxu0 %v332
  %3522 = vmatprep.subr.mxu0 %v329
  %3523 = vmatpush1.msra.mxu0 %v328
  %3524 = vmatprep.subr.mxu0 %v325
  %3525 = vmatpush1.msra.mxu0 %v324
  %3526 = vmatprep.subr.mxu0 %v449
  %3527 = vmatpush2.msra.mxu0 %v448
  %3528 = vmatprep.subr.mxu0 %v445
  %3529 = vmatpush2.msra.mxu0 %v444
  %3530 = vmatprep.subr.mxu0 %v441
  %3531 = vmatpush2.msra.mxu0 %v440
  %3532 = vmatprep.subr.mxu0 %v437
  %3533 = vmatpush2.msra.mxu0 %v436
  %3534 = vmatprep.subr.mxu0 %v433
  %3535 = vmatpush2.msra.mxu0 %v432
  %3536 = vmatprep.subr.mxu0 %v429
  %3537 = vmatpush2.msra.mxu0 %v428
  %3538 = vmatprep.subr.mxu0 %v425
  %3539 = vmatpush2.msra.mxu0 %v424
  %3540 = vmatprep.subr.mxu0 %v421
  %3541 = vmatpush2.msra.mxu0 %v420
  %3542 = vmatprep.subr.mxu0 %v417
  %3543 = vmatpush2.msra.mxu0 %v416
  %3544 = vmatprep.subr.mxu0 %v413
  %3545 = vmatpush2.msra.mxu0 %v412
  %3546 = vmatprep.subr.mxu0 %v409
  %3547 = vmatpush2.msra.mxu0 %v408
  %3548 = vmatprep.subr.mxu0 %v405
  %3549 = vmatpush2.msra.mxu0 %v404
  %3550 = vmatprep.subr.mxu0 %v401
  %3551 = vmatpush2.msra.mxu0 %v400
  %3552 = vmatprep.subr.mxu0 %v397
  %3553 = vmatpush2.msra.mxu0 %v396
  %3554 = vmatprep.subr.mxu0 %v393
  %3555 = vmatpush2.msra.mxu0 %v392
  %3556 = vmatprep.subr.mxu0 %v389
  %3557 = vmatpush2.msra.mxu0 %v388
  %3558 = vmatprep.mubr.f32.mxu0 %v3061
  %3559 = vmatmul.mubr.f32.gmra.mxu0 %v3060
  %v3560 = vpop.f32.mrf.mxu0
  %v3561 = vadd.f32 %v3490, %v3560
  %v3562 = vpop.f32.mrf.mxu0
  %v3563 = vadd.f32 %v3492, %v3562
  %3564 = vdwg.mxu0
  %3565 = vmatprep.subr.mxu0 %v513
  %3566 = vmatpush1.msra.mxu0 %v512
  %3567 = vmatprep.subr.mxu0 %v509
  %3568 = vmatpush1.msra.mxu0 %v508
  %3569 = vmatprep.subr.mxu0 %v505
  %3570 = vmatpush1.msra.mxu0 %v504
  %3571 = vmatprep.subr.mxu0 %v501
  %3572 = vmatpush1.msra.mxu0 %v500
  %3573 = vmatprep.subr.mxu0 %v497
  %3574 = vmatpush1.msra.mxu0 %v496
  %3575 = vmatprep.subr.mxu0 %v493
  %3576 = vmatpush1.msra.mxu0 %v492
  %3577 = vmatprep.subr.mxu0 %v489
  %3578 = vmatpush1.msra.mxu0 %v488
  %3579 = vmatprep.subr.mxu0 %v485
  %3580 = vmatpush1.msra.mxu0 %v484
  %3581 = vmatprep.subr.mxu0 %v481
  %3582 = vmatpush1.msra.mxu0 %v480
  %3583 = vmatprep.subr.mxu0 %v477
  %3584 = vmatpush1.msra.mxu0 %v476
  %3585 = vmatprep.subr.mxu0 %v473
  %3586 = vmatpush1.msra.mxu0 %v472
  %3587 = vmatprep.subr.mxu0 %v469
  %3588 = vmatpush1.msra.mxu0 %v468
  %3589 = vmatprep.subr.mxu0 %v465
  %3590 = vmatpush1.msra.mxu0 %v464
  %3591 = vmatprep.subr.mxu0 %v461
  %3592 = vmatpush1.msra.mxu0 %v460
  %3593 = vmatprep.subr.mxu0 %v457
  %3594 = vmatpush1.msra.mxu0 %v456
  %3595 = vmatprep.subr.mxu0 %v453
  %3596 = vmatpush1.msra.mxu0 %v452
  %3597 = vmatprep.subr.mxu0 0.0
  %3598 = vmatpush2.msra.mxu0 0.0
  %3599 = vmatprep.subr.mxu0 0.0
  %3600 = vmatpush2.msra.mxu0 0.0
  %3601 = vmatprep.subr.mxu0 0.0
  %3602 = vmatpush2.msra.mxu0 0.0
  %3603 = vmatprep.subr.mxu0 0.0
  %3604 = vmatpush2.msra.mxu0 0.0
  %3605 = vmatprep.subr.mxu0 0.0
  %3606 = vmatpush2.msra.mxu0 0.0
  %3607 = vmatprep.subr.mxu0 0.0
  %3608 = vmatpush2.msra.mxu0 0.0
  %3609 = vmatprep.subr.mxu0 0.0
  %3610 = vmatpush2.msra.mxu0 0.0
  %3611 = vmatprep.subr.mxu0 0.0
  %3612 = vmatpush2.msra.mxu0 0.0
  %3613 = vmatprep.subr.mxu0 0.0
  %3614 = vmatpush2.msra.mxu0 0.0
  %3615 = vmatprep.subr.mxu0 0.0
  %3616 = vmatpush2.msra.mxu0 0.0
  %3617 = vmatprep.subr.mxu0 0.0
  %3618 = vmatpush2.msra.mxu0 0.0
  %3619 = vmatprep.subr.mxu0 0.0
  %3620 = vmatpush2.msra.mxu0 0.0
  %3621 = vmatprep.subr.mxu0 0.0
  %3622 = vmatpush2.msra.mxu0 0.0
  %3623 = vmatprep.subr.mxu0 0.0
  %3624 = vmatpush2.msra.mxu0 0.0
  %3625 = vmatprep.subr.mxu0 0.0
  %3626 = vmatpush2.msra.mxu0 0.0
  %3627 = vmatprep.subr.mxu0 0.0
  %3628 = vmatpush2.msra.mxu0 0.0
  %3629 = vmatprep.mubr.f32.mxu0 0.0
  %3630 = vmatmul.mubr.f32.gmra.mxu0 %v3062
  %v3631 = vpop.f32.mrf.mxu0
  %v3632 = vadd.f32 %v3561, %v3631
  %v3633 = vpop.f32.mrf.mxu0
  %v3634 = vadd.f32 %v3563, %v3633
  %3635 = vdwg.mxu0
  %v3636 = vxor.u32 %v3348, 2147483648
  %v3637 = vxor.u32 %v3350, 2147483648
  %v3638 = vxor.u32 %v3632, 2147483648
  %v3639 = vxor.u32 %v3634, 2147483648
  %v3640 = vmul.f32 %v3636, 1.442695
  %v3641 = vpow.pop %v3640
  %v3642 = vmul.f32 %v3637, 1.442695
  %v3643 = vpow.pop %v3642
  %v3644 = vmul.f32 %v3638, 1.442695
  %v3645 = vpow.pop %v3644
  %v3646 = vmul.f32 %v3639, 1.442695
  %v3647 = vpow.pop %v3646
  %v3648 = vadd.f32 %v3641, 1.0
  %v3649 = vadd.f32 %v3643, 1.0
  %v3650 = vadd.f32 %v3645, 1.0
  %v3651 = vadd.f32 %v3647, 1.0
  %v3652 = vrcp.pop %v3648
  %v3653 = vmul.f32 1.0, %v3652
  %v3654 = vrcp.pop %v3649
  %v3655 = vmul.f32 1.0, %v3654
  %v3656 = vrcp.pop %v3650
  %v3657 = vmul.f32 1.0, %v3656
  %v3658 = vrcp.pop %v3651
  %v3659 = vmul.f32 1.0, %v3658
  %vm3660 = vcmp.lt.f32.partialorder %v3064, %v3653
  %vm3661 = vcmp.lt.f32.partialorder %v3065, %v3655
  %vm3662 = vcmp.lt.f32.partialorder %v3066, %v3657
  %vm3663 = vcmp.lt.f32.partialorder %v3067, %v3659
  %v3664 = vsel %vm3660, 1, 0
  %v3665 = vsel %vm3661, 1, 0
  %v3666 = vsel %vm3662, 1, 0
  %v3667 = vsel %vm3663, 1, 0
  %v3668 = vcvt.s32.f32 %v3664
  %v3669 = vcvt.s32.f32 %v3665
  %v3670 = vcvt.s32.f32 %v3666
  %v3671 = vcvt.s32.f32 %v3667
  %v3672 = vld [vmem:[%s4] sm:$0xff]
  %v3673 = vld [vmem:[%s4 + $0x8] sm:$0xff]
  %v3674 = vld [vmem:[%s4 + $0x10] sm:$0xff]
  %v3675 = vld [vmem:[%s4 + $0x18] sm:$0xff]
  %v3676 = vld [vmem:[%s4 + $0x20] sm:$0xff]
  %v3677 = vld [vmem:[%s4 + $0x28] sm:$0xff]
  %v3678 = vld [vmem:[%s4 + $0x30] sm:$0xff]
  %v3679 = vld [vmem:[%s4 + $0x38] sm:$0xff]
  %v3680 = vld [vmem:[%s4 + $0x40] sm:$0xff]
  %v3681 = vld [vmem:[%s4 + $0x48] sm:$0xff]
  %v3682 = vld [vmem:[%s4 + $0x50] sm:$0xff]
  %v3683 = vld [vmem:[%s4 + $0x58] sm:$0xff]
  %v3684 = vld [vmem:[%s4 + $0x60] sm:$0xff]
  %v3685 = vld [vmem:[%s4 + $0x68] sm:$0xff]
  %v3686 = vld [vmem:[%s4 + $0x70] sm:$0xff]
  %v3687 = vld [vmem:[%s4 + $0x78] sm:$0xff]
  %v3688 = vld [vmem:[%s4 + $0x80] sm:$0xff]
  %v3689 = vld [vmem:[%s4 + $0x88] sm:$0xff]
  %v3690 = vld [vmem:[%s4 + $0x90] sm:$0xff]
  %v3691 = vld [vmem:[%s4 + $0x98] sm:$0xff]
  %v3692 = vld [vmem:[%s4 + $0xa0] sm:$0xff]
  %v3693 = vld [vmem:[%s4 + $0xa8] sm:$0xff]
  %v3694 = vld [vmem:[%s4 + $0xb0] sm:$0xff]
  %v3695 = vld [vmem:[%s4 + $0xb8] sm:$0xff]
  %v3696 = vld [vmem:[%s4 + $0xc0] sm:$0xff]
  %v3697 = vld [vmem:[%s4 + $0xc8] sm:$0xff]
  %v3698 = vld [vmem:[%s4 + $0xd0] sm:$0xff]
  %v3699 = vld [vmem:[%s4 + $0xd8] sm:$0xff]
  %v3700 = vld [vmem:[%s4 + $0xe0] sm:$0xff]
  %v3701 = vld [vmem:[%s4 + $0xe8] sm:$0xff]
  %v3702 = vld [vmem:[%s4 + $0xf0] sm:$0xff]
  %v3703 = vld [vmem:[%s4 + $0xf8] sm:$0xff]
  %v3704 = vld [vmem:[%s4 + $0x100] sm:$0xff]
  %v3705 = vld [vmem:[%s4 + $0x108] sm:$0xff]
  %v3706 = vld [vmem:[%s4 + $0x110] sm:$0xff]
  %v3707 = vld [vmem:[%s4 + $0x118] sm:$0xff]
  %v3708 = vld [vmem:[%s4 + $0x120] sm:$0xff]
  %v3709 = vld [vmem:[%s4 + $0x128] sm:$0xff]
  %v3710 = vld [vmem:[%s4 + $0x130] sm:$0xff]
  %v3711 = vld [vmem:[%s4 + $0x138] sm:$0xff]
  %v3712 = vld [vmem:[%s4 + $0x140] sm:$0xff]
  %v3713 = vld [vmem:[%s4 + $0x148] sm:$0xff]
  %v3714 = vld [vmem:[%s4 + $0x150] sm:$0xff]
  %v3715 = vld [vmem:[%s4 + $0x158] sm:$0xff]
  %v3716 = vld [vmem:[%s4 + $0x160] sm:$0xff]
  %v3717 = vld [vmem:[%s4 + $0x168] sm:$0xff]
  %v3718 = vld [vmem:[%s4 + $0x170] sm:$0xff]
  %v3719 = vld [vmem:[%s4 + $0x178] sm:$0xff]
  %v3720 = vld [vmem:[%s4 + $0x180] sm:$0xff]
  %v3721 = vld [vmem:[%s4 + $0x188] sm:$0xff]
  %v3722 = vld [vmem:[%s4 + $0x190] sm:$0xff]
  %v3723 = vld [vmem:[%s4 + $0x198] sm:$0xff]
  %v3724 = vld [vmem:[%s4 + $0x1a0] sm:$0xff]
  %v3725 = vld [vmem:[%s4 + $0x1a8] sm:$0xff]
  %v3726 = vld [vmem:[%s4 + $0x1b0] sm:$0xff]
  %v3727 = vld [vmem:[%s4 + $0x1b8] sm:$0xff]
  %v3728 = vld [vmem:[%s4 + $0x1c0] sm:$0xff]
  %v3729 = vld [vmem:[%s4 + $0x1c8] sm:$0xff]
  %v3730 = vld [vmem:[%s4 + $0x1d0] sm:$0xff]
  %v3731 = vld [vmem:[%s4 + $0x1d8] sm:$0xff]
  %v3732 = vld [vmem:[%s4 + $0x1e0] sm:$0xff]
  %v3733 = vld [vmem:[%s4 + $0x1e8] sm:$0xff]
  %v3734 = vld [vmem:[%s4 + $0x1f0] sm:$0xff]
  %v3735 = vld [vmem:[%s4 + $0x1f8] sm:$0xff]
  %v3736 = vld [vmem:[%s4 + $0x200] sm:$0xff]
  %v3737 = vld [vmem:[%s4 + $0x208] sm:$0xff]
  %v3738 = vld [vmem:[%s4 + $0x210] sm:$0xff]
  %v3739 = vld [vmem:[%s4 + $0x218] sm:$0xff]
  %v3740 = vld [vmem:[%s4 + $0x220] sm:$0xff]
  %v3741 = vld [vmem:[%s4 + $0x228] sm:$0xff]
  %v3742 = vld [vmem:[%s4 + $0x230] sm:$0xff]
  %v3743 = vld [vmem:[%s4 + $0x238] sm:$0xff]
  %v3744 = vld [vmem:[%s4 + $0x240] sm:$0xff]
  %v3745 = vld [vmem:[%s4 + $0x248] sm:$0xff]
  %v3746 = vld [vmem:[%s4 + $0x250] sm:$0xff]
  %v3747 = vld [vmem:[%s4 + $0x258] sm:$0xff]
  %v3748 = vld [vmem:[%s4 + $0x260] sm:$0xff]
  %v3749 = vld [vmem:[%s4 + $0x268] sm:$0xff]
  %v3750 = vld [vmem:[%s4 + $0x270] sm:$0xff]
  %v3751 = vld [vmem:[%s4 + $0x278] sm:$0xff]
  %v3752 = vld [vmem:[%s4 + $0x280] sm:$0xff]
  %v3753 = vld [vmem:[%s4 + $0x288] sm:$0xff]
  %v3754 = vld [vmem:[%s4 + $0x290] sm:$0xff]
  %v3755 = vld [vmem:[%s4 + $0x298] sm:$0xff]
  %v3756 = vld [vmem:[%s4 + $0x2a0] sm:$0xff]
  %v3757 = vld [vmem:[%s4 + $0x2a8] sm:$0xff]
  %v3758 = vld [vmem:[%s4 + $0x2b0] sm:$0xff]
  %v3759 = vld [vmem:[%s4 + $0x2b8] sm:$0xff]
  %v3760 = vld [vmem:[%s4 + $0x2c0] sm:$0xff]
  %v3761 = vld [vmem:[%s4 + $0x2c8] sm:$0xff]
  %v3762 = vld [vmem:[%s4 + $0x2d0] sm:$0xff]
  %v3763 = vld [vmem:[%s4 + $0x2d8] sm:$0xff]
  %v3764 = vld [vmem:[%s4 + $0x2e0] sm:$0xff]
  %v3765 = vld [vmem:[%s4 + $0x2e8] sm:$0xff]
  %v3766 = vld [vmem:[%s4 + $0x2f0] sm:$0xff]
  %v3767 = vld [vmem:[%s4 + $0x2f8] sm:$0xff]
  %v3768 = vld [vmem:[%s4 + $0x300] sm:$0xff]
  %v3769 = vld [vmem:[%s4 + $0x308] sm:$0xff]
  %v3770 = vld [vmem:[%s4 + $0x310] sm:$0xff]
  %v3771 = vld [vmem:[%s4 + $0x318] sm:$0xff]
  %v3772 = vld [vmem:[%s4 + $0x320] sm:$0xff]
  %v3773 = vld [vmem:[%s4 + $0x328] sm:$0xff]
  %v3774 = vld [vmem:[%s4 + $0x330] sm:$0xff]
  %v3775 = vld [vmem:[%s4 + $0x338] sm:$0xff]
  %v3776 = vld [vmem:[%s4 + $0x340] sm:$0xff]
  %v3777 = vld [vmem:[%s4 + $0x348] sm:$0xff]
  %v3778 = vld [vmem:[%s4 + $0x350] sm:$0xff]
  %v3779 = vld [vmem:[%s4 + $0x358] sm:$0xff]
  %v3780 = vld [vmem:[%s4 + $0x360] sm:$0xff]
  %v3781 = vld [vmem:[%s4 + $0x368] sm:$0xff]
  %v3782 = vld [vmem:[%s4 + $0x370] sm:$0xff]
  %v3783 = vld [vmem:[%s4 + $0x378] sm:$0xff]
  %v3784 = vld [vmem:[%s4 + $0x380] sm:$0xff]
  %v3785 = vld [vmem:[%s4 + $0x388] sm:$0xff]
  %v3786 = vld [vmem:[%s4 + $0x390] sm:$0xff]
  %v3787 = vld [vmem:[%s4 + $0x398] sm:$0xff]
  %v3788 = vld [vmem:[%s4 + $0x3a0] sm:$0xff]
  %v3789 = vld [vmem:[%s4 + $0x3a8] sm:$0xff]
  %v3790 = vld [vmem:[%s4 + $0x3b0] sm:$0xff]
  %v3791 = vld [vmem:[%s4 + $0x3b8] sm:$0xff]
  %v3792 = vld [vmem:[%s4 + $0x3c0] sm:$0xff]
  %v3793 = vld [vmem:[%s4 + $0x3c8] sm:$0xff]
  %v3794 = vld [vmem:[%s4 + $0x3d0] sm:$0xff]
  %v3795 = vld [vmem:[%s4 + $0x3d8] sm:$0xff]
  %v3796 = vld [vmem:[%s4 + $0x3e0] sm:$0xff]
  %v3797 = vld [vmem:[%s4 + $0x3e8] sm:$0xff]
  %v3798 = vld [vmem:[%s4 + $0x3f0] sm:$0xff]
  %v3799 = vld [vmem:[%s4 + $0x3f8] sm:$0xff]
  %v3800 = vld [vmem:[%s5] sm:$0xf]
  %v3801 = vld [vmem:[%s6] sm:$0x3]
  %v3802 = vld [vmem:[%s14] sm:$0xff]
  %v3803 = vld [vmem:[%s14 + $0x8] sm:$0xff]
  %v3805 = vlaneseq
  %v3806 = vshrl.u32 %v3805, 7
  %v3807 = vsub.s32 0, %v3806
  %v3808 = vrot.slane %v3801, %v3807
  %v3809 = vlaneseq
  %v3810 = vshrl.u32 %v3809, 7
  %v3811 = vsub.s32 1, %v3810
  %v3812 = vrot.slane %v3801, %v3811
  %3815 = vmatprep.subr.mxu0 %v3703
  %3816 = vmatpush1.msra.mxu0 %v3702
  %3817 = vmatprep.subr.mxu0 %v3701
  %3818 = vmatpush1.msra.mxu0 %v3700
  %3819 = vmatprep.subr.mxu0 %v3699
  %3820 = vmatpush1.msra.mxu0 %v3698
  %3821 = vmatprep.subr.mxu0 %v3697
  %3822 = vmatpush1.msra.mxu0 %v3696
  %3823 = vmatprep.subr.mxu0 %v3695
  %3824 = vmatpush1.msra.mxu0 %v3694
  %3825 = vmatprep.subr.mxu0 %v3693
  %3826 = vmatpush1.msra.mxu0 %v3692
  %3827 = vmatprep.subr.mxu0 %v3691
  %3828 = vmatpush1.msra.mxu0 %v3690
  %3829 = vmatprep.subr.mxu0 %v3689
  %3830 = vmatpush1.msra.mxu0 %v3688
  %3831 = vmatprep.subr.mxu0 %v3687
  %3832 = vmatpush1.msra.mxu0 %v3686
  %3833 = vmatprep.subr.mxu0 %v3685
  %3834 = vmatpush1.msra.mxu0 %v3684
  %3835 = vmatprep.subr.mxu0 %v3683
  %3836 = vmatpush1.msra.mxu0 %v3682
  %3837 = vmatprep.subr.mxu0 %v3681
  %3838 = vmatpush1.msra.mxu0 %v3680
  %3839 = vmatprep.subr.mxu0 %v3679
  %3840 = vmatpush1.msra.mxu0 %v3678
  %3841 = vmatprep.subr.mxu0 %v3677
  %3842 = vmatpush1.msra.mxu0 %v3676
  %3843 = vmatprep.subr.mxu0 %v3675
  %3844 = vmatpush1.msra.mxu0 %v3674
  %3845 = vmatprep.subr.mxu0 %v3673
  %3846 = vmatpush1.msra.mxu0 %v3672
  %3847 = vmatprep.subr.mxu0 %v3735
  %3848 = vmatpush2.msra.mxu0 %v3734
  %3849 = vmatprep.subr.mxu0 %v3733
  %3850 = vmatpush2.msra.mxu0 %v3732
  %3851 = vmatprep.subr.mxu0 %v3731
  %3852 = vmatpush2.msra.mxu0 %v3730
  %3853 = vmatprep.subr.mxu0 %v3729
  %3854 = vmatpush2.msra.mxu0 %v3728
  %3855 = vmatprep.subr.mxu0 %v3727
  %3856 = vmatpush2.msra.mxu0 %v3726
  %3857 = vmatprep.subr.mxu0 %v3725
  %3858 = vmatpush2.msra.mxu0 %v3724
  %3859 = vmatprep.subr.mxu0 %v3723
  %3860 = vmatpush2.msra.mxu0 %v3722
  %3861 = vmatprep.subr.mxu0 %v3721
  %3862 = vmatpush2.msra.mxu0 %v3720
  %3863 = vmatprep.subr.mxu0 %v3719
  %3864 = vmatpush2.msra.mxu0 %v3718
  %3865 = vmatprep.subr.mxu0 %v3717
  %3866 = vmatpush2.msra.mxu0 %v3716
  %3867 = vmatprep.subr.mxu0 %v3715
  %3868 = vmatpush2.msra.mxu0 %v3714
  %3869 = vmatprep.subr.mxu0 %v3713
  %3870 = vmatpush2.msra.mxu0 %v3712
  %3871 = vmatprep.subr.mxu0 %v3711
  %3872 = vmatpush2.msra.mxu0 %v3710
  %3873 = vmatprep.subr.mxu0 %v3709
  %3874 = vmatpush2.msra.mxu0 %v3708
  %3875 = vmatprep.subr.mxu0 %v3707
  %3876 = vmatpush2.msra.mxu0 %v3706
  %3877 = vmatprep.subr.mxu0 %v3705
  %3878 = vmatpush2.msra.mxu0 %v3704
  %3879 = vmatprep.mubr.f32.mxu0 %v3669
  %3880 = vmatmul.mubr.f32.gmra.mxu0 %v3668
  %v3881 = vpop.f32.mrf.mxu0
  %v3882 = vadd.f32 %v3808, %v3881
  %v3883 = vpop.f32.mrf.mxu0
  %v3884 = vadd.f32 %v3812, %v3883
  %3885 = vdwg.mxu0
  %3886 = vmatprep.subr.mxu0 %v3767
  %3887 = vmatpush1.msra.mxu0 %v3766
  %3888 = vmatprep.subr.mxu0 %v3765
  %3889 = vmatpush1.msra.mxu0 %v3764
  %3890 = vmatprep.subr.mxu0 %v3763
  %3891 = vmatpush1.msra.mxu0 %v3762
  %3892 = vmatprep.subr.mxu0 %v3761
  %3893 = vmatpush1.msra.mxu0 %v3760
  %3894 = vmatprep.subr.mxu0 %v3759
  %3895 = vmatpush1.msra.mxu0 %v3758
  %3896 = vmatprep.subr.mxu0 %v3757
  %3897 = vmatpush1.msra.mxu0 %v3756
  %3898 = vmatprep.subr.mxu0 %v3755
  %3899 = vmatpush1.msra.mxu0 %v3754
  %3900 = vmatprep.subr.mxu0 %v3753
  %3901 = vmatpush1.msra.mxu0 %v3752
  %3902 = vmatprep.subr.mxu0 %v3751
  %3903 = vmatpush1.msra.mxu0 %v3750
  %3904 = vmatprep.subr.mxu0 %v3749
  %3905 = vmatpush1.msra.mxu0 %v3748
  %3906 = vmatprep.subr.mxu0 %v3747
  %3907 = vmatpush1.msra.mxu0 %v3746
  %3908 = vmatprep.subr.mxu0 %v3745
  %3909 = vmatpush1.msra.mxu0 %v3744
  %3910 = vmatprep.subr.mxu0 %v3743
  %3911 = vmatpush1.msra.mxu0 %v3742
  %3912 = vmatprep.subr.mxu0 %v3741
  %3913 = vmatpush1.msra.mxu0 %v3740
  %3914 = vmatprep.subr.mxu0 %v3739
  %3915 = vmatpush1.msra.mxu0 %v3738
  %3916 = vmatprep.subr.mxu0 %v3737
  %3917 = vmatpush1.msra.mxu0 %v3736
  %3918 = vmatprep.subr.mxu0 %v3799
  %3919 = vmatpush2.msra.mxu0 %v3798
  %3920 = vmatprep.subr.mxu0 %v3797
  %3921 = vmatpush2.msra.mxu0 %v3796
  %3922 = vmatprep.subr.mxu0 %v3795
  %3923 = vmatpush2.msra.mxu0 %v3794
  %3924 = vmatprep.subr.mxu0 %v3793
  %3925 = vmatpush2.msra.mxu0 %v3792
  %3926 = vmatprep.subr.mxu0 %v3791
  %3927 = vmatpush2.msra.mxu0 %v3790
  %3928 = vmatprep.subr.mxu0 %v3789
  %3929 = vmatpush2.msra.mxu0 %v3788
  %3930 = vmatprep.subr.mxu0 %v3787
  %3931 = vmatpush2.msra.mxu0 %v3786
  %3932 = vmatprep.subr.mxu0 %v3785
  %3933 = vmatpush2.msra.mxu0 %v3784
  %3934 = vmatprep.subr.mxu0 %v3783
  %3935 = vmatpush2.msra.mxu0 %v3782
  %3936 = vmatprep.subr.mxu0 %v3781
  %3937 = vmatpush2.msra.mxu0 %v3780
  %3938 = vmatprep.subr.mxu0 %v3779
  %3939 = vmatpush2.msra.mxu0 %v3778
  %3940 = vmatprep.subr.mxu0 %v3777
  %3941 = vmatpush2.msra.mxu0 %v3776
  %3942 = vmatprep.subr.mxu0 %v3775
  %3943 = vmatpush2.msra.mxu0 %v3774
  %3944 = vmatprep.subr.mxu0 %v3773
  %3945 = vmatpush2.msra.mxu0 %v3772
  %3946 = vmatprep.subr.mxu0 %v3771
  %3947 = vmatpush2.msra.mxu0 %v3770
  %3948 = vmatprep.subr.mxu0 %v3769
  %3949 = vmatpush2.msra.mxu0 %v3768
  %3950 = vmatprep.mubr.f32.mxu0 %v3671
  %3951 = vmatmul.mubr.f32.gmra.mxu0 %v3670
  %v3952 = vpop.f32.mrf.mxu0
  %v3953 = vadd.f32 %v3882, %v3952
  %v3954 = vpop.f32.mrf.mxu0
  %v3955 = vadd.f32 %v3884, %v3954
  %3956 = vdwg.mxu0
  %v3957 = vxor.u32 %v3953, 2147483648
  %v3958 = vxor.u32 %v3955, 2147483648
  %v3959 = vmul.f32 %v3957, 1.442695
  %v3960 = vpow.pop %v3959
  %v3961 = vmul.f32 %v3958, 1.442695
  %v3962 = vpow.pop %v3961
  %v3963 = vadd.f32 %v3960, 1.0
  %v3964 = vadd.f32 %v3962, 1.0
  %v3965 = vrcp.pop %v3963
  %v3966 = vmul.f32 1.0, %v3965
  %v3967 = vrcp.pop %v3964
  %v3968 = vmul.f32 1.0, %v3967
  %vm3969 = vcmp.lt.f32.partialorder %v3802, %v3966
  %vm3970 = vcmp.lt.f32.partialorder %v3803, %v3968
  %v3971 = vsel %vm3969, 1, 0
  %v3972 = vsel %vm3970, 1, 0
  %v3973 = vcvt.s32.f32 %v3971
  %v3974 = vcvt.s32.f32 %v3972
  %v3975 = vld [vmem:[%s15] sm:$0xff]
  %v3976 = vld [vmem:[%s15 + $0x8] sm:$0xff]
  %v3977 = vld [vmem:[%s15 + $0x10] sm:$0xff]
  %v3978 = vld [vmem:[%s15 + $0x18] sm:$0xff]
  %v3980 = vlaneseq
  %v3981 = vshrl.u32 %v3980, 7
  %v3982 = vsub.s32 0, %v3981
  %v3983 = vrot.slane %v3800, %v3982
  %v3984 = vlaneseq
  %v3985 = vshrl.u32 %v3984, 7
  %v3986 = vsub.s32 1, %v3985
  %v3987 = vrot.slane %v3800, %v3986
  %v3988 = vlaneseq
  %v3989 = vshrl.u32 %v3988, 7
  %v3990 = vsub.s32 2, %v3989
  %v3991 = vrot.slane %v3800, %v3990
  %v3992 = vlaneseq
  %v3993 = vshrl.u32 %v3992, 7
  %v3994 = vsub.s32 3, %v3993
  %v3995 = vrot.slane %v3800, %v3994
  %4000 = vmatprep.subr.mxu0 %v3703
  %4001 = vmatpush1.xpose.msra.mxu0 %v3702
  %4002 = vmatprep.subr.mxu0 %v3701
  %4003 = vmatpush1.xpose.msra.mxu0 %v3700
  %4004 = vmatprep.subr.mxu0 %v3699
  %4005 = vmatpush1.xpose.msra.mxu0 %v3698
  %4006 = vmatprep.subr.mxu0 %v3697
  %4007 = vmatpush1.xpose.msra.mxu0 %v3696
  %4008 = vmatprep.subr.mxu0 %v3695
  %4009 = vmatpush1.xpose.msra.mxu0 %v3694
  %4010 = vmatprep.subr.mxu0 %v3693
  %4011 = vmatpush1.xpose.msra.mxu0 %v3692
  %4012 = vmatprep.subr.mxu0 %v3691
  %4013 = vmatpush1.xpose.msra.mxu0 %v3690
  %4014 = vmatprep.subr.mxu0 %v3689
  %4015 = vmatpush1.xpose.msra.mxu0 %v3688
  %4016 = vmatprep.subr.mxu0 %v3687
  %4017 = vmatpush1.xpose.msra.mxu0 %v3686
  %4018 = vmatprep.subr.mxu0 %v3685
  %4019 = vmatpush1.xpose.msra.mxu0 %v3684
  %4020 = vmatprep.subr.mxu0 %v3683
  %4021 = vmatpush1.xpose.msra.mxu0 %v3682
  %4022 = vmatprep.subr.mxu0 %v3681
  %4023 = vmatpush1.xpose.msra.mxu0 %v3680
  %4024 = vmatprep.subr.mxu0 %v3679
  %4025 = vmatpush1.xpose.msra.mxu0 %v3678
  %4026 = vmatprep.subr.mxu0 %v3677
  %4027 = vmatpush1.xpose.msra.mxu0 %v3676
  %4028 = vmatprep.subr.mxu0 %v3675
  %4029 = vmatpush1.xpose.msra.mxu0 %v3674
  %4030 = vmatprep.subr.mxu0 %v3673
  %4031 = vmatpush1.xpose.msra.mxu0 %v3672
  %4032 = vmatprep.subr.mxu0 %v3735
  %4033 = vmatpush2.xpose.msra.mxu0 %v3734
  %4034 = vmatprep.subr.mxu0 %v3733
  %4035 = vmatpush2.xpose.msra.mxu0 %v3732
  %4036 = vmatprep.subr.mxu0 %v3731
  %4037 = vmatpush2.xpose.msra.mxu0 %v3730
  %4038 = vmatprep.subr.mxu0 %v3729
  %4039 = vmatpush2.xpose.msra.mxu0 %v3728
  %4040 = vmatprep.subr.mxu0 %v3727
  %4041 = vmatpush2.xpose.msra.mxu0 %v3726
  %4042 = vmatprep.subr.mxu0 %v3725
  %4043 = vmatpush2.xpose.msra.mxu0 %v3724
  %4044 = vmatprep.subr.mxu0 %v3723
  %4045 = vmatpush2.xpose.msra.mxu0 %v3722
  %4046 = vmatprep.subr.mxu0 %v3721
  %4047 = vmatpush2.xpose.msra.mxu0 %v3720
  %4048 = vmatprep.subr.mxu0 %v3719
  %4049 = vmatpush2.xpose.msra.mxu0 %v3718
  %4050 = vmatprep.subr.mxu0 %v3717
  %4051 = vmatpush2.xpose.msra.mxu0 %v3716
  %4052 = vmatprep.subr.mxu0 %v3715
  %4053 = vmatpush2.xpose.msra.mxu0 %v3714
  %4054 = vmatprep.subr.mxu0 %v3713
  %4055 = vmatpush2.xpose.msra.mxu0 %v3712
  %4056 = vmatprep.subr.mxu0 %v3711
  %4057 = vmatpush2.xpose.msra.mxu0 %v3710
  %4058 = vmatprep.subr.mxu0 %v3709
  %4059 = vmatpush2.xpose.msra.mxu0 %v3708
  %4060 = vmatprep.subr.mxu0 %v3707
  %4061 = vmatpush2.xpose.msra.mxu0 %v3706
  %4062 = vmatprep.subr.mxu0 %v3705
  %4063 = vmatpush2.xpose.msra.mxu0 %v3704
  %4064 = vmatprep.mubr.f32.mxu0 %v3974
  %4065 = vmatmul.mubr.f32.gmra.mxu0 %v3973
  %v4066 = vpop.f32.mrf.mxu0
  %v4067 = vadd.f32 %v3983, %v4066
  %v4068 = vpop.f32.mrf.mxu0
  %v4069 = vadd.f32 %v3987, %v4068
  %4070 = vdwg.mxu0
  %4071 = vmatprep.subr.mxu0 %v3767
  %4072 = vmatpush1.xpose.msra.mxu0 %v3766
  %4073 = vmatprep.subr.mxu0 %v3765
  %4074 = vmatpush1.xpose.msra.mxu0 %v3764
  %4075 = vmatprep.subr.mxu0 %v3763
  %4076 = vmatpush1.xpose.msra.mxu0 %v3762
  %4077 = vmatprep.subr.mxu0 %v3761
  %4078 = vmatpush1.xpose.msra.mxu0 %v3760
  %4079 = vmatprep.subr.mxu0 %v3759
  %4080 = vmatpush1.xpose.msra.mxu0 %v3758
  %4081 = vmatprep.subr.mxu0 %v3757
  %4082 = vmatpush1.xpose.msra.mxu0 %v3756
  %4083 = vmatprep.subr.mxu0 %v3755
  %4084 = vmatpush1.xpose.msra.mxu0 %v3754
  %4085 = vmatprep.subr.mxu0 %v3753
  %4086 = vmatpush1.xpose.msra.mxu0 %v3752
  %4087 = vmatprep.subr.mxu0 %v3751
  %4088 = vmatpush1.xpose.msra.mxu0 %v3750
  %4089 = vmatprep.subr.mxu0 %v3749
  %4090 = vmatpush1.xpose.msra.mxu0 %v3748
  %4091 = vmatprep.subr.mxu0 %v3747
  %4092 = vmatpush1.xpose.msra.mxu0 %v3746
  %4093 = vmatprep.subr.mxu0 %v3745
  %4094 = vmatpush1.xpose.msra.mxu0 %v3744
  %4095 = vmatprep.subr.mxu0 %v3743
  %4096 = vmatpush1.xpose.msra.mxu0 %v3742
  %4097 = vmatprep.subr.mxu0 %v3741
  %4098 = vmatpush1.xpose.msra.mxu0 %v3740
  %4099 = vmatprep.subr.mxu0 %v3739
  %4100 = vmatpush1.xpose.msra.mxu0 %v3738
  %4101 = vmatprep.subr.mxu0 %v3737
  %4102 = vmatpush1.xpose.msra.mxu0 %v3736
  %4103 = vmatprep.subr.mxu0 %v3799
  %4104 = vmatpush2.xpose.msra.mxu0 %v3798
  %4105 = vmatprep.subr.mxu0 %v3797
  %4106 = vmatpush2.xpose.msra.mxu0 %v3796
  %4107 = vmatprep.subr.mxu0 %v3795
  %4108 = vmatpush2.xpose.msra.mxu0 %v3794
  %4109 = vmatprep.subr.mxu0 %v3793
  %4110 = vmatpush2.xpose.msra.mxu0 %v3792
  %4111 = vmatprep.subr.mxu0 %v3791
  %4112 = vmatpush2.xpose.msra.mxu0 %v3790
  %4113 = vmatprep.subr.mxu0 %v3789
  %4114 = vmatpush2.xpose.msra.mxu0 %v3788
  %4115 = vmatprep.subr.mxu0 %v3787
  %4116 = vmatpush2.xpose.msra.mxu0 %v3786
  %4117 = vmatprep.subr.mxu0 %v3785
  %4118 = vmatpush2.xpose.msra.mxu0 %v3784
  %4119 = vmatprep.subr.mxu0 %v3783
  %4120 = vmatpush2.xpose.msra.mxu0 %v3782
  %4121 = vmatprep.subr.mxu0 %v3781
  %4122 = vmatpush2.xpose.msra.mxu0 %v3780
  %4123 = vmatprep.subr.mxu0 %v3779
  %4124 = vmatpush2.xpose.msra.mxu0 %v3778
  %4125 = vmatprep.subr.mxu0 %v3777
  %4126 = vmatpush2.xpose.msra.mxu0 %v3776
  %4127 = vmatprep.subr.mxu0 %v3775
  %4128 = vmatpush2.xpose.msra.mxu0 %v3774
  %4129 = vmatprep.subr.mxu0 %v3773
  %4130 = vmatpush2.xpose.msra.mxu0 %v3772
  %4131 = vmatprep.subr.mxu0 %v3771
  %4132 = vmatpush2.xpose.msra.mxu0 %v3770
  %4133 = vmatprep.subr.mxu0 %v3769
  %4134 = vmatpush2.xpose.msra.mxu0 %v3768
  %4135 = vmatprep.mubr.f32.mxu0 %v3974
  %4136 = vmatmul.mubr.f32.gmra.mxu0 %v3973
  %v4137 = vpop.f32.mrf.mxu0
  %v4138 = vadd.f32 %v3991, %v4137
  %v4139 = vpop.f32.mrf.mxu0
  %v4140 = vadd.f32 %v3995, %v4139
  %4141 = vdwg.mxu0
  %v4142 = vxor.u32 %v4067, 2147483648
  %v4143 = vxor.u32 %v4069, 2147483648
  %v4144 = vxor.u32 %v4138, 2147483648
  %v4145 = vxor.u32 %v4140, 2147483648
  %v4146 = vmul.f32 %v4142, 1.442695
  %v4147 = vpow.pop %v4146
  %v4148 = vmul.f32 %v4143, 1.442695
  %v4149 = vpow.pop %v4148
  %v4150 = vmul.f32 %v4144, 1.442695
  %v4151 = vpow.pop %v4150
  %v4152 = vmul.f32 %v4145, 1.442695
  %v4153 = vpow.pop %v4152
  %v4154 = vadd.f32 %v4147, 1.0
  %v4155 = vadd.f32 %v4149, 1.0
  %v4156 = vadd.f32 %v4151, 1.0
  %v4157 = vadd.f32 %v4153, 1.0
  %v4158 = vrcp.pop %v4154
  %v4159 = vmul.f32 1.0, %v4158
  %v4160 = vrcp.pop %v4155
  %v4161 = vmul.f32 1.0, %v4160
  %v4162 = vrcp.pop %v4156
  %v4163 = vmul.f32 1.0, %v4162
  %v4164 = vrcp.pop %v4157
  %v4165 = vmul.f32 1.0, %v4164
  %vm4166 = vcmp.lt.f32.partialorder %v3975, %v4159
  %vm4167 = vcmp.lt.f32.partialorder %v3976, %v4161
  %vm4168 = vcmp.lt.f32.partialorder %v3977, %v4163
  %vm4169 = vcmp.lt.f32.partialorder %v3978, %v4165
  %v4170 = vsel %vm4166, 1, 0
  %v4171 = vsel %vm4167, 1, 0
  %v4172 = vsel %vm4168, 1, 0
  %v4173 = vsel %vm4169, 1, 0
  %v4174 = vcvt.s32.f32 %v4170
  %v4175 = vcvt.s32.f32 %v4171
  %v4176 = vcvt.s32.f32 %v4172
  %v4177 = vcvt.s32.f32 %v4173
  %s4178 = scalar_lea.vmem %s14, 16
  %v4179 = vld [vmem:[%s4178] sm:$0xff]
  %v4180 = vld [vmem:[%s4178 + $0x8] sm:$0xff]
  %4181 = vmatprep.subr.mxu0 %v3703
  %4182 = vmatpush1.msra.mxu0 %v3702
  %4183 = vmatprep.subr.mxu0 %v3701
  %4184 = vmatpush1.msra.mxu0 %v3700
  %4185 = vmatprep.subr.mxu0 %v3699
  %4186 = vmatpush1.msra.mxu0 %v3698
  %4187 = vmatprep.subr.mxu0 %v3697
  %4188 = vmatpush1.msra.mxu0 %v3696
  %4189 = vmatprep.subr.mxu0 %v3695
  %4190 = vmatpush1.msra.mxu0 %v3694
  %4191 = vmatprep.subr.mxu0 %v3693
  %4192 = vmatpush1.msra.mxu0 %v3692
  %4193 = vmatprep.subr.mxu0 %v3691
  %4194 = vmatpush1.msra.mxu0 %v3690
  %4195 = vmatprep.subr.mxu0 %v3689
  %4196 = vmatpush1.msra.mxu0 %v3688
  %4197 = vmatprep.subr.mxu0 %v3687
  %4198 = vmatpush1.msra.mxu0 %v3686
  %4199 = vmatprep.subr.mxu0 %v3685
  %4200 = vmatpush1.msra.mxu0 %v3684
  %4201 = vmatprep.subr.mxu0 %v3683
  %4202 = vmatpush1.msra.mxu0 %v3682
  %4203 = vmatprep.subr.mxu0 %v3681
  %4204 = vmatpush1.msra.mxu0 %v3680
  %4205 = vmatprep.subr.mxu0 %v3679
  %4206 = vmatpush1.msra.mxu0 %v3678
  %4207 = vmatprep.subr.mxu0 %v3677
  %4208 = vmatpush1.msra.mxu0 %v3676
  %4209 = vmatprep.subr.mxu0 %v3675
  %4210 = vmatpush1.msra.mxu0 %v3674
  %4211 = vmatprep.subr.mxu0 %v3673
  %4212 = vmatpush1.msra.mxu0 %v3672
  %4213 = vmatprep.subr.mxu0 %v3735
  %4214 = vmatpush2.msra.mxu0 %v3734
  %4215 = vmatprep.subr.mxu0 %v3733
  %4216 = vmatpush2.msra.mxu0 %v3732
  %4217 = vmatprep.subr.mxu0 %v3731
  %4218 = vmatpush2.msra.mxu0 %v3730
  %4219 = vmatprep.subr.mxu0 %v3729
  %4220 = vmatpush2.msra.mxu0 %v3728
  %4221 = vmatprep.subr.mxu0 %v3727
  %4222 = vmatpush2.msra.mxu0 %v3726
  %4223 = vmatprep.subr.mxu0 %v3725
  %4224 = vmatpush2.msra.mxu0 %v3724
  %4225 = vmatprep.subr.mxu0 %v3723
  %4226 = vmatpush2.msra.mxu0 %v3722
  %4227 = vmatprep.subr.mxu0 %v3721
  %4228 = vmatpush2.msra.mxu0 %v3720
  %4229 = vmatprep.subr.mxu0 %v3719
  %4230 = vmatpush2.msra.mxu0 %v3718
  %4231 = vmatprep.subr.mxu0 %v3717
  %4232 = vmatpush2.msra.mxu0 %v3716
  %4233 = vmatprep.subr.mxu0 %v3715
  %4234 = vmatpush2.msra.mxu0 %v3714
  %4235 = vmatprep.subr.mxu0 %v3713
  %4236 = vmatpush2.msra.mxu0 %v3712
  %4237 = vmatprep.subr.mxu0 %v3711
  %4238 = vmatpush2.msra.mxu0 %v3710
  %4239 = vmatprep.subr.mxu0 %v3709
  %4240 = vmatpush2.msra.mxu0 %v3708
  %4241 = vmatprep.subr.mxu0 %v3707
  %4242 = vmatpush2.msra.mxu0 %v3706
  %4243 = vmatprep.subr.mxu0 %v3705
  %4244 = vmatpush2.msra.mxu0 %v3704
  %4245 = vmatprep.mubr.f32.mxu0 %v4175
  %4246 = vmatmul.mubr.f32.gmra.mxu0 %v4174
  %v4247 = vpop.f32.mrf.mxu0
  %v4248 = vadd.f32 %v3808, %v4247
  %v4249 = vpop.f32.mrf.mxu0
  %v4250 = vadd.f32 %v3812, %v4249
  %4251 = vdwg.mxu0
  %4252 = vmatprep.subr.mxu0 %v3767
  %4253 = vmatpush1.msra.mxu0 %v3766
  %4254 = vmatprep.subr.mxu0 %v3765
  %4255 = vmatpush1.msra.mxu0 %v3764
  %4256 = vmatprep.subr.mxu0 %v3763
  %4257 = vmatpush1.msra.mxu0 %v3762
  %4258 = vmatprep.subr.mxu0 %v3761
  %4259 = vmatpush1.msra.mxu0 %v3760
  %4260 = vmatprep.subr.mxu0 %v3759
  %4261 = vmatpush1.msra.mxu0 %v3758
  %4262 = vmatprep.subr.mxu0 %v3757
  %4263 = vmatpush1.msra.mxu0 %v3756
  %4264 = vmatprep.subr.mxu0 %v3755
  %4265 = vmatpush1.msra.mxu0 %v3754
  %4266 = vmatprep.subr.mxu0 %v3753
  %4267 = vmatpush1.msra.mxu0 %v3752
  %4268 = vmatprep.subr.mxu0 %v3751
  %4269 = vmatpush1.msra.mxu0 %v3750
  %4270 = vmatprep.subr.mxu0 %v3749
  %4271 = vmatpush1.msra.mxu0 %v3748
  %4272 = vmatprep.subr.mxu0 %v3747
  %4273 = vmatpush1.msra.mxu0 %v3746
  %4274 = vmatprep.subr.mxu0 %v3745
  %4275 = vmatpush1.msra.mxu0 %v3744
  %4276 = vmatprep.subr.mxu0 %v3743
  %4277 = vmatpush1.msra.mxu0 %v3742
  %4278 = vmatprep.subr.mxu0 %v3741
  %4279 = vmatpush1.msra.mxu0 %v3740
  %4280 = vmatprep.subr.mxu0 %v3739
  %4281 = vmatpush1.msra.mxu0 %v3738
  %4282 = vmatprep.subr.mxu0 %v3737
  %4283 = vmatpush1.msra.mxu0 %v3736
  %4284 = vmatprep.subr.mxu0 %v3799
  %4285 = vmatpush2.msra.mxu0 %v3798
  %4286 = vmatprep.subr.mxu0 %v3797
  %4287 = vmatpush2.msra.mxu0 %v3796
  %4288 = vmatprep.subr.mxu0 %v3795
  %4289 = vmatpush2.msra.mxu0 %v3794
  %4290 = vmatprep.subr.mxu0 %v3793
  %4291 = vmatpush2.msra.mxu0 %v3792
  %4292 = vmatprep.subr.mxu0 %v3791
  %4293 = vmatpush2.msra.mxu0 %v3790
  %4294 = vmatprep.subr.mxu0 %v3789
  %4295 = vmatpush2.msra.mxu0 %v3788
  %4296 = vmatprep.subr.mxu0 %v3787
  %4297 = vmatpush2.msra.mxu0 %v3786
  %4298 = vmatprep.subr.mxu0 %v3785
  %4299 = vmatpush2.msra.mxu0 %v3784
  %4300 = vmatprep.subr.mxu0 %v3783
  %4301 = vmatpush2.msra.mxu0 %v3782
  %4302 = vmatprep.subr.mxu0 %v3781
  %4303 = vmatpush2.msra.mxu0 %v3780
  %4304 = vmatprep.subr.mxu0 %v3779
  %4305 = vmatpush2.msra.mxu0 %v3778
  %4306 = vmatprep.subr.mxu0 %v3777
  %4307 = vmatpush2.msra.mxu0 %v3776
  %4308 = vmatprep.subr.mxu0 %v3775
  %4309 = vmatpush2.msra.mxu0 %v3774
  %4310 = vmatprep.subr.mxu0 %v3773
  %4311 = vmatpush2.msra.mxu0 %v3772
  %4312 = vmatprep.subr.mxu0 %v3771
  %4313 = vmatpush2.msra.mxu0 %v3770
  %4314 = vmatprep.subr.mxu0 %v3769
  %4315 = vmatpush2.msra.mxu0 %v3768
  %4316 = vmatprep.mubr.f32.mxu0 %v4177
  %4317 = vmatmul.mubr.f32.gmra.mxu0 %v4176
  %v4318 = vpop.f32.mrf.mxu0
  %v4319 = vadd.f32 %v4248, %v4318
  %v4320 = vpop.f32.mrf.mxu0
  %v4321 = vadd.f32 %v4250, %v4320
  %4322 = vdwg.mxu0
  %v4323 = vxor.u32 %v4319, 2147483648
  %v4324 = vxor.u32 %v4321, 2147483648
  %v4325 = vmul.f32 %v4323, 1.442695
  %v4326 = vpow.pop %v4325
  %v4327 = vmul.f32 %v4324, 1.442695
  %v4328 = vpow.pop %v4327
  %v4329 = vadd.f32 %v4326, 1.0
  %v4330 = vadd.f32 %v4328, 1.0
  %v4331 = vrcp.pop %v4329
  %v4332 = vmul.f32 1.0, %v4331
  %v4333 = vrcp.pop %v4330
  %v4334 = vmul.f32 1.0, %v4333
  %vm4335 = vcmp.lt.f32.partialorder %v4179, %v4332
  %vm4336 = vcmp.lt.f32.partialorder %v4180, %v4334
  %v4337 = vsel %vm4335, 1, 0
  %v4338 = vsel %vm4336, 1, 0
  %v4339 = vcvt.s32.f32 %v4337
  %v4340 = vcvt.s32.f32 %v4338
  %s4341 = scalar_lea.vmem %s15, 32
  %v4342 = vld [vmem:[%s4341] sm:$0xff]
  %v4343 = vld [vmem:[%s4341 + $0x8] sm:$0xff]
  %v4344 = vld [vmem:[%s4341 + $0x10] sm:$0xff]
  %v4345 = vld [vmem:[%s4341 + $0x18] sm:$0xff]
  %4346 = vmatprep.subr.mxu0 %v3703
  %4347 = vmatpush1.xpose.msra.mxu0 %v3702
  %4348 = vmatprep.subr.mxu0 %v3701
  %4349 = vmatpush1.xpose.msra.mxu0 %v3700
  %4350 = vmatprep.subr.mxu0 %v3699
  %4351 = vmatpush1.xpose.msra.mxu0 %v3698
  %4352 = vmatprep.subr.mxu0 %v3697
  %4353 = vmatpush1.xpose.msra.mxu0 %v3696
  %4354 = vmatprep.subr.mxu0 %v3695
  %4355 = vmatpush1.xpose.msra.mxu0 %v3694
  %4356 = vmatprep.subr.mxu0 %v3693
  %4357 = vmatpush1.xpose.msra.mxu0 %v3692
  %4358 = vmatprep.subr.mxu0 %v3691
  %4359 = vmatpush1.xpose.msra.mxu0 %v3690
  %4360 = vmatprep.subr.mxu0 %v3689
  %4361 = vmatpush1.xpose.msra.mxu0 %v3688
  %4362 = vmatprep.subr.mxu0 %v3687
  %4363 = vmatpush1.xpose.msra.mxu0 %v3686
  %4364 = vmatprep.subr.mxu0 %v3685
  %4365 = vmatpush1.xpose.msra.mxu0 %v3684
  %4366 = vmatprep.subr.mxu0 %v3683
  %4367 = vmatpush1.xpose.msra.mxu0 %v3682
  %4368 = vmatprep.subr.mxu0 %v3681
  %4369 = vmatpush1.xpose.msra.mxu0 %v3680
  %4370 = vmatprep.subr.mxu0 %v3679
  %4371 = vmatpush1.xpose.msra.mxu0 %v3678
  %4372 = vmatprep.subr.mxu0 %v3677
  %4373 = vmatpush1.xpose.msra.mxu0 %v3676
  %4374 = vmatprep.subr.mxu0 %v3675
  %4375 = vmatpush1.xpose.msra.mxu0 %v3674
  %4376 = vmatprep.subr.mxu0 %v3673
  %4377 = vmatpush1.xpose.msra.mxu0 %v3672
  %4378 = vmatprep.subr.mxu0 %v3735
  %4379 = vmatpush2.xpose.msra.mxu0 %v3734
  %4380 = vmatprep.subr.mxu0 %v3733
  %4381 = vmatpush2.xpose.msra.mxu0 %v3732
  %4382 = vmatprep.subr.mxu0 %v3731
  %4383 = vmatpush2.xpose.msra.mxu0 %v3730
  %4384 = vmatprep.subr.mxu0 %v3729
  %4385 = vmatpush2.xpose.msra.mxu0 %v3728
  %4386 = vmatprep.subr.mxu0 %v3727
  %4387 = vmatpush2.xpose.msra.mxu0 %v3726
  %4388 = vmatprep.subr.mxu0 %v3725
  %4389 = vmatpush2.xpose.msra.mxu0 %v3724
  %4390 = vmatprep.subr.mxu0 %v3723
  %4391 = vmatpush2.xpose.msra.mxu0 %v3722
  %4392 = vmatprep.subr.mxu0 %v3721
  %4393 = vmatpush2.xpose.msra.mxu0 %v3720
  %4394 = vmatprep.subr.mxu0 %v3719
  %4395 = vmatpush2.xpose.msra.mxu0 %v3718
  %4396 = vmatprep.subr.mxu0 %v3717
  %4397 = vmatpush2.xpose.msra.mxu0 %v3716
  %4398 = vmatprep.subr.mxu0 %v3715
  %4399 = vmatpush2.xpose.msra.mxu0 %v3714
  %4400 = vmatprep.subr.mxu0 %v3713
  %4401 = vmatpush2.xpose.msra.mxu0 %v3712
  %4402 = vmatprep.subr.mxu0 %v3711
  %4403 = vmatpush2.xpose.msra.mxu0 %v3710
  %4404 = vmatprep.subr.mxu0 %v3709
  %4405 = vmatpush2.xpose.msra.mxu0 %v3708
  %4406 = vmatprep.subr.mxu0 %v3707
  %4407 = vmatpush2.xpose.msra.mxu0 %v3706
  %4408 = vmatprep.subr.mxu0 %v3705
  %4409 = vmatpush2.xpose.msra.mxu0 %v3704
  %4410 = vmatprep.mubr.f32.mxu0 %v4340
  %4411 = vmatmul.mubr.f32.gmra.mxu0 %v4339
  %v4412 = vpop.f32.mrf.mxu0
  %v4413 = vadd.f32 %v3983, %v4412
  %v4414 = vpop.f32.mrf.mxu0
  %v4415 = vadd.f32 %v3987, %v4414
  %4416 = vdwg.mxu0
  %4417 = vmatprep.subr.mxu0 %v3767
  %4418 = vmatpush1.xpose.msra.mxu0 %v3766
  %4419 = vmatprep.subr.mxu0 %v3765
  %4420 = vmatpush1.xpose.msra.mxu0 %v3764
  %4421 = vmatprep.subr.mxu0 %v3763
  %4422 = vmatpush1.xpose.msra.mxu0 %v3762
  %4423 = vmatprep.subr.mxu0 %v3761
  %4424 = vmatpush1.xpose.msra.mxu0 %v3760
  %4425 = vmatprep.subr.mxu0 %v3759
  %4426 = vmatpush1.xpose.msra.mxu0 %v3758
  %4427 = vmatprep.subr.mxu0 %v3757
  %4428 = vmatpush1.xpose.msra.mxu0 %v3756
  %4429 = vmatprep.subr.mxu0 %v3755
  %4430 = vmatpush1.xpose.msra.mxu0 %v3754
  %4431 = vmatprep.subr.mxu0 %v3753
  %4432 = vmatpush1.xpose.msra.mxu0 %v3752
  %4433 = vmatprep.subr.mxu0 %v3751
  %4434 = vmatpush1.xpose.msra.mxu0 %v3750
  %4435 = vmatprep.subr.mxu0 %v3749
  %4436 = vmatpush1.xpose.msra.mxu0 %v3748
  %4437 = vmatprep.subr.mxu0 %v3747
  %4438 = vmatpush1.xpose.msra.mxu0 %v3746
  %4439 = vmatprep.subr.mxu0 %v3745
  %4440 = vmatpush1.xpose.msra.mxu0 %v3744
  %4441 = vmatprep.subr.mxu0 %v3743
  %4442 = vmatpush1.xpose.msra.mxu0 %v3742
  %4443 = vmatprep.subr.mxu0 %v3741
  %4444 = vmatpush1.xpose.msra.mxu0 %v3740
  %4445 = vmatprep.subr.mxu0 %v3739
  %4446 = vmatpush1.xpose.msra.mxu0 %v3738
  %4447 = vmatprep.subr.mxu0 %v3737
  %4448 = vmatpush1.xpose.msra.mxu0 %v3736
  %4449 = vmatprep.subr.mxu0 %v3799
  %4450 = vmatpush2.xpose.msra.mxu0 %v3798
  %4451 = vmatprep.subr.mxu0 %v3797
  %4452 = vmatpush2.xpose.msra.mxu0 %v3796
  %4453 = vmatprep.subr.mxu0 %v3795
  %4454 = vmatpush2.xpose.msra.mxu0 %v3794
  %4455 = vmatprep.subr.mxu0 %v3793
  %4456 = vmatpush2.xpose.msra.mxu0 %v3792
  %4457 = vmatprep.subr.mxu0 %v3791
  %4458 = vmatpush2.xpose.msra.mxu0 %v3790
  %4459 = vmatprep.subr.mxu0 %v3789
  %4460 = vmatpush2.xpose.msra.mxu0 %v3788
  %4461 = vmatprep.subr.mxu0 %v3787
  %4462 = vmatpush2.xpose.msra.mxu0 %v3786
  %4463 = vmatprep.subr.mxu0 %v3785
  %4464 = vmatpush2.xpose.msra.mxu0 %v3784
  %4465 = vmatprep.subr.mxu0 %v3783
  %4466 = vmatpush2.xpose.msra.mxu0 %v3782
  %4467 = vmatprep.subr.mxu0 %v3781
  %4468 = vmatpush2.xpose.msra.mxu0 %v3780
  %4469 = vmatprep.subr.mxu0 %v3779
  %4470 = vmatpush2.xpose.msra.mxu0 %v3778
  %4471 = vmatprep.subr.mxu0 %v3777
  %4472 = vmatpush2.xpose.msra.mxu0 %v3776
  %4473 = vmatprep.subr.mxu0 %v3775
  %4474 = vmatpush2.xpose.msra.mxu0 %v3774
  %4475 = vmatprep.subr.mxu0 %v3773
  %4476 = vmatpush2.xpose.msra.mxu0 %v3772
  %4477 = vmatprep.subr.mxu0 %v3771
  %4478 = vmatpush2.xpose.msra.mxu0 %v3770
  %4479 = vmatprep.subr.mxu0 %v3769
  %4480 = vmatpush2.xpose.msra.mxu0 %v3768
  %4481 = vmatprep.mubr.f32.mxu0 %v4340
  %4482 = vmatmul.mubr.f32.gmra.mxu0 %v4339
  %v4483 = vpop.f32.mrf.mxu0
  %v4484 = vadd.f32 %v3991, %v4483
  %v4485 = vpop.f32.mrf.mxu0
  %v4486 = vadd.f32 %v3995, %v4485
  %4487 = vdwg.mxu0
  %v4488 = vxor.u32 %v4413, 2147483648
  %v4489 = vxor.u32 %v4415, 2147483648
  %v4490 = vxor.u32 %v4484, 2147483648
  %v4491 = vxor.u32 %v4486, 2147483648
  %v4492 = vmul.f32 %v4488, 1.442695
  %v4493 = vpow.pop %v4492
  %v4494 = vmul.f32 %v4489, 1.442695
  %v4495 = vpow.pop %v4494
  %v4496 = vmul.f32 %v4490, 1.442695
  %v4497 = vpow.pop %v4496
  %v4498 = vmul.f32 %v4491, 1.442695
  %v4499 = vpow.pop %v4498
  %v4500 = vadd.f32 %v4493, 1.0
  %v4501 = vadd.f32 %v4495, 1.0
  %v4502 = vadd.f32 %v4497, 1.0
  %v4503 = vadd.f32 %v4499, 1.0
  %v4504 = vrcp.pop %v4500
  %v4505 = vmul.f32 1.0, %v4504
  %v4506 = vrcp.pop %v4501
  %v4507 = vmul.f32 1.0, %v4506
  %v4508 = vrcp.pop %v4502
  %v4509 = vmul.f32 1.0, %v4508
  %v4510 = vrcp.pop %v4503
  %v4511 = vmul.f32 1.0, %v4510
  %vm4512 = vcmp.lt.f32.partialorder %v4342, %v4505
  %vm4513 = vcmp.lt.f32.partialorder %v4343, %v4507
  %vm4514 = vcmp.lt.f32.partialorder %v4344, %v4509
  %vm4515 = vcmp.lt.f32.partialorder %v4345, %v4511
  %v4516 = vsel %vm4512, 1, 0
  %v4517 = vsel %vm4513, 1, 0
  %v4518 = vsel %vm4514, 1, 0
  %v4519 = vsel %vm4515, 1, 0
  %v4520 = vcvt.s32.f32 %v4516
  %v4521 = vcvt.s32.f32 %v4517
  %v4522 = vcvt.s32.f32 %v4518
  %v4523 = vcvt.s32.f32 %v4519
  %s4524 = scalar_lea.vmem %s14, 32
  %v4525 = vld [vmem:[%s4524] sm:$0xff]
  %v4526 = vld [vmem:[%s4524 + $0x8] sm:$0xff]
  %4527 = vmatprep.subr.mxu0 %v3703
  %4528 = vmatpush1.msra.mxu0 %v3702
  %4529 = vmatprep.subr.mxu0 %v3701
  %4530 = vmatpush1.msra.mxu0 %v3700
  %4531 = vmatprep.subr.mxu0 %v3699
  %4532 = vmatpush1.msra.mxu0 %v3698
  %4533 = vmatprep.subr.mxu0 %v3697
  %4534 = vmatpush1.msra.mxu0 %v3696
  %4535 = vmatprep.subr.mxu0 %v3695
  %4536 = vmatpush1.msra.mxu0 %v3694
  %4537 = vmatprep.subr.mxu0 %v3693
  %4538 = vmatpush1.msra.mxu0 %v3692
  %4539 = vmatprep.subr.mxu0 %v3691
  %4540 = vmatpush1.msra.mxu0 %v3690
  %4541 = vmatprep.subr.mxu0 %v3689
  %4542 = vmatpush1.msra.mxu0 %v3688
  %4543 = vmatprep.subr.mxu0 %v3687
  %4544 = vmatpush1.msra.mxu0 %v3686
  %4545 = vmatprep.subr.mxu0 %v3685
  %4546 = vmatpush1.msra.mxu0 %v3684
  %4547 = vmatprep.subr.mxu0 %v3683
  %4548 = vmatpush1.msra.mxu0 %v3682
  %4549 = vmatprep.subr.mxu0 %v3681
  %4550 = vmatpush1.msra.mxu0 %v3680
  %4551 = vmatprep.subr.mxu0 %v3679
  %4552 = vmatpush1.msra.mxu0 %v3678
  %4553 = vmatprep.subr.mxu0 %v3677
  %4554 = vmatpush1.msra.mxu0 %v3676
  %4555 = vmatprep.subr.mxu0 %v3675
  %4556 = vmatpush1.msra.mxu0 %v3674
  %4557 = vmatprep.subr.mxu0 %v3673
  %4558 = vmatpush1.msra.mxu0 %v3672
  %4559 = vmatprep.subr.mxu0 %v3735
  %4560 = vmatpush2.msra.mxu0 %v3734
  %4561 = vmatprep.subr.mxu0 %v3733
  %4562 = vmatpush2.msra.mxu0 %v3732
  %4563 = vmatprep.subr.mxu0 %v3731
  %4564 = vmatpush2.msra.mxu0 %v3730
  %4565 = vmatprep.subr.mxu0 %v3729
  %4566 = vmatpush2.msra.mxu0 %v3728
  %4567 = vmatprep.subr.mxu0 %v3727
  %4568 = vmatpush2.msra.mxu0 %v3726
  %4569 = vmatprep.subr.mxu0 %v3725
  %4570 = vmatpush2.msra.mxu0 %v3724
  %4571 = vmatprep.subr.mxu0 %v3723
  %4572 = vmatpush2.msra.mxu0 %v3722
  %4573 = vmatprep.subr.mxu0 %v3721
  %4574 = vmatpush2.msra.mxu0 %v3720
  %4575 = vmatprep.subr.mxu0 %v3719
  %4576 = vmatpush2.msra.mxu0 %v3718
  %4577 = vmatprep.subr.mxu0 %v3717
  %4578 = vmatpush2.msra.mxu0 %v3716
  %4579 = vmatprep.subr.mxu0 %v3715
  %4580 = vmatpush2.msra.mxu0 %v3714
  %4581 = vmatprep.subr.mxu0 %v3713
  %4582 = vmatpush2.msra.mxu0 %v3712
  %4583 = vmatprep.subr.mxu0 %v3711
  %4584 = vmatpush2.msra.mxu0 %v3710
  %4585 = vmatprep.subr.mxu0 %v3709
  %4586 = vmatpush2.msra.mxu0 %v3708
  %4587 = vmatprep.subr.mxu0 %v3707
  %4588 = vmatpush2.msra.mxu0 %v3706
  %4589 = vmatprep.subr.mxu0 %v3705
  %4590 = vmatpush2.msra.mxu0 %v3704
  %4591 = vmatprep.mubr.f32.mxu0 %v4521
  %4592 = vmatmul.mubr.f32.gmra.mxu0 %v4520
  %v4593 = vpop.f32.mrf.mxu0
  %v4594 = vadd.f32 %v3808, %v4593
  %v4595 = vpop.f32.mrf.mxu0
  %v4596 = vadd.f32 %v3812, %v4595
  %4597 = vdwg.mxu0
  %4598 = vmatprep.subr.mxu0 %v3767
  %4599 = vmatpush1.msra.mxu0 %v3766
  %4600 = vmatprep.subr.mxu0 %v3765
  %4601 = vmatpush1.msra.mxu0 %v3764
  %4602 = vmatprep.subr.mxu0 %v3763
  %4603 = vmatpush1.msra.mxu0 %v3762
  %4604 = vmatprep.subr.mxu0 %v3761
  %4605 = vmatpush1.msra.mxu0 %v3760
  %4606 = vmatprep.subr.mxu0 %v3759
  %4607 = vmatpush1.msra.mxu0 %v3758
  %4608 = vmatprep.subr.mxu0 %v3757
  %4609 = vmatpush1.msra.mxu0 %v3756
  %4610 = vmatprep.subr.mxu0 %v3755
  %4611 = vmatpush1.msra.mxu0 %v3754
  %4612 = vmatprep.subr.mxu0 %v3753
  %4613 = vmatpush1.msra.mxu0 %v3752
  %4614 = vmatprep.subr.mxu0 %v3751
  %4615 = vmatpush1.msra.mxu0 %v3750
  %4616 = vmatprep.subr.mxu0 %v3749
  %4617 = vmatpush1.msra.mxu0 %v3748
  %4618 = vmatprep.subr.mxu0 %v3747
  %4619 = vmatpush1.msra.mxu0 %v3746
  %4620 = vmatprep.subr.mxu0 %v3745
  %4621 = vmatpush1.msra.mxu0 %v3744
  %4622 = vmatprep.subr.mxu0 %v3743
  %4623 = vmatpush1.msra.mxu0 %v3742
  %4624 = vmatprep.subr.mxu0 %v3741
  %4625 = vmatpush1.msra.mxu0 %v3740
  %4626 = vmatprep.subr.mxu0 %v3739
  %4627 = vmatpush1.msra.mxu0 %v3738
  %4628 = vmatprep.subr.mxu0 %v3737
  %4629 = vmatpush1.msra.mxu0 %v3736
  %4630 = vmatprep.subr.mxu0 %v3799
  %4631 = vmatpush2.msra.mxu0 %v3798
  %4632 = vmatprep.subr.mxu0 %v3797
  %4633 = vmatpush2.msra.mxu0 %v3796
  %4634 = vmatprep.subr.mxu0 %v3795
  %4635 = vmatpush2.msra.mxu0 %v3794
  %4636 = vmatprep.subr.mxu0 %v3793
  %4637 = vmatpush2.msra.mxu0 %v3792
  %4638 = vmatprep.subr.mxu0 %v3791
  %4639 = vmatpush2.msra.mxu0 %v3790
  %4640 = vmatprep.subr.mxu0 %v3789
  %4641 = vmatpush2.msra.mxu0 %v3788
  %4642 = vmatprep.subr.mxu0 %v3787
  %4643 = vmatpush2.msra.mxu0 %v3786
  %4644 = vmatprep.subr.mxu0 %v3785
  %4645 = vmatpush2.msra.mxu0 %v3784
  %4646 = vmatprep.subr.mxu0 %v3783
  %4647 = vmatpush2.msra.mxu0 %v3782
  %4648 = vmatprep.subr.mxu0 %v3781
  %4649 = vmatpush2.msra.mxu0 %v3780
  %4650 = vmatprep.subr.mxu0 %v3779
  %4651 = vmatpush2.msra.mxu0 %v3778
  %4652 = vmatprep.subr.mxu0 %v3777
  %4653 = vmatpush2.msra.mxu0 %v3776
  %4654 = vmatprep.subr.mxu0 %v3775
  %4655 = vmatpush2.msra.mxu0 %v3774
  %4656 = vmatprep.subr.mxu0 %v3773
  %4657 = vmatpush2.msra.mxu0 %v3772
  %4658 = vmatprep.subr.mxu0 %v3771
  %4659 = vmatpush2.msra.mxu0 %v3770
  %4660 = vmatprep.subr.mxu0 %v3769
  %4661 = vmatpush2.msra.mxu0 %v3768
  %4662 = vmatprep.mubr.f32.mxu0 %v4523
  %4663 = vmatmul.mubr.f32.gmra.mxu0 %v4522
  %v4664 = vpop.f32.mrf.mxu0
  %v4665 = vadd.f32 %v4594, %v4664
  %v4666 = vpop.f32.mrf.mxu0
  %v4667 = vadd.f32 %v4596, %v4666
  %4668 = vdwg.mxu0
  %v4669 = vxor.u32 %v4665, 2147483648
  %v4670 = vxor.u32 %v4667, 2147483648
  %v4671 = vmul.f32 %v4669, 1.442695
  %v4672 = vpow.pop %v4671
  %v4673 = vmul.f32 %v4670, 1.442695
  %v4674 = vpow.pop %v4673
  %v4675 = vadd.f32 %v4672, 1.0
  %v4676 = vadd.f32 %v4674, 1.0
  %v4677 = vrcp.pop %v4675
  %v4678 = vmul.f32 1.0, %v4677
  %v4679 = vrcp.pop %v4676
  %v4680 = vmul.f32 1.0, %v4679
  %vm4681 = vcmp.lt.f32.partialorder %v4525, %v4678
  %vm4682 = vcmp.lt.f32.partialorder %v4526, %v4680
  %v4683 = vsel %vm4681, 1, 0
  %v4684 = vsel %vm4682, 1, 0
  %v4685 = vcvt.s32.f32 %v4683
  %v4686 = vcvt.s32.f32 %v4684
  %v4687 = vld [vmem:[%s7] sm:$0xff]
  %v4688 = vld [vmem:[%s7 + $0x8] sm:$0xff]
  %v4689 = vld [vmem:[%s7 + $0x10] sm:$0xff]
  %v4690 = vld [vmem:[%s7 + $0x18] sm:$0xff]
  %v4691 = vld [vmem:[%s7 + $0x20] sm:$0xff]
  %v4692 = vld [vmem:[%s7 + $0x28] sm:$0xff]
  %v4693 = vld [vmem:[%s7 + $0x30] sm:$0xff]
  %v4694 = vld [vmem:[%s7 + $0x38] sm:$0xff]
  %v4695 = vld [vmem:[%s7 + $0x40] sm:$0xff]
  %v4696 = vld [vmem:[%s7 + $0x48] sm:$0xff]
  %v4697 = vld [vmem:[%s7 + $0x50] sm:$0xff]
  %v4698 = vld [vmem:[%s7 + $0x58] sm:$0xff]
  %v4699 = vld [vmem:[%s7 + $0x60] sm:$0xff]
  %v4700 = vld [vmem:[%s7 + $0x68] sm:$0xff]
  %v4701 = vld [vmem:[%s7 + $0x70] sm:$0xff]
  %v4702 = vld [vmem:[%s7 + $0x78] sm:$0xff]
  %v4703 = vld [vmem:[%s7 + $0x80] sm:$0xff]
  %v4704 = vld [vmem:[%s7 + $0x88] sm:$0xff]
  %v4705 = vld [vmem:[%s7 + $0x90] sm:$0xff]
  %v4706 = vld [vmem:[%s7 + $0x98] sm:$0xff]
  %v4707 = vld [vmem:[%s7 + $0xa0] sm:$0xff]
  %v4708 = vld [vmem:[%s7 + $0xa8] sm:$0xff]
  %v4709 = vld [vmem:[%s7 + $0xb0] sm:$0xff]
  %v4710 = vld [vmem:[%s7 + $0xb8] sm:$0xff]
  %v4711 = vld [vmem:[%s7 + $0xc0] sm:$0xff]
  %v4712 = vld [vmem:[%s7 + $0xc8] sm:$0xff]
  %v4713 = vld [vmem:[%s7 + $0xd0] sm:$0xff]
  %v4714 = vld [vmem:[%s7 + $0xd8] sm:$0xff]
  %v4715 = vld [vmem:[%s7 + $0xe0] sm:$0xff]
  %v4716 = vld [vmem:[%s7 + $0xe8] sm:$0xff]
  %v4717 = vld [vmem:[%s7 + $0xf0] sm:$0xff]
  %v4718 = vld [vmem:[%s7 + $0xf8] sm:$0xff]
  %v4719 = vld [vmem:[%s8] sm:$0x3]
  %v4720 = vld [vmem:[%s9] sm:$0x1]
  %v4721 = vld [vmem:[%s16] sm:$0xff]
  %v4723 = vlaneseq
  %v4724 = vshrl.u32 %v4723, 7
  %v4725 = vsub.s32 0, %v4724
  %v4726 = vrot.slane %v4720, %v4725
  %4728 = vmatprep.subr.mxu0 0.0
  %4729 = vmatpush1.msra.mxu0 %v4702
  %4730 = vmatprep.subr.mxu0 0.0
  %4731 = vmatpush1.msra.mxu0 %v4701
  %4732 = vmatprep.subr.mxu0 0.0
  %4733 = vmatpush1.msra.mxu0 %v4700
  %4734 = vmatprep.subr.mxu0 0.0
  %4735 = vmatpush1.msra.mxu0 %v4699
  %4736 = vmatprep.subr.mxu0 0.0
  %4737 = vmatpush1.msra.mxu0 %v4698
  %4738 = vmatprep.subr.mxu0 0.0
  %4739 = vmatpush1.msra.mxu0 %v4697
  %4740 = vmatprep.subr.mxu0 0.0
  %4741 = vmatpush1.msra.mxu0 %v4696
  %4742 = vmatprep.subr.mxu0 0.0
  %4743 = vmatpush1.msra.mxu0 %v4695
  %4744 = vmatprep.subr.mxu0 0.0
  %4745 = vmatpush1.msra.mxu0 %v4694
  %4746 = vmatprep.subr.mxu0 0.0
  %4747 = vmatpush1.msra.mxu0 %v4693
  %4748 = vmatprep.subr.mxu0 0.0
  %4749 = vmatpush1.msra.mxu0 %v4692
  %4750 = vmatprep.subr.mxu0 0.0
  %4751 = vmatpush1.msra.mxu0 %v4691
  %4752 = vmatprep.subr.mxu0 0.0
  %4753 = vmatpush1.msra.mxu0 %v4690
  %4754 = vmatprep.subr.mxu0 0.0
  %4755 = vmatpush1.msra.mxu0 %v4689
  %4756 = vmatprep.subr.mxu0 0.0
  %4757 = vmatpush1.msra.mxu0 %v4688
  %4758 = vmatprep.subr.mxu0 0.0
  %4759 = vmatpush1.msra.mxu0 %v4687
  %4760 = vmatprep.subr.mxu0 0.0
  %4761 = vmatpush2.msra.mxu0 %v4718
  %4762 = vmatprep.subr.mxu0 0.0
  %4763 = vmatpush2.msra.mxu0 %v4717
  %4764 = vmatprep.subr.mxu0 0.0
  %4765 = vmatpush2.msra.mxu0 %v4716
  %4766 = vmatprep.subr.mxu0 0.0
  %4767 = vmatpush2.msra.mxu0 %v4715
  %4768 = vmatprep.subr.mxu0 0.0
  %4769 = vmatpush2.msra.mxu0 %v4714
  %4770 = vmatprep.subr.mxu0 0.0
  %4771 = vmatpush2.msra.mxu0 %v4713
  %4772 = vmatprep.subr.mxu0 0.0
  %4773 = vmatpush2.msra.mxu0 %v4712
  %4774 = vmatprep.subr.mxu0 0.0
  %4775 = vmatpush2.msra.mxu0 %v4711
  %4776 = vmatprep.subr.mxu0 0.0
  %4777 = vmatpush2.msra.mxu0 %v4710
  %4778 = vmatprep.subr.mxu0 0.0
  %4779 = vmatpush2.msra.mxu0 %v4709
  %4780 = vmatprep.subr.mxu0 0.0
  %4781 = vmatpush2.msra.mxu0 %v4708
  %4782 = vmatprep.subr.mxu0 0.0
  %4783 = vmatpush2.msra.mxu0 %v4707
  %4784 = vmatprep.subr.mxu0 0.0
  %4785 = vmatpush2.msra.mxu0 %v4706
  %4786 = vmatprep.subr.mxu0 0.0
  %4787 = vmatpush2.msra.mxu0 %v4705
  %4788 = vmatprep.subr.mxu0 0.0
  %4789 = vmatpush2.msra.mxu0 %v4704
  %4790 = vmatprep.subr.mxu0 0.0
  %4791 = vmatpush2.msra.mxu0 %v4703
  %4792 = vmatprep.mubr.f32.mxu0 %v4686
  %4793 = vmatmul.mubr.f32.gmra.mxu0 %v4685
  %v4794 = vpop.f32.mrf.mxu0
  %v4795 = vadd.f32 %v4726, %v4794
  %v4796 = vpop.f32.mrf.mxu0
  %4797 = vdwg.mxu0
  %v4798 = vxor.u32 %v4795, 2147483648
  %v4799 = vmul.f32 %v4798, 1.442695
  %v4800 = vpow.pop %v4799
  %v4801 = vadd.f32 %v4800, 1.0
  %v4802 = vrcp.pop %v4801
  %v4803 = vmul.f32 1.0, %v4802
  %vm4804 = vcmp.lt.f32.partialorder %v4721, %v4803
  %v4805 = vsel %vm4804, 1, 0
  %v4806 = vcvt.s32.f32 %v4805
  %v4807 = vld [vmem:[%s17] sm:$0xff]
  %v4808 = vld [vmem:[%s17 + $0x8] sm:$0xff]
  %v4810 = vlaneseq
  %v4811 = vshrl.u32 %v4810, 7
  %v4812 = vsub.s32 0, %v4811
  %v4813 = vrot.slane %v4719, %v4812
  %v4814 = vlaneseq
  %v4815 = vshrl.u32 %v4814, 7
  %v4816 = vsub.s32 1, %v4815
  %v4817 = vrot.slane %v4719, %v4816
  %4820 = vmatprep.subr.mxu0 0.0
  %4821 = vmatpush1.xpose.msra.mxu0 %v4702
  %4822 = vmatprep.subr.mxu0 0.0
  %4823 = vmatpush1.xpose.msra.mxu0 %v4701
  %4824 = vmatprep.subr.mxu0 0.0
  %4825 = vmatpush1.xpose.msra.mxu0 %v4700
  %4826 = vmatprep.subr.mxu0 0.0
  %4827 = vmatpush1.xpose.msra.mxu0 %v4699
  %4828 = vmatprep.subr.mxu0 0.0
  %4829 = vmatpush1.xpose.msra.mxu0 %v4698
  %4830 = vmatprep.subr.mxu0 0.0
  %4831 = vmatpush1.xpose.msra.mxu0 %v4697
  %4832 = vmatprep.subr.mxu0 0.0
  %4833 = vmatpush1.xpose.msra.mxu0 %v4696
  %4834 = vmatprep.subr.mxu0 0.0
  %4835 = vmatpush1.xpose.msra.mxu0 %v4695
  %4836 = vmatprep.subr.mxu0 0.0
  %4837 = vmatpush1.xpose.msra.mxu0 %v4694
  %4838 = vmatprep.subr.mxu0 0.0
  %4839 = vmatpush1.xpose.msra.mxu0 %v4693
  %4840 = vmatprep.subr.mxu0 0.0
  %4841 = vmatpush1.xpose.msra.mxu0 %v4692
  %4842 = vmatprep.subr.mxu0 0.0
  %4843 = vmatpush1.xpose.msra.mxu0 %v4691
  %4844 = vmatprep.subr.mxu0 0.0
  %4845 = vmatpush1.xpose.msra.mxu0 %v4690
  %4846 = vmatprep.subr.mxu0 0.0
  %4847 = vmatpush1.xpose.msra.mxu0 %v4689
  %4848 = vmatprep.subr.mxu0 0.0
  %4849 = vmatpush1.xpose.msra.mxu0 %v4688
  %4850 = vmatprep.subr.mxu0 0.0
  %4851 = vmatpush1.xpose.msra.mxu0 %v4687
  %4852 = vmatprep.subr.mxu0 0.0
  %4853 = vmatpush2.xpose.msra.mxu0 %v4718
  %4854 = vmatprep.subr.mxu0 0.0
  %4855 = vmatpush2.xpose.msra.mxu0 %v4717
  %4856 = vmatprep.subr.mxu0 0.0
  %4857 = vmatpush2.xpose.msra.mxu0 %v4716
  %4858 = vmatprep.subr.mxu0 0.0
  %4859 = vmatpush2.xpose.msra.mxu0 %v4715
  %4860 = vmatprep.subr.mxu0 0.0
  %4861 = vmatpush2.xpose.msra.mxu0 %v4714
  %4862 = vmatprep.subr.mxu0 0.0
  %4863 = vmatpush2.xpose.msra.mxu0 %v4713
  %4864 = vmatprep.subr.mxu0 0.0
  %4865 = vmatpush2.xpose.msra.mxu0 %v4712
  %4866 = vmatprep.subr.mxu0 0.0
  %4867 = vmatpush2.xpose.msra.mxu0 %v4711
  %4868 = vmatprep.subr.mxu0 0.0
  %4869 = vmatpush2.xpose.msra.mxu0 %v4710
  %4870 = vmatprep.subr.mxu0 0.0
  %4871 = vmatpush2.xpose.msra.mxu0 %v4709
  %4872 = vmatprep.subr.mxu0 0.0
  %4873 = vmatpush2.xpose.msra.mxu0 %v4708
  %4874 = vmatprep.subr.mxu0 0.0
  %4875 = vmatpush2.xpose.msra.mxu0 %v4707
  %4876 = vmatprep.subr.mxu0 0.0
  %4877 = vmatpush2.xpose.msra.mxu0 %v4706
  %4878 = vmatprep.subr.mxu0 0.0
  %4879 = vmatpush2.xpose.msra.mxu0 %v4705
  %4880 = vmatprep.subr.mxu0 0.0
  %4881 = vmatpush2.xpose.msra.mxu0 %v4704
  %4882 = vmatprep.subr.mxu0 0.0
  %4883 = vmatpush2.xpose.msra.mxu0 %v4703
  %4884 = vmatprep.mubr.f32.mxu0 0.0
  %4885 = vmatmul.mubr.f32.gmra.mxu0 %v4806
  %v4886 = vpop.f32.mrf.mxu0
  %v4887 = vadd.f32 %v4813, %v4886
  %v4888 = vpop.f32.mrf.mxu0
  %v4889 = vadd.f32 %v4817, %v4888
  %4890 = vdwg.mxu0
  %v4891 = vxor.u32 %v4887, 2147483648
  %v4892 = vxor.u32 %v4889, 2147483648
  %v4893 = vmul.f32 %v4891, 1.442695
  %v4894 = vpow.pop %v4893
  %v4895 = vmul.f32 %v4892, 1.442695
  %v4896 = vpow.pop %v4895
  %v4897 = vadd.f32 %v4894, 1.0
  %v4898 = vadd.f32 %v4896, 1.0
  %v4899 = vrcp.pop %v4897
  %v4900 = vmul.f32 1.0, %v4899
  %v4901 = vrcp.pop %v4898
  %v4902 = vmul.f32 1.0, %v4901
  %vm4903 = vcmp.lt.f32.partialorder %v4807, %v4900
  %vm4904 = vcmp.lt.f32.partialorder %v4808, %v4902
  %v4905 = vsel %vm4903, 1, 0
  %v4906 = vsel %vm4904, 1, 0
  %v4907 = vcvt.s32.f32 %v4905
  %v4908 = vcvt.s32.f32 %v4906
  %s4909 = scalar_lea.vmem %s16, 8
  %v4910 = vld [vmem:[%s4909] sm:$0xff]
  %4911 = vmatprep.subr.mxu0 0.0
  %4912 = vmatpush1.msra.mxu0 %v4702
  %4913 = vmatprep.subr.mxu0 0.0
  %4914 = vmatpush1.msra.mxu0 %v4701
  %4915 = vmatprep.subr.mxu0 0.0
  %4916 = vmatpush1.msra.mxu0 %v4700
  %4917 = vmatprep.subr.mxu0 0.0
  %4918 = vmatpush1.msra.mxu0 %v4699
  %4919 = vmatprep.subr.mxu0 0.0
  %4920 = vmatpush1.msra.mxu0 %v4698
  %4921 = vmatprep.subr.mxu0 0.0
  %4922 = vmatpush1.msra.mxu0 %v4697
  %4923 = vmatprep.subr.mxu0 0.0
  %4924 = vmatpush1.msra.mxu0 %v4696
  %4925 = vmatprep.subr.mxu0 0.0
  %4926 = vmatpush1.msra.mxu0 %v4695
  %4927 = vmatprep.subr.mxu0 0.0
  %4928 = vmatpush1.msra.mxu0 %v4694
  %4929 = vmatprep.subr.mxu0 0.0
  %4930 = vmatpush1.msra.mxu0 %v4693
  %4931 = vmatprep.subr.mxu0 0.0
  %4932 = vmatpush1.msra.mxu0 %v4692
  %4933 = vmatprep.subr.mxu0 0.0
  %4934 = vmatpush1.msra.mxu0 %v4691
  %4935 = vmatprep.subr.mxu0 0.0
  %4936 = vmatpush1.msra.mxu0 %v4690
  %4937 = vmatprep.subr.mxu0 0.0
  %4938 = vmatpush1.msra.mxu0 %v4689
  %4939 = vmatprep.subr.mxu0 0.0
  %4940 = vmatpush1.msra.mxu0 %v4688
  %4941 = vmatprep.subr.mxu0 0.0
  %4942 = vmatpush1.msra.mxu0 %v4687
  %4943 = vmatprep.subr.mxu0 0.0
  %4944 = vmatpush2.msra.mxu0 %v4718
  %4945 = vmatprep.subr.mxu0 0.0
  %4946 = vmatpush2.msra.mxu0 %v4717
  %4947 = vmatprep.subr.mxu0 0.0
  %4948 = vmatpush2.msra.mxu0 %v4716
  %4949 = vmatprep.subr.mxu0 0.0
  %4950 = vmatpush2.msra.mxu0 %v4715
  %4951 = vmatprep.subr.mxu0 0.0
  %4952 = vmatpush2.msra.mxu0 %v4714
  %4953 = vmatprep.subr.mxu0 0.0
  %4954 = vmatpush2.msra.mxu0 %v4713
  %4955 = vmatprep.subr.mxu0 0.0
  %4956 = vmatpush2.msra.mxu0 %v4712
  %4957 = vmatprep.subr.mxu0 0.0
  %4958 = vmatpush2.msra.mxu0 %v4711
  %4959 = vmatprep.subr.mxu0 0.0
  %4960 = vmatpush2.msra.mxu0 %v4710
  %4961 = vmatprep.subr.mxu0 0.0
  %4962 = vmatpush2.msra.mxu0 %v4709
  %4963 = vmatprep.subr.mxu0 0.0
  %4964 = vmatpush2.msra.mxu0 %v4708
  %4965 = vmatprep.subr.mxu0 0.0
  %4966 = vmatpush2.msra.mxu0 %v4707
  %4967 = vmatprep.subr.mxu0 0.0
  %4968 = vmatpush2.msra.mxu0 %v4706
  %4969 = vmatprep.subr.mxu0 0.0
  %4970 = vmatpush2.msra.mxu0 %v4705
  %4971 = vmatprep.subr.mxu0 0.0
  %4972 = vmatpush2.msra.mxu0 %v4704
  %4973 = vmatprep.subr.mxu0 0.0
  %4974 = vmatpush2.msra.mxu0 %v4703
  %4975 = vmatprep.mubr.f32.mxu0 %v4908
  %4976 = vmatmul.mubr.f32.gmra.mxu0 %v4907
  %v4977 = vpop.f32.mrf.mxu0
  %v4978 = vadd.f32 %v4726, %v4977
  %v4979 = vpop.f32.mrf.mxu0
  %4980 = vdwg.mxu0
  %v4981 = vxor.u32 %v4978, 2147483648
  %v4982 = vmul.f32 %v4981, 1.442695
  %v4983 = vpow.pop %v4982
  %v4984 = vadd.f32 %v4983, 1.0
  %v4985 = vrcp.pop %v4984
  %v4986 = vmul.f32 1.0, %v4985
  %vm4987 = vcmp.lt.f32.partialorder %v4910, %v4986
  %v4988 = vsel %vm4987, 1, 0
  %v4989 = vcvt.s32.f32 %v4988
  %s4990 = scalar_lea.vmem %s17, 16
  %v4991 = vld [vmem:[%s4990] sm:$0xff]
  %v4992 = vld [vmem:[%s4990 + $0x8] sm:$0xff]
  %4993 = vmatprep.subr.mxu0 0.0
  %4994 = vmatpush1.xpose.msra.mxu0 %v4702
  %4995 = vmatprep.subr.mxu0 0.0
  %4996 = vmatpush1.xpose.msra.mxu0 %v4701
  %4997 = vmatprep.subr.mxu0 0.0
  %4998 = vmatpush1.xpose.msra.mxu0 %v4700
  %4999 = vmatprep.subr.mxu0 0.0
  %5000 = vmatpush1.xpose.msra.mxu0 %v4699
  %5001 = vmatprep.subr.mxu0 0.0
  %5002 = vmatpush1.xpose.msra.mxu0 %v4698
  %5003 = vmatprep.subr.mxu0 0.0
  %5004 = vmatpush1.xpose.msra.mxu0 %v4697
  %5005 = vmatprep.subr.mxu0 0.0
  %5006 = vmatpush1.xpose.msra.mxu0 %v4696
  %5007 = vmatprep.subr.mxu0 0.0
  %5008 = vmatpush1.xpose.msra.mxu0 %v4695
  %5009 = vmatprep.subr.mxu0 0.0
  %5010 = vmatpush1.xpose.msra.mxu0 %v4694
  %5011 = vmatprep.subr.mxu0 0.0
  %5012 = vmatpush1.xpose.msra.mxu0 %v4693
  %5013 = vmatprep.subr.mxu0 0.0
  %5014 = vmatpush1.xpose.msra.mxu0 %v4692
  %5015 = vmatprep.subr.mxu0 0.0
  %5016 = vmatpush1.xpose.msra.mxu0 %v4691
  %5017 = vmatprep.subr.mxu0 0.0
  %5018 = vmatpush1.xpose.msra.mxu0 %v4690
  %5019 = vmatprep.subr.mxu0 0.0
  %5020 = vmatpush1.xpose.msra.mxu0 %v4689
  %5021 = vmatprep.subr.mxu0 0.0
  %5022 = vmatpush1.xpose.msra.mxu0 %v4688
  %5023 = vmatprep.subr.mxu0 0.0
  %5024 = vmatpush1.xpose.msra.mxu0 %v4687
  %5025 = vmatprep.subr.mxu0 0.0
  %5026 = vmatpush2.xpose.msra.mxu0 %v4718
  %5027 = vmatprep.subr.mxu0 0.0
  %5028 = vmatpush2.xpose.msra.mxu0 %v4717
  %5029 = vmatprep.subr.mxu0 0.0
  %5030 = vmatpush2.xpose.msra.mxu0 %v4716
  %5031 = vmatprep.subr.mxu0 0.0
  %5032 = vmatpush2.xpose.msra.mxu0 %v4715
  %5033 = vmatprep.subr.mxu0 0.0
  %5034 = vmatpush2.xpose.msra.mxu0 %v4714
  %5035 = vmatprep.subr.mxu0 0.0
  %5036 = vmatpush2.xpose.msra.mxu0 %v4713
  %5037 = vmatprep.subr.mxu0 0.0
  %5038 = vmatpush2.xpose.msra.mxu0 %v4712
  %5039 = vmatprep.subr.mxu0 0.0
  %5040 = vmatpush2.xpose.msra.mxu0 %v4711
  %5041 = vmatprep.subr.mxu0 0.0
  %5042 = vmatpush2.xpose.msra.mxu0 %v4710
  %5043 = vmatprep.subr.mxu0 0.0
  %5044 = vmatpush2.xpose.msra.mxu0 %v4709
  %5045 = vmatprep.subr.mxu0 0.0
  %5046 = vmatpush2.xpose.msra.mxu0 %v4708
  %5047 = vmatprep.subr.mxu0 0.0
  %5048 = vmatpush2.xpose.msra.mxu0 %v4707
  %5049 = vmatprep.subr.mxu0 0.0
  %5050 = vmatpush2.xpose.msra.mxu0 %v4706
  %5051 = vmatprep.subr.mxu0 0.0
  %5052 = vmatpush2.xpose.msra.mxu0 %v4705
  %5053 = vmatprep.subr.mxu0 0.0
  %5054 = vmatpush2.xpose.msra.mxu0 %v4704
  %5055 = vmatprep.subr.mxu0 0.0
  %5056 = vmatpush2.xpose.msra.mxu0 %v4703
  %5057 = vmatprep.mubr.f32.mxu0 0.0
  %5058 = vmatmul.mubr.f32.gmra.mxu0 %v4989
  %v5059 = vpop.f32.mrf.mxu0
  %v5060 = vadd.f32 %v4813, %v5059
  %v5061 = vpop.f32.mrf.mxu0
  %v5062 = vadd.f32 %v4817, %v5061
  %5063 = vdwg.mxu0
  %v5064 = vxor.u32 %v5060, 2147483648
  %v5065 = vxor.u32 %v5062, 2147483648
  %v5066 = vmul.f32 %v5064, 1.442695
  %v5067 = vpow.pop %v5066
  %v5068 = vmul.f32 %v5065, 1.442695
  %v5069 = vpow.pop %v5068
  %v5070 = vadd.f32 %v5067, 1.0
  %v5071 = vadd.f32 %v5069, 1.0
  %v5072 = vrcp.pop %v5070
  %v5073 = vmul.f32 1.0, %v5072
  %v5074 = vrcp.pop %v5071
  %v5075 = vmul.f32 1.0, %v5074
  %vm5076 = vcmp.lt.f32.partialorder %v4991, %v5073
  %vm5077 = vcmp.lt.f32.partialorder %v4992, %v5075
  %v5078 = vsel %vm5076, 1, 0
  %v5079 = vsel %vm5077, 1, 0
  %v5080 = vcvt.s32.f32 %v5078
  %v5081 = vcvt.s32.f32 %v5079
  %s5082 = scalar_lea.vmem %s16, 16
  %v5083 = vld [vmem:[%s5082] sm:$0xff]
  %5084 = vmatprep.subr.mxu0 0.0
  %5085 = vmatpush1.msra.mxu0 %v4702
  %5086 = vmatprep.subr.mxu0 0.0
  %5087 = vmatpush1.msra.mxu0 %v4701
  %5088 = vmatprep.subr.mxu0 0.0
  %5089 = vmatpush1.msra.mxu0 %v4700
  %5090 = vmatprep.subr.mxu0 0.0
  %5091 = vmatpush1.msra.mxu0 %v4699
  %5092 = vmatprep.subr.mxu0 0.0
  %5093 = vmatpush1.msra.mxu0 %v4698
  %5094 = vmatprep.subr.mxu0 0.0
  %5095 = vmatpush1.msra.mxu0 %v4697
  %5096 = vmatprep.subr.mxu0 0.0
  %5097 = vmatpush1.msra.mxu0 %v4696
  %5098 = vmatprep.subr.mxu0 0.0
  %5099 = vmatpush1.msra.mxu0 %v4695
  %5100 = vmatprep.subr.mxu0 0.0
  %5101 = vmatpush1.msra.mxu0 %v4694
  %5102 = vmatprep.subr.mxu0 0.0
  %5103 = vmatpush1.msra.mxu0 %v4693
  %5104 = vmatprep.subr.mxu0 0.0
  %5105 = vmatpush1.msra.mxu0 %v4692
  %5106 = vmatprep.subr.mxu0 0.0
  %5107 = vmatpush1.msra.mxu0 %v4691
  %5108 = vmatprep.subr.mxu0 0.0
  %5109 = vmatpush1.msra.mxu0 %v4690
  %5110 = vmatprep.subr.mxu0 0.0
  %5111 = vmatpush1.msra.mxu0 %v4689
  %5112 = vmatprep.subr.mxu0 0.0
  %5113 = vmatpush1.msra.mxu0 %v4688
  %5114 = vmatprep.subr.mxu0 0.0
  %5115 = vmatpush1.msra.mxu0 %v4687
  %5116 = vmatprep.subr.mxu0 0.0
  %5117 = vmatpush2.msra.mxu0 %v4718
  %5118 = vmatprep.subr.mxu0 0.0
  %5119 = vmatpush2.msra.mxu0 %v4717
  %5120 = vmatprep.subr.mxu0 0.0
  %5121 = vmatpush2.msra.mxu0 %v4716
  %5122 = vmatprep.subr.mxu0 0.0
  %5123 = vmatpush2.msra.mxu0 %v4715
  %5124 = vmatprep.subr.mxu0 0.0
  %5125 = vmatpush2.msra.mxu0 %v4714
  %5126 = vmatprep.subr.mxu0 0.0
  %5127 = vmatpush2.msra.mxu0 %v4713
  %5128 = vmatprep.subr.mxu0 0.0
  %5129 = vmatpush2.msra.mxu0 %v4712
  %5130 = vmatprep.subr.mxu0 0.0
  %5131 = vmatpush2.msra.mxu0 %v4711
  %5132 = vmatprep.subr.mxu0 0.0
  %5133 = vmatpush2.msra.mxu0 %v4710
  %5134 = vmatprep.subr.mxu0 0.0
  %5135 = vmatpush2.msra.mxu0 %v4709
  %5136 = vmatprep.subr.mxu0 0.0
  %5137 = vmatpush2.msra.mxu0 %v4708
  %5138 = vmatprep.subr.mxu0 0.0
  %5139 = vmatpush2.msra.mxu0 %v4707
  %5140 = vmatprep.subr.mxu0 0.0
  %5141 = vmatpush2.msra.mxu0 %v4706
  %5142 = vmatprep.subr.mxu0 0.0
  %5143 = vmatpush2.msra.mxu0 %v4705
  %5144 = vmatprep.subr.mxu0 0.0
  %5145 = vmatpush2.msra.mxu0 %v4704
  %5146 = vmatprep.subr.mxu0 0.0
  %5147 = vmatpush2.msra.mxu0 %v4703
  %5148 = vmatprep.mubr.f32.mxu0 %v5081
  %5149 = vmatmul.mubr.f32.gmra.mxu0 %v5080
  %v5150 = vpop.f32.mrf.mxu0
  %v5151 = vadd.f32 %v4726, %v5150
  %v5152 = vpop.f32.mrf.mxu0
  %5153 = vdwg.mxu0
  %v5154 = vxor.u32 %v5151, 2147483648
  %v5155 = vmul.f32 %v5154, 1.442695
  %v5156 = vpow.pop %v5155
  %v5157 = vadd.f32 %v5156, 1.0
  %v5158 = vrcp.pop %v5157
  %v5159 = vmul.f32 1.0, %v5158
  %vm5160 = vcmp.lt.f32.partialorder %v5083, %v5159
  %v5161 = vsel %vm5160, 1, 0
  %v5162 = vcvt.s32.f32 %v5161
  %v5163 = vld [vmem:[%s10] sm:$0xff]
  %v5164 = vld [vmem:[%s10 + $0x8] sm:$0xff]
  %v5165 = vld [vmem:[%s10 + $0x10] sm:$0xff]
  %v5166 = vld [vmem:[%s10 + $0x18] sm:$0xff]
  %v5167 = vld [vmem:[%s10 + $0x20] sm:$0xff]
  %v5168 = vld [vmem:[%s10 + $0x28] sm:$0xff]
  %v5169 = vld [vmem:[%s10 + $0x30] sm:$0xff]
  %v5170 = vld [vmem:[%s10 + $0x38] sm:$0xff]
  %v5171 = vld [vmem:[%s10 + $0x40] sm:$0xff]
  %v5172 = vld [vmem:[%s10 + $0x48] sm:$0xff]
  %v5173 = vld [vmem:[%s10 + $0x50] sm:$0xff]
  %v5174 = vld [vmem:[%s10 + $0x58] sm:$0xff]
  %v5175 = vld [vmem:[%s10 + $0x60] sm:$0xff]
  %v5176 = vld [vmem:[%s10 + $0x68] sm:$0xff]
  %v5177 = vld [vmem:[%s10 + $0x70] sm:$0xff]
  %v5178 = vld [vmem:[%s10 + $0x78] sm:$0xff]
  %v5179 = vld [vmem:[%s11] sm:$0x1]
  %v5181 = vlaneseq
  %v5182 = vshrl.u32 %v5181, 7
  %v5183 = vsub.s32 0, %v5182
  %v5184 = vrot.slane %v5179, %v5183
  %5186 = vmatprep.subr.mxu0 0.0
  %5187 = vmatpush1.msra.mxu0 %v5178
  %5188 = vmatprep.subr.mxu0 0.0
  %5189 = vmatpush1.msra.mxu0 %v5177
  %5190 = vmatprep.subr.mxu0 0.0
  %5191 = vmatpush1.msra.mxu0 %v5176
  %5192 = vmatprep.subr.mxu0 0.0
  %5193 = vmatpush1.msra.mxu0 %v5175
  %5194 = vmatprep.subr.mxu0 0.0
  %5195 = vmatpush1.msra.mxu0 %v5174
  %5196 = vmatprep.subr.mxu0 0.0
  %5197 = vmatpush1.msra.mxu0 %v5173
  %5198 = vmatprep.subr.mxu0 0.0
  %5199 = vmatpush1.msra.mxu0 %v5172
  %5200 = vmatprep.subr.mxu0 0.0
  %5201 = vmatpush1.msra.mxu0 %v5171
  %5202 = vmatprep.subr.mxu0 0.0
  %5203 = vmatpush1.msra.mxu0 %v5170
  %5204 = vmatprep.subr.mxu0 0.0
  %5205 = vmatpush1.msra.mxu0 %v5169
  %5206 = vmatprep.subr.mxu0 0.0
  %5207 = vmatpush1.msra.mxu0 %v5168
  %5208 = vmatprep.subr.mxu0 0.0
  %5209 = vmatpush1.msra.mxu0 %v5167
  %5210 = vmatprep.subr.mxu0 0.0
  %5211 = vmatpush1.msra.mxu0 %v5166
  %5212 = vmatprep.subr.mxu0 0.0
  %5213 = vmatpush1.msra.mxu0 %v5165
  %5214 = vmatprep.subr.mxu0 0.0
  %5215 = vmatpush1.msra.mxu0 %v5164
  %5216 = vmatprep.subr.mxu0 0.0
  %5217 = vmatpush1.msra.mxu0 %v5163
  %5218 = vmatprep.subr.mxu0 0.0
  %5219 = vmatpush2.msra.mxu0 0.0
  %5220 = vmatprep.subr.mxu0 0.0
  %5221 = vmatpush2.msra.mxu0 0.0
  %5222 = vmatprep.subr.mxu0 0.0
  %5223 = vmatpush2.msra.mxu0 0.0
  %5224 = vmatprep.subr.mxu0 0.0
  %5225 = vmatpush2.msra.mxu0 0.0
  %5226 = vmatprep.subr.mxu0 0.0
  %5227 = vmatpush2.msra.mxu0 0.0
  %5228 = vmatprep.subr.mxu0 0.0
  %5229 = vmatpush2.msra.mxu0 0.0
  %5230 = vmatprep.subr.mxu0 0.0
  %5231 = vmatpush2.msra.mxu0 0.0
  %5232 = vmatprep.subr.mxu0 0.0
  %5233 = vmatpush2.msra.mxu0 0.0
  %5234 = vmatprep.subr.mxu0 0.0
  %5235 = vmatpush2.msra.mxu0 0.0
  %5236 = vmatprep.subr.mxu0 0.0
  %5237 = vmatpush2.msra.mxu0 0.0
  %5238 = vmatprep.subr.mxu0 0.0
  %5239 = vmatpush2.msra.mxu0 0.0
  %5240 = vmatprep.subr.mxu0 0.0
  %5241 = vmatpush2.msra.mxu0 0.0
  %5242 = vmatprep.subr.mxu0 0.0
  %5243 = vmatpush2.msra.mxu0 0.0
  %5244 = vmatprep.subr.mxu0 0.0
  %5245 = vmatpush2.msra.mxu0 0.0
  %5246 = vmatprep.subr.mxu0 0.0
  %5247 = vmatpush2.msra.mxu0 0.0
  %5248 = vmatprep.subr.mxu0 0.0
  %5249 = vmatpush2.msra.mxu0 0.0
  %5250 = vmatprep.mubr.f32.mxu0 0.0
  %5251 = vmatmul.mubr.f32.gmra.mxu0 %v5162
  %v5252 = vpop.f32.mrf.mxu0
  %v5253 = vadd.f32 %v5184, %v5252
  %v5254 = vpop.f32.mrf.mxu0
  %5255 = vdwg.mxu0
  %5256 = vst [vmem:[%s18] sm:$0xff] %v5253
  // Predicated region
  $region74: #{dbn_forward.3} parent=0 // pred_check
    _
  $region75: #{dbn_forward.3} parent=0 // pred_check_branch
    %5258 = sbr.rel (0) target = $region77
  $region76: #{dbn_forward.3} parent=0 // pred_region
    _
  $region77: #{dbn_forward.3} parent=0 // pred_fallthru
    _
  // Predicated region
  $region78: #{dbn_forward.3} parent=0 // pred_check
    _
  $region79: #{dbn_forward.3} parent=0 // pred_check_branch
    %5260 = sbr.rel (0) target = $region81
  $region80: #{dbn_forward.3} parent=0 // pred_region
    _
  $region81: #{dbn_forward.3} parent=0 // pred_fallthru
    _

</llo_original>
